<compile_context>
chip_gen: v7x
topology: tpu7x:2x2x1
jax: 0.10.0
libtpu: 0.0.40
codegen_flags: <defaults>
</compile_context>

<pallas_src>
import math

import jax
import jax.numpy as jnp
from jax.experimental import pallas as pl
from jax.experimental.pallas import tpu as pltpu

# ----------------------------- model config (small, Qwen2-style) ---------------
VOCAB = 256
HIDDEN = 128
N_HEADS = 4
N_KV_HEADS = 2                      # GQA
GROUP = N_HEADS // N_KV_HEADS       # 2
HEAD_DIM = HIDDEN // N_HEADS        # 32
HALF = HEAD_DIM // 2                # 16
INTERMEDIATE = 256
N_LAYERS = 2
RMS_EPS = 1e-6
ROPE_THETA = 10000.0

Q_W = N_HEADS * HEAD_DIM            # 128
KV_W = N_KV_HEADS * HEAD_DIM        # 64
GU_W = 2 * INTERMEDIATE             # 512

# fused projection column layout: [ Wq | Wk | Wv | rot_half(Wq) | rot_half(Wk) ]
OFF_Q = 0
OFF_K = Q_W                         # 128
OFF_V = Q_W + KV_W                  # 192
OFF_QR = Q_W + 2 * KV_W             # 256
OFF_KR = OFF_QR + Q_W               # 384
QKV_W = OFF_KR + KV_W               # 448


def _rmsnorm(x, w):
    var = jnp.mean(x * x, axis=-1, keepdims=True)
    return x * jax.lax.rsqrt(var + RMS_EPS) * w


# ----------------------------- fused full-stage kernel -------------------------
def qwen2_stage_kernel(x_ref, cq_ref, sq_ref, ck_ref, sk_ref, mask_ref,
                       w_in_ref, wqkv_ref, bqkv_ref, wo_ref,
                       w_post_ref, wgu_ref, wd_ref, o_ref):
    b_blk = mask_ref.shape[0]
    seq = mask_ref.shape[2]
    n_layers = w_in_ref.shape[0]
    scale = 1.0 / math.sqrt(HEAD_DIM)

    cq = cq_ref[...]                  # [M, Q_W]  per-head-tiled cos (layer invariant)
    sq = sq_ref[...]                  # [M, Q_W]
    ck = ck_ref[...]                  # [M, KV_W]
    sk = sk_ref[...]                  # [M, KV_W]

    def layer(l, x):
        # ---------------- self attention ---------------------------------------
        h = _rmsnorm(x, w_in_ref[l]).astype(jnp.bfloat16)
        qkv = jnp.dot(h, wqkv_ref[l],
                      preferred_element_type=jnp.float32) + bqkv_ref[l]   # [M, 448]
        # RoPE folded into the projection: the *_R columns already hold
        # rotate_half(q) / rotate_half(k), so rope is two full-width mul-adds.
        q = (qkv[:, OFF_Q:OFF_Q + Q_W] * cq
             + qkv[:, OFF_QR:OFF_QR + Q_W] * sq).astype(jnp.bfloat16)     # [M, 128]
        k = (qkv[:, OFF_K:OFF_K + KV_W] * ck
             + qkv[:, OFF_KR:OFF_KR + KV_W] * sk).astype(jnp.bfloat16)    # [M, 64]
        v = qkv[:, OFF_V:OFF_V + KV_W].astype(jnp.bfloat16)               # [M, 64]

        ctx_rows = []
        for b in range(b_blk):                       # static loop over batch rows
            mask_b = mask_ref[b]                     # [GROUP*S, S] additive, pre-stacked
            parts = []
            for kv in range(N_KV_HEADS):             # static loop over KV heads
                qg = q[b * seq:(b + 1) * seq,
                       kv * GROUP * HEAD_DIM:(kv + 1) * GROUP * HEAD_DIM]  # [S, 64]
                # stack this KV group's Q heads along sublanes -> one score matmul
                q_stack = jnp.concatenate(
                    [qg[:, g * HEAD_DIM:(g + 1) * HEAD_DIM] for g in range(GROUP)],
                    axis=0)                                              # [GROUP*S, hd]
                kh = k[b * seq:(b + 1) * seq,
                       kv * HEAD_DIM:(kv + 1) * HEAD_DIM]                # [S, hd]
                sc = jax.lax.dot_general(q_stack, kh, (((1,), (1,)), ((), ())),
                                         preferred_element_type=jnp.float32)
                sc = sc * scale + mask_b                                 # [GROUP*S, S]
                mx = jnp.max(sc, axis=-1, keepdims=True)
                p = jnp.exp(sc - mx)
                p = p * pl.reciprocal(jnp.sum(p, axis=-1, keepdims=True), approx=True)
                vb = v[b * seq:(b + 1) * seq,
                       kv * HEAD_DIM:(kv + 1) * HEAD_DIM]                # [S, hd]
                pv = jnp.dot(p.astype(jnp.bfloat16), vb,
                             preferred_element_type=jnp.float32)         # [GROUP*S, hd]
                parts.extend([pv[g * seq:(g + 1) * seq] for g in range(GROUP)])
            ctx_rows.append(jnp.concatenate(parts, axis=-1))             # [S, 128]
        ctx = jnp.concatenate(ctx_rows, axis=0).astype(jnp.bfloat16)     # [M, 128]
        x = x + jnp.dot(ctx, wo_ref[l], preferred_element_type=jnp.float32)

        # ---------------- SwiGLU MLP --------------------------------------------
        h2 = _rmsnorm(x, w_post_ref[l]).astype(jnp.bfloat16)
        gu = jnp.dot(h2, wgu_ref[l], preferred_element_type=jnp.float32)  # [M, 512]
        g = gu[:, :INTERMEDIATE]
        u = gu[:, INTERMEDIATE:]
        act = (g * jax.nn.sigmoid(g) * u).astype(jnp.bfloat16)
        return x + jnp.dot(act, wd_ref[l], preferred_element_type=jnp.float32)

    # Layer axis collapsed into the kernel: hidden state stays in registers, all
    # layer weights are VMEM-resident.  (For deep models switch this static loop
    # to lax.fori_loop to bound the trace size / live ranges.)
    x = x_ref[...]                                   # [M, D] f32
    for l in range(n_layers):
        x = layer(l, x)
    o_ref[...] = x


def run_stage(hidden, cos, sin, mask, sw, b_blk=None):
    B, S, D = hidden.shape
    if b_blk is None:
        # Fully stack the batch (best MXU M-fill on v5e/v6e single TC).
        # On v7x use b_blk = B // 2 so both TensorCores get a "parallel" block.
        b_blk = B
    assert B % b_blk == 0
    n_blk = B // b_blk
    M = b_blk * S

    # Flatten batch into matmul rows and pre-tile the layer-invariant rope tables
    # and additive mask in the wrapper (pure layout plumbing).
    x2 = hidden.reshape(B * S, D)
    cos_q = jnp.tile(cos, (1, 1, N_HEADS)).reshape(B * S, Q_W)
    sin_q = jnp.tile(sin, (1, 1, N_HEADS)).reshape(B * S, Q_W)
    cos_k = jnp.tile(cos, (1, 1, N_KV_HEADS)).reshape(B * S, KV_W)
    sin_k = jnp.tile(sin, (1, 1, N_KV_HEADS)).reshape(B * S, KV_W)
    mask_g = jnp.tile(mask, (1, GROUP, 1))                   # [B, GROUP*S, S]

    def rows(width):
        return pl.BlockSpec((M, width), lambda i: (i, 0))

    def whole(arr):                                          # all layers resident
        return pl.BlockSpec(arr.shape, lambda i: (0,) * arr.ndim)

    out = pl.pallas_call(
        qwen2_stage_kernel,
        out_shape=jax.ShapeDtypeStruct((B * S, D), jnp.float32),
        grid_spec=pltpu.PrefetchScalarGridSpec(
            num_scalar_prefetch=0,
            grid=(n_blk,),
            in_specs=[
                rows(D),                                     # hidden rows
                rows(Q_W), rows(Q_W),                        # cos_q, sin_q
                rows(KV_W), rows(KV_W),                      # cos_k, sin_k
                pl.BlockSpec((b_blk, GROUP * S, S), lambda i: (i, 0, 0)),  # mask
                whole(sw["w_in"]), whole(sw["wqkv"]), whole(sw["bqkv"]),
                whole(sw["wo"]), whole(sw["w_post"]), whole(sw["wgu"]),
                whole(sw["wd"]),
            ],
            out_specs=rows(D),
        ),
        compiler_params=pltpu.CompilerParams(
            dimension_semantics=("parallel",)),
    )(x2, cos_q, sin_q, cos_k, sin_k, mask_g,
      sw["w_in"], sw["wqkv"], sw["bqkv"], sw["wo"],
      sw["w_post"], sw["wgu"], sw["wd"])
    return out.reshape(B, S, D)


# ----------------------------- plain-JAX glue ----------------------------------
def rotary_embedding(position_ids):
    # position_ids: [B, S] int -> cos/sin [B, S, HEAD_DIM]  (HF half-split layout)
    inv_freq = 1.0 / (ROPE_THETA ** (
        jnp.arange(0, HEAD_DIM, 2, dtype=jnp.float32) / HEAD_DIM))
    freqs = position_ids.astype(jnp.float32)[:, :, None] * inv_freq[None, None, :]
    emb = jnp.concatenate([freqs, freqs], axis=-1)
    return jnp.cos(emb), jnp.sin(emb)


def first_stage_forward(input_ids, decoder_attn_mask, position_ids,
                        embed_table, stacked_weights):
    # embedding lookup (gather) is glue; everything else is inside one Pallas call
    hidden = jnp.take(embed_table, input_ids, axis=0).astype(jnp.float32)
    cos, sin = rotary_embedding(position_ids)
    return run_stage(hidden, cos, sin, decoder_attn_mask, stacked_weights)


def _rotate_half_cols(w, n_heads):
    """Permute/negate projection columns so that  x @ w_r == rotate_half(x @ w)."""
    rows_ = w.shape[0]
    w = w.reshape(rows_, n_heads, HEAD_DIM)
    w_r = jnp.concatenate([-w[..., HALF:], w[..., :HALF]], axis=-1)
    return w_r.reshape(rows_, n_heads * HEAD_DIM)


def init_params(key):
    std = 0.02
    keys = jax.random.split(key, 1 + N_LAYERS)
    embed = jax.random.normal(keys[0], (VOCAB, HIDDEN), jnp.float32) * std
    stacked = {k: [] for k in ("w_in", "wqkv", "bqkv", "wo", "w_post", "wgu", "wd")}
    ref_layers = []
    for i in range(N_LAYERS):
        ks = jax.random.split(keys[1 + i], 10)
        wq = jax.random.normal(ks[0], (HIDDEN, Q_W), jnp.float32) * std
        bq = jax.random.normal(ks[1], (1, Q_W), jnp.float32) * std
        wk = jax.random.normal(ks[2], (HIDDEN, KV_W), jnp.float32) * std
        bk = jax.random.normal(ks[3], (1, KV_W), jnp.float32) * std
        wv = jax.random.normal(ks[4], (HIDDEN, KV_W), jnp.float32) * std
        bv = jax.random.normal(ks[5], (1, KV_W), jnp.float32) * std
        wo = jax.random.normal(ks[6], (Q_W, HIDDEN), jnp.float32) * std
        wg = jax.random.normal(ks[7], (HIDDEN, INTERMEDIATE), jnp.float32) * std
        wu = jax.random.normal(ks[8], (HIDDEN, INTERMEDIATE), jnp.float32) * std
        wd = jax.random.normal(ks[9], (INTERMEDIATE, HIDDEN), jnp.float32) * std
        w_in = jnp.ones((1, HIDDEN), jnp.float32)
        w_post = jnp.ones((1, HIDDEN), jnp.float32)

        wq_b = wq.astype(jnp.bfloat16)
        wk_b = wk.astype(jnp.bfloat16)
        wv_b = wv.astype(jnp.bfloat16)
        # fused [Wq | Wk | Wv | rot_half(Wq) | rot_half(Wk)]  (rope folded in)
        wqkv = jnp.concatenate(
            [wq_b, wk_b, wv_b,
             _rotate_half_cols(wq_b, N_HEADS), _rotate_half_cols(wk_b, N_KV_HEADS)],
            axis=1)                                                   # [D, 448] bf16
        bqkv = jnp.concatenate(
            [bq, bk, bv,
             _rotate_half_cols(bq, N_HEADS), _rotate_half_cols(bk, N_KV_HEADS)],
            axis=1)                                                   # [1, 448] f32

        stacked["w_in"].append(w_in)
        stacked["wqkv"].append(wqkv)
        stacked["bqkv"].append(bqkv)
        stacked["wo"].append(wo.astype(jnp.bfloat16))
        stacked["w_post"].append(w_post)
        stacked["wgu"].append(jnp.concatenate([wg, wu], axis=1).astype(jnp.bfloat16))
        stacked["wd"].append(wd.astype(jnp.bfloat16))
        ref_layers.append(dict(w_in=w_in, wq=wq_b, bq=bq, wk=wk_b, bk=bk,
                               wv=wv_b, bv=bv, wo=wo.astype(jnp.bfloat16),
                               w_post=w_post, wg=wg.astype(jnp.bfloat16),
                               wu=wu.astype(jnp.bfloat16),
                               wd=wd.astype(jnp.bfloat16)))
    stacked = {k: jnp.stack(v, axis=0) for k, v in stacked.items()}
    return embed, stacked, ref_layers


def reference_forward(input_ids, mask, position_ids, embed, layers):
    """Pure-JAX reference (standard HF Qwen2 math; same bf16 casts as the kernel)."""
    x = jnp.take(embed, input_ids, axis=0).astype(jnp.float32)
    cos, sin = rotary_embedding(position_ids)                # [B, S, HEAD_DIM]
    scale = 1.0 / math.sqrt(HEAD_DIM)
    B, S, _ = x.shape

    def rope(t):                                             # t: [B, S, H, hd]
        rh = jnp.concatenate([-t[..., HALF:], t[..., :HALF]], axis=-1)
        return t * cos[:, :, None, :] + rh * sin[:, :, None, :]

    for lw in layers:
        h = _rmsnorm(x, lw["w_in"]).astype(jnp.bfloat16)
        q = jnp.dot(h, lw["wq"], preferred_element_type=jnp.float32) + lw["bq"]
        k = jnp.dot(h, lw["wk"], preferred_element_type=jnp.float32) + lw["bk"]
        v = jnp.dot(h, lw["wv"], preferred_element_type=jnp.float32) + lw["bv"]
        q = rope(q.reshape(B, S, N_HEADS, HEAD_DIM)).astype(jnp.bfloat16)
        k = rope(k.reshape(B, S, N_KV_HEADS, HEAD_DIM)).astype(jnp.bfloat16)
        v = v.reshape(B, S, N_KV_HEADS, HEAD_DIM).astype(jnp.bfloat16)
        k = jnp.repeat(k, GROUP, axis=2)
        v = jnp.repeat(v, GROUP, axis=2)
        sc = jnp.einsum("bqhd,bkhd->bhqk", q, k,
                        preferred_element_type=jnp.float32) * scale
        sc = sc + mask[:, None, :, :]
        p = jax.nn.softmax(sc, axis=-1)
        ctx = jnp.einsum("bhqk,bkhd->bqhd", p.astype(jnp.bfloat16), v,
                         preferred_element_type=jnp.float32)
        ctx = ctx.reshape(B, S, HIDDEN).astype(jnp.bfloat16)
        x = x + jnp.dot(ctx, lw["wo"], preferred_element_type=jnp.float32)
        h2 = _rmsnorm(x, lw["w_post"]).astype(jnp.bfloat16)
        g = jnp.dot(h2, lw["wg"], preferred_element_type=jnp.float32)
        u = jnp.dot(h2, lw["wu"], preferred_element_type=jnp.float32)
        act = (g * jax.nn.sigmoid(g) * u).astype(jnp.bfloat16)
        x = x + jnp.dot(act, lw["wd"], preferred_element_type=jnp.float32)
    return x


if __name__ == "__main__":
    B, S = 2, 8
    key = jax.random.PRNGKey(0)
    embed_table, stacked_weights, ref_layers = init_params(key)

    input_ids = jax.random.randint(jax.random.fold_in(key, 99), (B, S), 0, VOCAB,
                                   dtype=jnp.int32)
    position_ids = jnp.broadcast_to(jnp.arange(S, dtype=jnp.int32), (B, S))

    # additive causal mask [B, S, S]: 0 where attended, -1e9 where masked
    causal = jnp.tril(jnp.ones((S, S), jnp.float32))
    mask = jnp.where(causal == 1.0, 0.0, -1e9)
    mask = jnp.broadcast_to(mask[None], (B, S, S)).astype(jnp.float32)

    out = first_stage_forward(input_ids, mask, position_ids,
                              embed_table, stacked_weights)
    out = jax.block_until_ready(out)
    assert out.shape == (B, S, HIDDEN), out.shape
    assert bool(jnp.all(jnp.isfinite(out)))

    # numerical check vs a pure-JAX reference of the original (unfused) math;
    # tolerance covers the approx-reciprocal softmax and bf16 rounding order.
    ref = reference_forward(input_ids, mask, position_ids, embed_table, ref_layers)
    max_err = float(jnp.max(jnp.abs(out - ref)))
    assert max_err < 5e-3, f"max abs error vs reference: {max_err}"
    print("KERNEL_OK")
</pallas_src>

<mosaic_0001>
module attributes {stable_mosaic.version = 11 : i64} {
  func.func @qwen2_stage_kernel(%arg0: i32, %arg1: memref<16x128xf32, #tpu.memory_space<vmem>>, %arg2: memref<16x128xf32, #tpu.memory_space<vmem>>, %arg3: memref<16x128xf32, #tpu.memory_space<vmem>>, %arg4: memref<16x64xf32, #tpu.memory_space<vmem>>, %arg5: memref<16x64xf32, #tpu.memory_space<vmem>>, %arg6: memref<2x16x8xf32, #tpu.memory_space<vmem>>, %arg7: memref<2x1x128xf32, #tpu.memory_space<vmem>>, %arg8: memref<2x128x448xbf16, #tpu.memory_space<vmem>>, %arg9: memref<2x1x448xf32, #tpu.memory_space<vmem>>, %arg10: memref<2x128x128xbf16, #tpu.memory_space<vmem>>, %arg11: memref<2x1x128xf32, #tpu.memory_space<vmem>>, %arg12: memref<2x128x512xbf16, #tpu.memory_space<vmem>>, %arg13: memref<2x256x128xbf16, #tpu.memory_space<vmem>>, %arg14: memref<16x128xf32, #tpu.memory_space<vmem>>) attributes {dimension_semantics = [#tpu.dimension_semantics<parallel>], iteration_bounds = array<i64: 1>, scalar_prefetch = 0 : i64, scratch_operands = 0 : i64, tpu.core_type = #tpu.core_type<tc>, window_params = [{transform_indices = @transform_0, window_bounds = array<i64: 16, 128>}, {transform_indices = @transform_1, window_bounds = array<i64: 16, 128>}, {transform_indices = @transform_2, window_bounds = array<i64: 16, 128>}, {transform_indices = @transform_3, window_bounds = array<i64: 16, 64>}, {transform_indices = @transform_4, window_bounds = array<i64: 16, 64>}, {transform_indices = @transform_5, window_bounds = array<i64: 2, 16, 8>}, {pipeline_mode = #tpu.pipeline_mode<synchronous>, transform_indices = @transform_6, window_bounds = array<i64: 2, 1, 128>}, {pipeline_mode = #tpu.pipeline_mode<synchronous>, transform_indices = @transform_7, window_bounds = array<i64: 2, 128, 448>}, {pipeline_mode = #tpu.pipeline_mode<synchronous>, transform_indices = @transform_8, window_bounds = array<i64: 2, 1, 448>}, {pipeline_mode = #tpu.pipeline_mode<synchronous>, transform_indices = @transform_9, window_bounds = array<i64: 2, 128, 128>}, {pipeline_mode = #tpu.pipeline_mode<synchronous>, transform_indices = @transform_10, window_bounds = array<i64: 2, 1, 128>}, {pipeline_mode = #tpu.pipeline_mode<synchronous>, transform_indices = @transform_11, window_bounds = array<i64: 2, 128, 512>}, {pipeline_mode = #tpu.pipeline_mode<synchronous>, transform_indices = @transform_12, window_bounds = array<i64: 2, 256, 128>}, {transform_indices = @transform_13, window_bounds = array<i64: 16, 128>}]} {
    %c0 = arith.constant 0 : index
    %c0_0 = arith.constant 0 : index
    %0 = vector.load %arg2[%c0, %c0_0] : memref<16x128xf32, #tpu.memory_space<vmem>>, vector<16x128xf32>
    %c0_1 = arith.constant 0 : index
    %c0_2 = arith.constant 0 : index
    %1 = vector.load %arg3[%c0_1, %c0_2] : memref<16x128xf32, #tpu.memory_space<vmem>>, vector<16x128xf32>
    %c0_3 = arith.constant 0 : index
    %c0_4 = arith.constant 0 : index
    %2 = vector.load %arg4[%c0_3, %c0_4] : memref<16x64xf32, #tpu.memory_space<vmem>>, vector<16x64xf32>
    %c0_5 = arith.constant 0 : index
    %c0_6 = arith.constant 0 : index
    %3 = vector.load %arg5[%c0_5, %c0_6] : memref<16x64xf32, #tpu.memory_space<vmem>>, vector<16x64xf32>
    %c0_7 = arith.constant 0 : index
    %c0_8 = arith.constant 0 : index
    %4 = vector.load %arg1[%c0_7, %c0_8] : memref<16x128xf32, #tpu.memory_space<vmem>>, vector<16x128xf32>
    %c0_9 = arith.constant 0 : index
    %c0_10 = arith.constant 0 : index
    %c0_11 = arith.constant 0 : index
    %5 = vector.load %arg7[%c0_9, %c0_10, %c0_11] : memref<2x1x128xf32, #tpu.memory_space<vmem>>, vector<1x1x128xf32>
    %6 = vector.shape_cast %5 : vector<1x1x128xf32> to vector<1x128xf32>
    %7 = arith.mulf %4, %4 : vector<16x128xf32>
    %cst = arith.constant dense<0.000000e+00> : vector<16xf32>
    %8 = vector.multi_reduction <add>, %7, %cst [1] : vector<16x128xf32> to vector<16xf32>
    %9 = vector.shape_cast %8 : vector<16xf32> to vector<16x1xf32>
    %cst_12 = arith.constant 1.280000e+02 : f32
    %10 = vector.broadcast %cst_12 : f32 to vector<16x1xf32>
    %11 = arith.divf %9, %10 : vector<16x1xf32>
    %cst_13 = arith.constant 9.99999997E-7 : f32
    %12 = vector.broadcast %cst_13 : f32 to vector<16x1xf32>
    %13 = arith.addf %11, %12 : vector<16x1xf32>
    %14 = math.rsqrt %13 : vector<16x1xf32>
    %15 = vector.broadcast %14 : vector<16x1xf32> to vector<16x128xf32>
    %16 = arith.mulf %4, %15 : vector<16x128xf32>
    %17 = vector.broadcast %6 : vector<1x128xf32> to vector<16x128xf32>
    %18 = arith.mulf %16, %17 : vector<16x128xf32>
    %19 = arith.truncf %18 : vector<16x128xf32> to vector<16x128xbf16>
    %c0_14 = arith.constant 0 : index
    %c0_15 = arith.constant 0 : index
    %c0_16 = arith.constant 0 : index
    %20 = vector.load %arg8[%c0_14, %c0_15, %c0_16] : memref<2x128x448xbf16, #tpu.memory_space<vmem>>, vector<1x128x448xbf16>
    %21 = vector.shape_cast %20 : vector<1x128x448xbf16> to vector<128x448xbf16>
    %cst_17 = arith.constant dense<0.000000e+00> : vector<16x448xf32>
    %22 = tpu.matmul %19, %21, %cst_17 {dimension_numbers = #tpu.dot_dimension_numbers<[1], [0], [0], [1], [0, 0, 1, 1], [], []>} : vector<16x128xbf16>, vector<128x448xbf16>, vector<16x448xf32> -> vector<16x448xf32>
    %c0_18 = arith.constant 0 : index
    %c0_19 = arith.constant 0 : index
    %c0_20 = arith.constant 0 : index
    %23 = vector.load %arg9[%c0_18, %c0_19, %c0_20] : memref<2x1x448xf32, #tpu.memory_space<vmem>>, vector<1x1x448xf32>
    %24 = vector.shape_cast %23 : vector<1x1x448xf32> to vector<1x448xf32>
    %25 = vector.broadcast %24 : vector<1x448xf32> to vector<16x448xf32>
    %26 = arith.addf %22, %25 : vector<16x448xf32>
    %27 = vector.extract_strided_slice %26 {offsets = [0, 0], sizes = [16, 128], strides = [1, 1]} : vector<16x448xf32> to vector<16x128xf32>
    %28 = arith.mulf %27, %0 : vector<16x128xf32>
    %29 = vector.extract_strided_slice %26 {offsets = [0, 256], sizes = [16, 128], strides = [1, 1]} : vector<16x448xf32> to vector<16x128xf32>
    %30 = arith.mulf %29, %1 : vector<16x128xf32>
    %31 = arith.addf %28, %30 : vector<16x128xf32>
    %32 = arith.truncf %31 : vector<16x128xf32> to vector<16x128xbf16>
    %33 = vector.extract_strided_slice %26 {offsets = [0, 128], sizes = [16, 64], strides = [1, 1]} : vector<16x448xf32> to vector<16x64xf32>
    %34 = arith.mulf %33, %2 : vector<16x64xf32>
    %35 = vector.extract_strided_slice %26 {offsets = [0, 384], sizes = [16, 64], strides = [1, 1]} : vector<16x448xf32> to vector<16x64xf32>
    %36 = arith.mulf %35, %3 : vector<16x64xf32>
    %37 = arith.addf %34, %36 : vector<16x64xf32>
    %38 = arith.truncf %37 : vector<16x64xf32> to vector<16x64xbf16>
    %39 = vector.extract_strided_slice %26 {offsets = [0, 192], sizes = [16, 64], strides = [1, 1]} : vector<16x448xf32> to vector<16x64xf32>
    %40 = arith.truncf %39 : vector<16x64xf32> to vector<16x64xbf16>
    %c0_21 = arith.constant 0 : index
    %c0_22 = arith.constant 0 : index
    %c0_23 = arith.constant 0 : index
    %41 = vector.load %arg6[%c0_21, %c0_22, %c0_23] : memref<2x16x8xf32, #tpu.memory_space<vmem>>, vector<1x16x8xf32>
    %42 = vector.shape_cast %41 : vector<1x16x8xf32> to vector<16x8xf32>
    %43 = vector.extract_strided_slice %32 {offsets = [0, 0], sizes = [8, 64], strides = [1, 1]} : vector<16x128xbf16> to vector<8x64xbf16>
    %44 = vector.extract_strided_slice %43 {offsets = [0, 0], sizes = [8, 32], strides = [1, 1]} : vector<8x64xbf16> to vector<8x32xbf16>
    %45 = vector.extract_strided_slice %43 {offsets = [0, 32], sizes = [8, 32], strides = [1, 1]} : vector<8x64xbf16> to vector<8x32xbf16>
    %46 = tpu.concatenate %44, %45 in 0 : vector<8x32xbf16>, vector<8x32xbf16> -> vector<16x32xbf16>
    %47 = vector.extract_strided_slice %38 {offsets = [0, 0], sizes = [8, 32], strides = [1, 1]} : vector<16x64xbf16> to vector<8x32xbf16>
    %cst_24 = arith.constant dense<0.000000e+00> : vector<16x8xf32>
    %48 = tpu.matmul %46, %47, %cst_24 {dimension_numbers = #tpu.dot_dimension_numbers<[1], [1], [0], [0], [0, 0, 1, 0], [], []>} : vector<16x32xbf16>, vector<8x32xbf16>, vector<16x8xf32> -> vector<16x8xf32>
    %cst_25 = arith.constant 0.176776692 : f32
    %49 = vector.broadcast %cst_25 : f32 to vector<16x8xf32>
    %50 = arith.mulf %48, %49 : vector<16x8xf32>
    %51 = arith.addf %50, %42 : vector<16x8xf32>
    %cst_26 = arith.constant dense<0xFF800000> : vector<16xf32>
    %52 = vector.multi_reduction <maximumf>, %51, %cst_26 [1] : vector<16x8xf32> to vector<16xf32>
    %53 = vector.shape_cast %52 : vector<16xf32> to vector<16x1xf32>
    %54 = vector.broadcast %53 : vector<16x1xf32> to vector<16x8xf32>
    %55 = arith.subf %51, %54 : vector<16x8xf32>
    %56 = math.exp %55 : vector<16x8xf32>
    %cst_27 = arith.constant dense<0.000000e+00> : vector<16xf32>
    %57 = vector.multi_reduction <add>, %56, %cst_27 [1] : vector<16x8xf32> to vector<16xf32>
    %58 = vector.shape_cast %57 : vector<16xf32> to vector<16x1xf32>
    %59 = tpu.reciprocal %58 {approx = true} : vector<16x1xf32> -> vector<16x1xf32>
    %60 = vector.broadcast %59 : vector<16x1xf32> to vector<16x8xf32>
    %61 = arith.mulf %56, %60 : vector<16x8xf32>
    %62 = vector.extract_strided_slice %40 {offsets = [0, 0], sizes = [8, 32], strides = [1, 1]} : vector<16x64xbf16> to vector<8x32xbf16>
    %63 = arith.truncf %61 : vector<16x8xf32> to vector<16x8xbf16>
    %cst_28 = arith.constant dense<0.000000e+00> : vector<16x32xf32>
    %64 = tpu.matmul %63, %62, %cst_28 {dimension_numbers = #tpu.dot_dimension_numbers<[1], [0], [0], [1], [0, 0, 1, 1], [], []>} : vector<16x8xbf16>, vector<8x32xbf16>, vector<16x32xf32> -> vector<16x32xf32>
    %65 = vector.extract_strided_slice %64 {offsets = [0, 0], sizes = [8, 32], strides = [1, 1]} : vector<16x32xf32> to vector<8x32xf32>
    %66 = vector.extract_strided_slice %64 {offsets = [8, 0], sizes = [8, 32], strides = [1, 1]} : vector<16x32xf32> to vector<8x32xf32>
    %67 = vector.extract_strided_slice %32 {offsets = [0, 64], sizes = [8, 64], strides = [1, 1]} : vector<16x128xbf16> to vector<8x64xbf16>
    %68 = vector.extract_strided_slice %67 {offsets = [0, 0], sizes = [8, 32], strides = [1, 1]} : vector<8x64xbf16> to vector<8x32xbf16>
    %69 = vector.extract_strided_slice %67 {offsets = [0, 32], sizes = [8, 32], strides = [1, 1]} : vector<8x64xbf16> to vector<8x32xbf16>
    %70 = tpu.concatenate %68, %69 in 0 : vector<8x32xbf16>, vector<8x32xbf16> -> vector<16x32xbf16>
    %71 = vector.extract_strided_slice %38 {offsets = [0, 32], sizes = [8, 32], strides = [1, 1]} : vector<16x64xbf16> to vector<8x32xbf16>
    %cst_29 = arith.constant dense<0.000000e+00> : vector<16x8xf32>
    %72 = tpu.matmul %70, %71, %cst_29 {dimension_numbers = #tpu.dot_dimension_numbers<[1], [1], [0], [0], [0, 0, 1, 0], [], []>} : vector<16x32xbf16>, vector<8x32xbf16>, vector<16x8xf32> -> vector<16x8xf32>
    %cst_30 = arith.constant 0.176776692 : f32
    %73 = vector.broadcast %cst_30 : f32 to vector<16x8xf32>
    %74 = arith.mulf %72, %73 : vector<16x8xf32>
    %75 = arith.addf %74, %42 : vector<16x8xf32>
    %cst_31 = arith.constant dense<0xFF800000> : vector<16xf32>
    %76 = vector.multi_reduction <maximumf>, %75, %cst_31 [1] : vector<16x8xf32> to vector<16xf32>
    %77 = vector.shape_cast %76 : vector<16xf32> to vector<16x1xf32>
    %78 = vector.broadcast %77 : vector<16x1xf32> to vector<16x8xf32>
    %79 = arith.subf %75, %78 : vector<16x8xf32>
    %80 = math.exp %79 : vector<16x8xf32>
    %cst_32 = arith.constant dense<0.000000e+00> : vector<16xf32>
    %81 = vector.multi_reduction <add>, %80, %cst_32 [1] : vector<16x8xf32> to vector<16xf32>
    %82 = vector.shape_cast %81 : vector<16xf32> to vector<16x1xf32>
    %83 = tpu.reciprocal %82 {approx = true} : vector<16x1xf32> -> vector<16x1xf32>
    %84 = vector.broadcast %83 : vector<16x1xf32> to vector<16x8xf32>
    %85 = arith.mulf %80, %84 : vector<16x8xf32>
    %86 = vector.extract_strided_slice %40 {offsets = [0, 32], sizes = [8, 32], strides = [1, 1]} : vector<16x64xbf16> to vector<8x32xbf16>
    %87 = arith.truncf %85 : vector<16x8xf32> to vector<16x8xbf16>
    %cst_33 = arith.constant dense<0.000000e+00> : vector<16x32xf32>
    %88 = tpu.matmul %87, %86, %cst_33 {dimension_numbers = #tpu.dot_dimension_numbers<[1], [0], [0], [1], [0, 0, 1, 1], [], []>} : vector<16x8xbf16>, vector<8x32xbf16>, vector<16x32xf32> -> vector<16x32xf32>
    %89 = vector.extract_strided_slice %88 {offsets = [0, 0], sizes = [8, 32], strides = [1, 1]} : vector<16x32xf32> to vector<8x32xf32>
    %90 = vector.extract_strided_slice %88 {offsets = [8, 0], sizes = [8, 32], strides = [1, 1]} : vector<16x32xf32> to vector<8x32xf32>
    %91 = tpu.concatenate %65, %66, %89, %90 in 1 : vector<8x32xf32>, vector<8x32xf32>, vector<8x32xf32>, vector<8x32xf32> -> vector<8x128xf32>
    %c1 = arith.constant 1 : index
    %c0_34 = arith.constant 0 : index
    %c0_35 = arith.constant 0 : index
    %92 = vector.load %arg6[%c1, %c0_34, %c0_35] : memref<2x16x8xf32, #tpu.memory_space<vmem>>, vector<1x16x8xf32>
    %93 = vector.shape_cast %92 : vector<1x16x8xf32> to vector<16x8xf32>
    %94 = vector.extract_strided_slice %32 {offsets = [8, 0], sizes = [8, 64], strides = [1, 1]} : vector<16x128xbf16> to vector<8x64xbf16>
    %95 = vector.extract_strided_slice %94 {offsets = [0, 0], sizes = [8, 32], strides = [1, 1]} : vector<8x64xbf16> to vector<8x32xbf16>
    %96 = vector.extract_strided_slice %94 {offsets = [0, 32], sizes = [8, 32], strides = [1, 1]} : vector<8x64xbf16> to vector<8x32xbf16>
    %97 = tpu.concatenate %95, %96 in 0 : vector<8x32xbf16>, vector<8x32xbf16> -> vector<16x32xbf16>
    %98 = vector.extract_strided_slice %38 {offsets = [8, 0], sizes = [8, 32], strides = [1, 1]} : vector<16x64xbf16> to vector<8x32xbf16>
    %cst_36 = arith.constant dense<0.000000e+00> : vector<16x8xf32>
    %99 = tpu.matmul %97, %98, %cst_36 {dimension_numbers = #tpu.dot_dimension_numbers<[1], [1], [0], [0], [0, 0, 1, 0], [], []>} : vector<16x32xbf16>, vector<8x32xbf16>, vector<16x8xf32> -> vector<16x8xf32>
    %cst_37 = arith.constant 0.176776692 : f32
    %100 = vector.broadcast %cst_37 : f32 to vector<16x8xf32>
    %101 = arith.mulf %99, %100 : vector<16x8xf32>
    %102 = arith.addf %101, %93 : vector<16x8xf32>
    %cst_38 = arith.constant dense<0xFF800000> : vector<16xf32>
    %103 = vector.multi_reduction <maximumf>, %102, %cst_38 [1] : vector<16x8xf32> to vector<16xf32>
    %104 = vector.shape_cast %103 : vector<16xf32> to vector<16x1xf32>
    %105 = vector.broadcast %104 : vector<16x1xf32> to vector<16x8xf32>
    %106 = arith.subf %102, %105 : vector<16x8xf32>
    %107 = math.exp %106 : vector<16x8xf32>
    %cst_39 = arith.constant dense<0.000000e+00> : vector<16xf32>
    %108 = vector.multi_reduction <add>, %107, %cst_39 [1] : vector<16x8xf32> to vector<16xf32>
    %109 = vector.shape_cast %108 : vector<16xf32> to vector<16x1xf32>
    %110 = tpu.reciprocal %109 {approx = true} : vector<16x1xf32> -> vector<16x1xf32>
    %111 = vector.broadcast %110 : vector<16x1xf32> to vector<16x8xf32>
    %112 = arith.mulf %107, %111 : vector<16x8xf32>
    %113 = vector.extract_strided_slice %40 {offsets = [8, 0], sizes = [8, 32], strides = [1, 1]} : vector<16x64xbf16> to vector<8x32xbf16>
    %114 = arith.truncf %112 : vector<16x8xf32> to vector<16x8xbf16>
    %cst_40 = arith.constant dense<0.000000e+00> : vector<16x32xf32>
    %115 = tpu.matmul %114, %113, %cst_40 {dimension_numbers = #tpu.dot_dimension_numbers<[1], [0], [0], [1], [0, 0, 1, 1], [], []>} : vector<16x8xbf16>, vector<8x32xbf16>, vector<16x32xf32> -> vector<16x32xf32>
    %116 = vector.extract_strided_slice %115 {offsets = [0, 0], sizes = [8, 32], strides = [1, 1]} : vector<16x32xf32> to vector<8x32xf32>
    %117 = vector.extract_strided_slice %115 {offsets = [8, 0], sizes = [8, 32], strides = [1, 1]} : vector<16x32xf32> to vector<8x32xf32>
    %118 = vector.extract_strided_slice %32 {offsets = [8, 64], sizes = [8, 64], strides = [1, 1]} : vector<16x128xbf16> to vector<8x64xbf16>
    %119 = vector.extract_strided_slice %118 {offsets = [0, 0], sizes = [8, 32], strides = [1, 1]} : vector<8x64xbf16> to vector<8x32xbf16>
    %120 = vector.extract_strided_slice %118 {offsets = [0, 32], sizes = [8, 32], strides = [1, 1]} : vector<8x64xbf16> to vector<8x32xbf16>
    %121 = tpu.concatenate %119, %120 in 0 : vector<8x32xbf16>, vector<8x32xbf16> -> vector<16x32xbf16>
    %122 = vector.extract_strided_slice %38 {offsets = [8, 32], sizes = [8, 32], strides = [1, 1]} : vector<16x64xbf16> to vector<8x32xbf16>
    %cst_41 = arith.constant dense<0.000000e+00> : vector<16x8xf32>
    %123 = tpu.matmul %121, %122, %cst_41 {dimension_numbers = #tpu.dot_dimension_numbers<[1], [1], [0], [0], [0, 0, 1, 0], [], []>} : vector<16x32xbf16>, vector<8x32xbf16>, vector<16x8xf32> -> vector<16x8xf32>
    %cst_42 = arith.constant 0.176776692 : f32
    %124 = vector.broadcast %cst_42 : f32 to vector<16x8xf32>
    %125 = arith.mulf %123, %124 : vector<16x8xf32>
    %126 = arith.addf %125, %93 : vector<16x8xf32>
    %cst_43 = arith.constant dense<0xFF800000> : vector<16xf32>
    %127 = vector.multi_reduction <maximumf>, %126, %cst_43 [1] : vector<16x8xf32> to vector<16xf32>
    %128 = vector.shape_cast %127 : vector<16xf32> to vector<16x1xf32>
    %129 = vector.broadcast %128 : vector<16x1xf32> to vector<16x8xf32>
    %130 = arith.subf %126, %129 : vector<16x8xf32>
    %131 = math.exp %130 : vector<16x8xf32>
    %cst_44 = arith.constant dense<0.000000e+00> : vector<16xf32>
    %132 = vector.multi_reduction <add>, %131, %cst_44 [1] : vector<16x8xf32> to vector<16xf32>
    %133 = vector.shape_cast %132 : vector<16xf32> to vector<16x1xf32>
    %134 = tpu.reciprocal %133 {approx = true} : vector<16x1xf32> -> vector<16x1xf32>
    %135 = vector.broadcast %134 : vector<16x1xf32> to vector<16x8xf32>
    %136 = arith.mulf %131, %135 : vector<16x8xf32>
    %137 = vector.extract_strided_slice %40 {offsets = [8, 32], sizes = [8, 32], strides = [1, 1]} : vector<16x64xbf16> to vector<8x32xbf16>
    %138 = arith.truncf %136 : vector<16x8xf32> to vector<16x8xbf16>
    %cst_45 = arith.constant dense<0.000000e+00> : vector<16x32xf32>
    %139 = tpu.matmul %138, %137, %cst_45 {dimension_numbers = #tpu.dot_dimension_numbers<[1], [0], [0], [1], [0, 0, 1, 1], [], []>} : vector<16x8xbf16>, vector<8x32xbf16>, vector<16x32xf32> -> vector<16x32xf32>
    %140 = vector.extract_strided_slice %139 {offsets = [0, 0], sizes = [8, 32], strides = [1, 1]} : vector<16x32xf32> to vector<8x32xf32>
    %141 = vector.extract_strided_slice %139 {offsets = [8, 0], sizes = [8, 32], strides = [1, 1]} : vector<16x32xf32> to vector<8x32xf32>
    %142 = tpu.concatenate %116, %117, %140, %141 in 1 : vector<8x32xf32>, vector<8x32xf32>, vector<8x32xf32>, vector<8x32xf32> -> vector<8x128xf32>
    %143 = tpu.concatenate %91, %142 in 0 : vector<8x128xf32>, vector<8x128xf32> -> vector<16x128xf32>
    %144 = arith.truncf %143 : vector<16x128xf32> to vector<16x128xbf16>
    %c0_46 = arith.constant 0 : index
    %c0_47 = arith.constant 0 : index
    %c0_48 = arith.constant 0 : index
    %145 = vector.load %arg10[%c0_46, %c0_47, %c0_48] : memref<2x128x128xbf16, #tpu.memory_space<vmem>>, vector<1x128x128xbf16>
    %146 = vector.shape_cast %145 : vector<1x128x128xbf16> to vector<128x128xbf16>
    %cst_49 = arith.constant dense<0.000000e+00> : vector<16x128xf32>
    %147 = tpu.matmul %144, %146, %cst_49 {dimension_numbers = #tpu.dot_dimension_numbers<[1], [0], [0], [1], [0, 0, 1, 1], [], []>} : vector<16x128xbf16>, vector<128x128xbf16>, vector<16x128xf32> -> vector<16x128xf32>
    %148 = arith.addf %4, %147 : vector<16x128xf32>
    %c0_50 = arith.constant 0 : index
    %c0_51 = arith.constant 0 : index
    %c0_52 = arith.constant 0 : index
    %149 = vector.load %arg11[%c0_50, %c0_51, %c0_52] : memref<2x1x128xf32, #tpu.memory_space<vmem>>, vector<1x1x128xf32>
    %150 = vector.shape_cast %149 : vector<1x1x128xf32> to vector<1x128xf32>
    %151 = arith.mulf %148, %148 : vector<16x128xf32>
    %cst_53 = arith.constant dense<0.000000e+00> : vector<16xf32>
    %152 = vector.multi_reduction <add>, %151, %cst_53 [1] : vector<16x128xf32> to vector<16xf32>
    %153 = vector.shape_cast %152 : vector<16xf32> to vector<16x1xf32>
    %cst_54 = arith.constant 1.280000e+02 : f32
    %154 = vector.broadcast %cst_54 : f32 to vector<16x1xf32>
    %155 = arith.divf %153, %154 : vector<16x1xf32>
    %cst_55 = arith.constant 9.99999997E-7 : f32
    %156 = vector.broadcast %cst_55 : f32 to vector<16x1xf32>
    %157 = arith.addf %155, %156 : vector<16x1xf32>
    %158 = math.rsqrt %157 : vector<16x1xf32>
    %159 = vector.broadcast %158 : vector<16x1xf32> to vector<16x128xf32>
    %160 = arith.mulf %148, %159 : vector<16x128xf32>
    %161 = vector.broadcast %150 : vector<1x128xf32> to vector<16x128xf32>
    %162 = arith.mulf %160, %161 : vector<16x128xf32>
    %163 = arith.truncf %162 : vector<16x128xf32> to vector<16x128xbf16>
    %c0_56 = arith.constant 0 : index
    %c0_57 = arith.constant 0 : index
    %c0_58 = arith.constant 0 : index
    %164 = vector.load %arg12[%c0_56, %c0_57, %c0_58] : memref<2x128x512xbf16, #tpu.memory_space<vmem>>, vector<1x128x512xbf16>
    %165 = vector.shape_cast %164 : vector<1x128x512xbf16> to vector<128x512xbf16>
    %cst_59 = arith.constant dense<0.000000e+00> : vector<16x512xf32>
    %166 = tpu.matmul %163, %165, %cst_59 {dimension_numbers = #tpu.dot_dimension_numbers<[1], [0], [0], [1], [0, 0, 1, 1], [], []>} : vector<16x128xbf16>, vector<128x512xbf16>, vector<16x512xf32> -> vector<16x512xf32>
    %167 = vector.extract_strided_slice %166 {offsets = [0, 0], sizes = [16, 256], strides = [1, 1]} : vector<16x512xf32> to vector<16x256xf32>
    %168 = vector.extract_strided_slice %166 {offsets = [0, 256], sizes = [16, 256], strides = [1, 1]} : vector<16x512xf32> to vector<16x256xf32>
    %169 = arith.negf %167 : vector<16x256xf32>
    %170 = math.exp %169 : vector<16x256xf32>
    %cst_60 = arith.constant 1.000000e+00 : f32
    %171 = vector.broadcast %cst_60 : f32 to vector<16x256xf32>
    %172 = arith.addf %171, %170 : vector<16x256xf32>
    %173 = arith.divf %171, %172 : vector<16x256xf32>
    %174 = arith.mulf %167, %173 : vector<16x256xf32>
    %175 = arith.mulf %174, %168 : vector<16x256xf32>
    %176 = arith.truncf %175 : vector<16x256xf32> to vector<16x256xbf16>
    %c0_61 = arith.constant 0 : index
    %c0_62 = arith.constant 0 : index
    %c0_63 = arith.constant 0 : index
    %177 = vector.load %arg13[%c0_61, %c0_62, %c0_63] : memref<2x256x128xbf16, #tpu.memory_space<vmem>>, vector<1x256x128xbf16>
    %178 = vector.shape_cast %177 : vector<1x256x128xbf16> to vector<256x128xbf16>
    %cst_64 = arith.constant dense<0.000000e+00> : vector<16x128xf32>
    %179 = tpu.matmul %176, %178, %cst_64 {dimension_numbers = #tpu.dot_dimension_numbers<[1], [0], [0], [1], [0, 0, 1, 1], [], []>} : vector<16x256xbf16>, vector<256x128xbf16>, vector<16x128xf32> -> vector<16x128xf32>
    %180 = arith.addf %148, %179 : vector<16x128xf32>
    %c1_65 = arith.constant 1 : index
    %c0_66 = arith.constant 0 : index
    %c0_67 = arith.constant 0 : index
    %181 = vector.load %arg7[%c1_65, %c0_66, %c0_67] : memref<2x1x128xf32, #tpu.memory_space<vmem>>, vector<1x1x128xf32>
    %182 = vector.shape_cast %181 : vector<1x1x128xf32> to vector<1x128xf32>
    %183 = arith.mulf %180, %180 : vector<16x128xf32>
    %cst_68 = arith.constant dense<0.000000e+00> : vector<16xf32>
    %184 = vector.multi_reduction <add>, %183, %cst_68 [1] : vector<16x128xf32> to vector<16xf32>
    %185 = vector.shape_cast %184 : vector<16xf32> to vector<16x1xf32>
    %cst_69 = arith.constant 1.280000e+02 : f32
    %186 = vector.broadcast %cst_69 : f32 to vector<16x1xf32>
    %187 = arith.divf %185, %186 : vector<16x1xf32>
    %cst_70 = arith.constant 9.99999997E-7 : f32
    %188 = vector.broadcast %cst_70 : f32 to vector<16x1xf32>
    %189 = arith.addf %187, %188 : vector<16x1xf32>
    %190 = math.rsqrt %189 : vector<16x1xf32>
    %191 = vector.broadcast %190 : vector<16x1xf32> to vector<16x128xf32>
    %192 = arith.mulf %180, %191 : vector<16x128xf32>
    %193 = vector.broadcast %182 : vector<1x128xf32> to vector<16x128xf32>
    %194 = arith.mulf %192, %193 : vector<16x128xf32>
    %195 = arith.truncf %194 : vector<16x128xf32> to vector<16x128xbf16>
    %c1_71 = arith.constant 1 : index
    %c0_72 = arith.constant 0 : index
    %c0_73 = arith.constant 0 : index
    %196 = vector.load %arg8[%c1_71, %c0_72, %c0_73] : memref<2x128x448xbf16, #tpu.memory_space<vmem>>, vector<1x128x448xbf16>
    %197 = vector.shape_cast %196 : vector<1x128x448xbf16> to vector<128x448xbf16>
    %cst_74 = arith.constant dense<0.000000e+00> : vector<16x448xf32>
    %198 = tpu.matmul %195, %197, %cst_74 {dimension_numbers = #tpu.dot_dimension_numbers<[1], [0], [0], [1], [0, 0, 1, 1], [], []>} : vector<16x128xbf16>, vector<128x448xbf16>, vector<16x448xf32> -> vector<16x448xf32>
    %c1_75 = arith.constant 1 : index
    %c0_76 = arith.constant 0 : index
    %c0_77 = arith.constant 0 : index
    %199 = vector.load %arg9[%c1_75, %c0_76, %c0_77] : memref<2x1x448xf32, #tpu.memory_space<vmem>>, vector<1x1x448xf32>
    %200 = vector.shape_cast %199 : vector<1x1x448xf32> to vector<1x448xf32>
    %201 = vector.broadcast %200 : vector<1x448xf32> to vector<16x448xf32>
    %202 = arith.addf %198, %201 : vector<16x448xf32>
    %203 = vector.extract_strided_slice %202 {offsets = [0, 0], sizes = [16, 128], strides = [1, 1]} : vector<16x448xf32> to vector<16x128xf32>
    %204 = arith.mulf %203, %0 : vector<16x128xf32>
    %205 = vector.extract_strided_slice %202 {offsets = [0, 256], sizes = [16, 128], strides = [1, 1]} : vector<16x448xf32> to vector<16x128xf32>
    %206 = arith.mulf %205, %1 : vector<16x128xf32>
    %207 = arith.addf %204, %206 : vector<16x128xf32>
    %208 = arith.truncf %207 : vector<16x128xf32> to vector<16x128xbf16>
    %209 = vector.extract_strided_slice %202 {offsets = [0, 128], sizes = [16, 64], strides = [1, 1]} : vector<16x448xf32> to vector<16x64xf32>
    %210 = arith.mulf %209, %2 : vector<16x64xf32>
    %211 = vector.extract_strided_slice %202 {offsets = [0, 384], sizes = [16, 64], strides = [1, 1]} : vector<16x448xf32> to vector<16x64xf32>
    %212 = arith.mulf %211, %3 : vector<16x64xf32>
    %213 = arith.addf %210, %212 : vector<16x64xf32>
    %214 = arith.truncf %213 : vector<16x64xf32> to vector<16x64xbf16>
    %215 = vector.extract_strided_slice %202 {offsets = [0, 192], sizes = [16, 64], strides = [1, 1]} : vector<16x448xf32> to vector<16x64xf32>
    %216 = arith.truncf %215 : vector<16x64xf32> to vector<16x64xbf16>
    %c0_78 = arith.constant 0 : index
    %c0_79 = arith.constant 0 : index
    %c0_80 = arith.constant 0 : index
    %217 = vector.load %arg6[%c0_78, %c0_79, %c0_80] : memref<2x16x8xf32, #tpu.memory_space<vmem>>, vector<1x16x8xf32>
    %218 = vector.shape_cast %217 : vector<1x16x8xf32> to vector<16x8xf32>
    %219 = vector.extract_strided_slice %208 {offsets = [0, 0], sizes = [8, 64], strides = [1, 1]} : vector<16x128xbf16> to vector<8x64xbf16>
    %220 = vector.extract_strided_slice %219 {offsets = [0, 0], sizes = [8, 32], strides = [1, 1]} : vector<8x64xbf16> to vector<8x32xbf16>
    %221 = vector.extract_strided_slice %219 {offsets = [0, 32], sizes = [8, 32], strides = [1, 1]} : vector<8x64xbf16> to vector<8x32xbf16>
    %222 = tpu.concatenate %220, %221 in 0 : vector<8x32xbf16>, vector<8x32xbf16> -> vector<16x32xbf16>
    %223 = vector.extract_strided_slice %214 {offsets = [0, 0], sizes = [8, 32], strides = [1, 1]} : vector<16x64xbf16> to vector<8x32xbf16>
    %cst_81 = arith.constant dense<0.000000e+00> : vector<16x8xf32>
    %224 = tpu.matmul %222, %223, %cst_81 {dimension_numbers = #tpu.dot_dimension_numbers<[1], [1], [0], [0], [0, 0, 1, 0], [], []>} : vector<16x32xbf16>, vector<8x32xbf16>, vector<16x8xf32> -> vector<16x8xf32>
    %cst_82 = arith.constant 0.176776692 : f32
    %225 = vector.broadcast %cst_82 : f32 to vector<16x8xf32>
    %226 = arith.mulf %224, %225 : vector<16x8xf32>
    %227 = arith.addf %226, %218 : vector<16x8xf32>
    %cst_83 = arith.constant dense<0xFF800000> : vector<16xf32>
    %228 = vector.multi_reduction <maximumf>, %227, %cst_83 [1] : vector<16x8xf32> to vector<16xf32>
    %229 = vector.shape_cast %228 : vector<16xf32> to vector<16x1xf32>
    %230 = vector.broadcast %229 : vector<16x1xf32> to vector<16x8xf32>
    %231 = arith.subf %227, %230 : vector<16x8xf32>
    %232 = math.exp %231 : vector<16x8xf32>
    %cst_84 = arith.constant dense<0.000000e+00> : vector<16xf32>
    %233 = vector.multi_reduction <add>, %232, %cst_84 [1] : vector<16x8xf32> to vector<16xf32>
    %234 = vector.shape_cast %233 : vector<16xf32> to vector<16x1xf32>
    %235 = tpu.reciprocal %234 {approx = true} : vector<16x1xf32> -> vector<16x1xf32>
    %236 = vector.broadcast %235 : vector<16x1xf32> to vector<16x8xf32>
    %237 = arith.mulf %232, %236 : vector<16x8xf32>
    %238 = vector.extract_strided_slice %216 {offsets = [0, 0], sizes = [8, 32], strides = [1, 1]} : vector<16x64xbf16> to vector<8x32xbf16>
    %239 = arith.truncf %237 : vector<16x8xf32> to vector<16x8xbf16>
    %cst_85 = arith.constant dense<0.000000e+00> : vector<16x32xf32>
    %240 = tpu.matmul %239, %238, %cst_85 {dimension_numbers = #tpu.dot_dimension_numbers<[1], [0], [0], [1], [0, 0, 1, 1], [], []>} : vector<16x8xbf16>, vector<8x32xbf16>, vector<16x32xf32> -> vector<16x32xf32>
    %241 = vector.extract_strided_slice %240 {offsets = [0, 0], sizes = [8, 32], strides = [1, 1]} : vector<16x32xf32> to vector<8x32xf32>
    %242 = vector.extract_strided_slice %240 {offsets = [8, 0], sizes = [8, 32], strides = [1, 1]} : vector<16x32xf32> to vector<8x32xf32>
    %243 = vector.extract_strided_slice %208 {offsets = [0, 64], sizes = [8, 64], strides = [1, 1]} : vector<16x128xbf16> to vector<8x64xbf16>
    %244 = vector.extract_strided_slice %243 {offsets = [0, 0], sizes = [8, 32], strides = [1, 1]} : vector<8x64xbf16> to vector<8x32xbf16>
    %245 = vector.extract_strided_slice %243 {offsets = [0, 32], sizes = [8, 32], strides = [1, 1]} : vector<8x64xbf16> to vector<8x32xbf16>
    %246 = tpu.concatenate %244, %245 in 0 : vector<8x32xbf16>, vector<8x32xbf16> -> vector<16x32xbf16>
    %247 = vector.extract_strided_slice %214 {offsets = [0, 32], sizes = [8, 32], strides = [1, 1]} : vector<16x64xbf16> to vector<8x32xbf16>
    %cst_86 = arith.constant dense<0.000000e+00> : vector<16x8xf32>
    %248 = tpu.matmul %246, %247, %cst_86 {dimension_numbers = #tpu.dot_dimension_numbers<[1], [1], [0], [0], [0, 0, 1, 0], [], []>} : vector<16x32xbf16>, vector<8x32xbf16>, vector<16x8xf32> -> vector<16x8xf32>
    %cst_87 = arith.constant 0.176776692 : f32
    %249 = vector.broadcast %cst_87 : f32 to vector<16x8xf32>
    %250 = arith.mulf %248, %249 : vector<16x8xf32>
    %251 = arith.addf %250, %218 : vector<16x8xf32>
    %cst_88 = arith.constant dense<0xFF800000> : vector<16xf32>
    %252 = vector.multi_reduction <maximumf>, %251, %cst_88 [1] : vector<16x8xf32> to vector<16xf32>
    %253 = vector.shape_cast %252 : vector<16xf32> to vector<16x1xf32>
    %254 = vector.broadcast %253 : vector<16x1xf32> to vector<16x8xf32>
    %255 = arith.subf %251, %254 : vector<16x8xf32>
    %256 = math.exp %255 : vector<16x8xf32>
    %cst_89 = arith.constant dense<0.000000e+00> : vector<16xf32>
    %257 = vector.multi_reduction <add>, %256, %cst_89 [1] : vector<16x8xf32> to vector<16xf32>
    %258 = vector.shape_cast %257 : vector<16xf32> to vector<16x1xf32>
    %259 = tpu.reciprocal %258 {approx = true} : vector<16x1xf32> -> vector<16x1xf32>
    %260 = vector.broadcast %259 : vector<16x1xf32> to vector<16x8xf32>
    %261 = arith.mulf %256, %260 : vector<16x8xf32>
    %262 = vector.extract_strided_slice %216 {offsets = [0, 32], sizes = [8, 32], strides = [1, 1]} : vector<16x64xbf16> to vector<8x32xbf16>
    %263 = arith.truncf %261 : vector<16x8xf32> to vector<16x8xbf16>
    %cst_90 = arith.constant dense<0.000000e+00> : vector<16x32xf32>
    %264 = tpu.matmul %263, %262, %cst_90 {dimension_numbers = #tpu.dot_dimension_numbers<[1], [0], [0], [1], [0, 0, 1, 1], [], []>} : vector<16x8xbf16>, vector<8x32xbf16>, vector<16x32xf32> -> vector<16x32xf32>
    %265 = vector.extract_strided_slice %264 {offsets = [0, 0], sizes = [8, 32], strides = [1, 1]} : vector<16x32xf32> to vector<8x32xf32>
    %266 = vector.extract_strided_slice %264 {offsets = [8, 0], sizes = [8, 32], strides = [1, 1]} : vector<16x32xf32> to vector<8x32xf32>
    %267 = tpu.concatenate %241, %242, %265, %266 in 1 : vector<8x32xf32>, vector<8x32xf32>, vector<8x32xf32>, vector<8x32xf32> -> vector<8x128xf32>
    %c1_91 = arith.constant 1 : index
    %c0_92 = arith.constant 0 : index
    %c0_93 = arith.constant 0 : index
    %268 = vector.load %arg6[%c1_91, %c0_92, %c0_93] : memref<2x16x8xf32, #tpu.memory_space<vmem>>, vector<1x16x8xf32>
    %269 = vector.shape_cast %268 : vector<1x16x8xf32> to vector<16x8xf32>
    %270 = vector.extract_strided_slice %208 {offsets = [8, 0], sizes = [8, 64], strides = [1, 1]} : vector<16x128xbf16> to vector<8x64xbf16>
    %271 = vector.extract_strided_slice %270 {offsets = [0, 0], sizes = [8, 32], strides = [1, 1]} : vector<8x64xbf16> to vector<8x32xbf16>
    %272 = vector.extract_strided_slice %270 {offsets = [0, 32], sizes = [8, 32], strides = [1, 1]} : vector<8x64xbf16> to vector<8x32xbf16>
    %273 = tpu.concatenate %271, %272 in 0 : vector<8x32xbf16>, vector<8x32xbf16> -> vector<16x32xbf16>
    %274 = vector.extract_strided_slice %214 {offsets = [8, 0], sizes = [8, 32], strides = [1, 1]} : vector<16x64xbf16> to vector<8x32xbf16>
    %cst_94 = arith.constant dense<0.000000e+00> : vector<16x8xf32>
    %275 = tpu.matmul %273, %274, %cst_94 {dimension_numbers = #tpu.dot_dimension_numbers<[1], [1], [0], [0], [0, 0, 1, 0], [], []>} : vector<16x32xbf16>, vector<8x32xbf16>, vector<16x8xf32> -> vector<16x8xf32>
    %cst_95 = arith.constant 0.176776692 : f32
    %276 = vector.broadcast %cst_95 : f32 to vector<16x8xf32>
    %277 = arith.mulf %275, %276 : vector<16x8xf32>
    %278 = arith.addf %277, %269 : vector<16x8xf32>
    %cst_96 = arith.constant dense<0xFF800000> : vector<16xf32>
    %279 = vector.multi_reduction <maximumf>, %278, %cst_96 [1] : vector<16x8xf32> to vector<16xf32>
    %280 = vector.shape_cast %279 : vector<16xf32> to vector<16x1xf32>
    %281 = vector.broadcast %280 : vector<16x1xf32> to vector<16x8xf32>
    %282 = arith.subf %278, %281 : vector<16x8xf32>
    %283 = math.exp %282 : vector<16x8xf32>
    %cst_97 = arith.constant dense<0.000000e+00> : vector<16xf32>
    %284 = vector.multi_reduction <add>, %283, %cst_97 [1] : vector<16x8xf32> to vector<16xf32>
    %285 = vector.shape_cast %284 : vector<16xf32> to vector<16x1xf32>
    %286 = tpu.reciprocal %285 {approx = true} : vector<16x1xf32> -> vector<16x1xf32>
    %287 = vector.broadcast %286 : vector<16x1xf32> to vector<16x8xf32>
    %288 = arith.mulf %283, %287 : vector<16x8xf32>
    %289 = vector.extract_strided_slice %216 {offsets = [8, 0], sizes = [8, 32], strides = [1, 1]} : vector<16x64xbf16> to vector<8x32xbf16>
    %290 = arith.truncf %288 : vector<16x8xf32> to vector<16x8xbf16>
    %cst_98 = arith.constant dense<0.000000e+00> : vector<16x32xf32>
    %291 = tpu.matmul %290, %289, %cst_98 {dimension_numbers = #tpu.dot_dimension_numbers<[1], [0], [0], [1], [0, 0, 1, 1], [], []>} : vector<16x8xbf16>, vector<8x32xbf16>, vector<16x32xf32> -> vector<16x32xf32>
    %292 = vector.extract_strided_slice %291 {offsets = [0, 0], sizes = [8, 32], strides = [1, 1]} : vector<16x32xf32> to vector<8x32xf32>
    %293 = vector.extract_strided_slice %291 {offsets = [8, 0], sizes = [8, 32], strides = [1, 1]} : vector<16x32xf32> to vector<8x32xf32>
    %294 = vector.extract_strided_slice %208 {offsets = [8, 64], sizes = [8, 64], strides = [1, 1]} : vector<16x128xbf16> to vector<8x64xbf16>
    %295 = vector.extract_strided_slice %294 {offsets = [0, 0], sizes = [8, 32], strides = [1, 1]} : vector<8x64xbf16> to vector<8x32xbf16>
    %296 = vector.extract_strided_slice %294 {offsets = [0, 32], sizes = [8, 32], strides = [1, 1]} : vector<8x64xbf16> to vector<8x32xbf16>
    %297 = tpu.concatenate %295, %296 in 0 : vector<8x32xbf16>, vector<8x32xbf16> -> vector<16x32xbf16>
    %298 = vector.extract_strided_slice %214 {offsets = [8, 32], sizes = [8, 32], strides = [1, 1]} : vector<16x64xbf16> to vector<8x32xbf16>
    %cst_99 = arith.constant dense<0.000000e+00> : vector<16x8xf32>
    %299 = tpu.matmul %297, %298, %cst_99 {dimension_numbers = #tpu.dot_dimension_numbers<[1], [1], [0], [0], [0, 0, 1, 0], [], []>} : vector<16x32xbf16>, vector<8x32xbf16>, vector<16x8xf32> -> vector<16x8xf32>
    %cst_100 = arith.constant 0.176776692 : f32
    %300 = vector.broadcast %cst_100 : f32 to vector<16x8xf32>
    %301 = arith.mulf %299, %300 : vector<16x8xf32>
    %302 = arith.addf %301, %269 : vector<16x8xf32>
    %cst_101 = arith.constant dense<0xFF800000> : vector<16xf32>
    %303 = vector.multi_reduction <maximumf>, %302, %cst_101 [1] : vector<16x8xf32> to vector<16xf32>
    %304 = vector.shape_cast %303 : vector<16xf32> to vector<16x1xf32>
    %305 = vector.broadcast %304 : vector<16x1xf32> to vector<16x8xf32>
    %306 = arith.subf %302, %305 : vector<16x8xf32>
    %307 = math.exp %306 : vector<16x8xf32>
    %cst_102 = arith.constant dense<0.000000e+00> : vector<16xf32>
    %308 = vector.multi_reduction <add>, %307, %cst_102 [1] : vector<16x8xf32> to vector<16xf32>
    %309 = vector.shape_cast %308 : vector<16xf32> to vector<16x1xf32>
    %310 = tpu.reciprocal %309 {approx = true} : vector<16x1xf32> -> vector<16x1xf32>
    %311 = vector.broadcast %310 : vector<16x1xf32> to vector<16x8xf32>
    %312 = arith.mulf %307, %311 : vector<16x8xf32>
    %313 = vector.extract_strided_slice %216 {offsets = [8, 32], sizes = [8, 32], strides = [1, 1]} : vector<16x64xbf16> to vector<8x32xbf16>
    %314 = arith.truncf %312 : vector<16x8xf32> to vector<16x8xbf16>
    %cst_103 = arith.constant dense<0.000000e+00> : vector<16x32xf32>
    %315 = tpu.matmul %314, %313, %cst_103 {dimension_numbers = #tpu.dot_dimension_numbers<[1], [0], [0], [1], [0, 0, 1, 1], [], []>} : vector<16x8xbf16>, vector<8x32xbf16>, vector<16x32xf32> -> vector<16x32xf32>
    %316 = vector.extract_strided_slice %315 {offsets = [0, 0], sizes = [8, 32], strides = [1, 1]} : vector<16x32xf32> to vector<8x32xf32>
    %317 = vector.extract_strided_slice %315 {offsets = [8, 0], sizes = [8, 32], strides = [1, 1]} : vector<16x32xf32> to vector<8x32xf32>
    %318 = tpu.concatenate %292, %293, %316, %317 in 1 : vector<8x32xf32>, vector<8x32xf32>, vector<8x32xf32>, vector<8x32xf32> -> vector<8x128xf32>
    %319 = tpu.concatenate %267, %318 in 0 : vector<8x128xf32>, vector<8x128xf32> -> vector<16x128xf32>
    %320 = arith.truncf %319 : vector<16x128xf32> to vector<16x128xbf16>
    %c1_104 = arith.constant 1 : index
    %c0_105 = arith.constant 0 : index
    %c0_106 = arith.constant 0 : index
    %321 = vector.load %arg10[%c1_104, %c0_105, %c0_106] : memref<2x128x128xbf16, #tpu.memory_space<vmem>>, vector<1x128x128xbf16>
    %322 = vector.shape_cast %321 : vector<1x128x128xbf16> to vector<128x128xbf16>
    %cst_107 = arith.constant dense<0.000000e+00> : vector<16x128xf32>
    %323 = tpu.matmul %320, %322, %cst_107 {dimension_numbers = #tpu.dot_dimension_numbers<[1], [0], [0], [1], [0, 0, 1, 1], [], []>} : vector<16x128xbf16>, vector<128x128xbf16>, vector<16x128xf32> -> vector<16x128xf32>
    %324 = arith.addf %180, %323 : vector<16x128xf32>
    %c1_108 = arith.constant 1 : index
    %c0_109 = arith.constant 0 : index
    %c0_110 = arith.constant 0 : index
    %325 = vector.load %arg11[%c1_108, %c0_109, %c0_110] : memref<2x1x128xf32, #tpu.memory_space<vmem>>, vector<1x1x128xf32>
    %326 = vector.shape_cast %325 : vector<1x1x128xf32> to vector<1x128xf32>
    %327 = arith.mulf %324, %324 : vector<16x128xf32>
    %cst_111 = arith.constant dense<0.000000e+00> : vector<16xf32>
    %328 = vector.multi_reduction <add>, %327, %cst_111 [1] : vector<16x128xf32> to vector<16xf32>
    %329 = vector.shape_cast %328 : vector<16xf32> to vector<16x1xf32>
    %cst_112 = arith.constant 1.280000e+02 : f32
    %330 = vector.broadcast %cst_112 : f32 to vector<16x1xf32>
    %331 = arith.divf %329, %330 : vector<16x1xf32>
    %cst_113 = arith.constant 9.99999997E-7 : f32
    %332 = vector.broadcast %cst_113 : f32 to vector<16x1xf32>
    %333 = arith.addf %331, %332 : vector<16x1xf32>
    %334 = math.rsqrt %333 : vector<16x1xf32>
    %335 = vector.broadcast %334 : vector<16x1xf32> to vector<16x128xf32>
    %336 = arith.mulf %324, %335 : vector<16x128xf32>
    %337 = vector.broadcast %326 : vector<1x128xf32> to vector<16x128xf32>
    %338 = arith.mulf %336, %337 : vector<16x128xf32>
    %339 = arith.truncf %338 : vector<16x128xf32> to vector<16x128xbf16>
    %c1_114 = arith.constant 1 : index
    %c0_115 = arith.constant 0 : index
    %c0_116 = arith.constant 0 : index
    %340 = vector.load %arg12[%c1_114, %c0_115, %c0_116] : memref<2x128x512xbf16, #tpu.memory_space<vmem>>, vector<1x128x512xbf16>
    %341 = vector.shape_cast %340 : vector<1x128x512xbf16> to vector<128x512xbf16>
    %cst_117 = arith.constant dense<0.000000e+00> : vector<16x512xf32>
    %342 = tpu.matmul %339, %341, %cst_117 {dimension_numbers = #tpu.dot_dimension_numbers<[1], [0], [0], [1], [0, 0, 1, 1], [], []>} : vector<16x128xbf16>, vector<128x512xbf16>, vector<16x512xf32> -> vector<16x512xf32>
    %343 = vector.extract_strided_slice %342 {offsets = [0, 0], sizes = [16, 256], strides = [1, 1]} : vector<16x512xf32> to vector<16x256xf32>
    %344 = vector.extract_strided_slice %342 {offsets = [0, 256], sizes = [16, 256], strides = [1, 1]} : vector<16x512xf32> to vector<16x256xf32>
    %345 = arith.negf %343 : vector<16x256xf32>
    %346 = math.exp %345 : vector<16x256xf32>
    %cst_118 = arith.constant 1.000000e+00 : f32
    %347 = vector.broadcast %cst_118 : f32 to vector<16x256xf32>
    %348 = arith.addf %347, %346 : vector<16x256xf32>
    %349 = arith.divf %347, %348 : vector<16x256xf32>
    %350 = arith.mulf %343, %349 : vector<16x256xf32>
    %351 = arith.mulf %350, %344 : vector<16x256xf32>
    %352 = arith.truncf %351 : vector<16x256xf32> to vector<16x256xbf16>
    %c1_119 = arith.constant 1 : index
    %c0_120 = arith.constant 0 : index
    %c0_121 = arith.constant 0 : index
    %353 = vector.load %arg13[%c1_119, %c0_120, %c0_121] : memref<2x256x128xbf16, #tpu.memory_space<vmem>>, vector<1x256x128xbf16>
    %354 = vector.shape_cast %353 : vector<1x256x128xbf16> to vector<256x128xbf16>
    %cst_122 = arith.constant dense<0.000000e+00> : vector<16x128xf32>
    %355 = tpu.matmul %352, %354, %cst_122 {dimension_numbers = #tpu.dot_dimension_numbers<[1], [0], [0], [1], [0, 0, 1, 1], [], []>} : vector<16x256xbf16>, vector<256x128xbf16>, vector<16x128xf32> -> vector<16x128xf32>
    %356 = arith.addf %324, %355 : vector<16x128xf32>
    %c0_123 = arith.constant 0 : index
    %c0_124 = arith.constant 0 : index
    %357 = vector.load %arg14[%c0_123, %c0_124] : memref<16x128xf32, #tpu.memory_space<vmem>>, vector<16x128xf32>
    tpu.vector_store %arg14[%c0_123, %c0_124], %356 {strides = array<i32>} : memref<16x128xf32, #tpu.memory_space<vmem>>, vector<16x128xf32>,
    return
  }
  func.func @transform_0(%arg0: i32) -> (i32, i32) {
    %c0_i32 = arith.constant 0 : i32
    %c0_i32_0 = arith.constant 0 : i32
    return %arg0, %c0_i32 : i32, i32
  }
  func.func @transform_1(%arg0: i32) -> (i32, i32) {
    %c0_i32 = arith.constant 0 : i32
    %c0_i32_0 = arith.constant 0 : i32
    return %arg0, %c0_i32 : i32, i32
  }
  func.func @transform_2(%arg0: i32) -> (i32, i32) {
    %c0_i32 = arith.constant 0 : i32
    %c0_i32_0 = arith.constant 0 : i32
    return %arg0, %c0_i32 : i32, i32
  }
  func.func @transform_3(%arg0: i32) -> (i32, i32) {
    %c0_i32 = arith.constant 0 : i32
    %c0_i32_0 = arith.constant 0 : i32
    return %arg0, %c0_i32 : i32, i32
  }
  func.func @transform_4(%arg0: i32) -> (i32, i32) {
    %c0_i32 = arith.constant 0 : i32
    %c0_i32_0 = arith.constant 0 : i32
    return %arg0, %c0_i32 : i32, i32
  }
  func.func @transform_5(%arg0: i32) -> (i32, i32, i32) {
    %c0_i32 = arith.constant 0 : i32
    %c0_i32_0 = arith.constant 0 : i32
    %c0_i32_1 = arith.constant 0 : i32
    return %arg0, %c0_i32, %c0_i32_0 : i32, i32, i32
  }
  func.func @transform_6(%arg0: i32) -> (i32, i32, i32) {
    %c0_i32 = arith.constant 0 : i32
    %c0_i32_0 = arith.constant 0 : i32
    %c0_i32_1 = arith.constant 0 : i32
    %c0_i32_2 = arith.constant 0 : i32
    return %c0_i32, %c0_i32_0, %c0_i32_1 : i32, i32, i32
  }
  func.func @transform_7(%arg0: i32) -> (i32, i32, i32) {
    %c0_i32 = arith.constant 0 : i32
    %c0_i32_0 = arith.constant 0 : i32
    %c0_i32_1 = arith.constant 0 : i32
    %c0_i32_2 = arith.constant 0 : i32
    return %c0_i32, %c0_i32_0, %c0_i32_1 : i32, i32, i32
  }
  func.func @transform_8(%arg0: i32) -> (i32, i32, i32) {
    %c0_i32 = arith.constant 0 : i32
    %c0_i32_0 = arith.constant 0 : i32
    %c0_i32_1 = arith.constant 0 : i32
    %c0_i32_2 = arith.constant 0 : i32
    return %c0_i32, %c0_i32_0, %c0_i32_1 : i32, i32, i32
  }
  func.func @transform_9(%arg0: i32) -> (i32, i32, i32) {
    %c0_i32 = arith.constant 0 : i32
    %c0_i32_0 = arith.constant 0 : i32
    %c0_i32_1 = arith.constant 0 : i32
    %c0_i32_2 = arith.constant 0 : i32
    return %c0_i32, %c0_i32_0, %c0_i32_1 : i32, i32, i32
  }
  func.func @transform_10(%arg0: i32) -> (i32, i32, i32) {
    %c0_i32 = arith.constant 0 : i32
    %c0_i32_0 = arith.constant 0 : i32
    %c0_i32_1 = arith.constant 0 : i32
    %c0_i32_2 = arith.constant 0 : i32
    return %c0_i32, %c0_i32_0, %c0_i32_1 : i32, i32, i32
  }
  func.func @transform_11(%arg0: i32) -> (i32, i32, i32) {
    %c0_i32 = arith.constant 0 : i32
    %c0_i32_0 = arith.constant 0 : i32
    %c0_i32_1 = arith.constant 0 : i32
    %c0_i32_2 = arith.constant 0 : i32
    return %c0_i32, %c0_i32_0, %c0_i32_1 : i32, i32, i32
  }
  func.func @transform_12(%arg0: i32) -> (i32, i32, i32) {
    %c0_i32 = arith.constant 0 : i32
    %c0_i32_0 = arith.constant 0 : i32
    %c0_i32_1 = arith.constant 0 : i32
    %c0_i32_2 = arith.constant 0 : i32
    return %c0_i32, %c0_i32_0, %c0_i32_1 : i32, i32, i32
  }
  func.func @transform_13(%arg0: i32) -> (i32, i32) {
    %c0_i32 = arith.constant 0 : i32
    %c0_i32_0 = arith.constant 0 : i32
    return %arg0, %c0_i32 : i32, i32
  }
}

</mosaic_0001>

<llo_original>
// kernel: tpu_custom_call.1
$region0: #{tpu_custom_call.1}
  #allocation0 [shape = 'u32[]', space=smem, size = 0x4, offset = 0x4, fixed_abs, tag = 'smem constant byte address 0x4 - core index']
  #allocation1 [shape = 'u32[144,128]{1,0:T(1,128)}', space=vmem, size = 0x12000, scoped, tag = 'internal scratch']
  %s0 = inlined_call_operand.vmem [shape: f32[16,128], index: 0, kind: input, shape index: {}]
  %s1 = inlined_call_operand.vmem [shape: f32[16,128], index: 1, kind: input, shape index: {}]
  %s2 = inlined_call_operand.vmem [shape: f32[16,128], index: 2, kind: input, shape index: {}]
  %s3 = inlined_call_operand.vmem [shape: f32[16,64], index: 3, kind: input, shape index: {}]
  %s4 = inlined_call_operand.vmem [shape: f32[16,64], index: 4, kind: input, shape index: {}]
  %s5 = inlined_call_operand.vmem [shape: f32[2,16,8], index: 5, kind: input, shape index: {}]
  %s6 = inlined_call_operand.vmem [shape: f32[2,1,128], index: 6, kind: input, shape index: {}]
  %s7 = inlined_call_operand.vmem [shape: bf16[2,128,448], index: 7, kind: input, shape index: {}]
  %s8 = inlined_call_operand.vmem [shape: f32[2,1,448], index: 8, kind: input, shape index: {}]
  %s9 = inlined_call_operand.vmem [shape: bf16[2,128,128], index: 9, kind: input, shape index: {}]
  %s10 = inlined_call_operand.vmem [shape: f32[2,1,128], index: 10, kind: input, shape index: {}]
  %s11 = inlined_call_operand.vmem [shape: bf16[2,128,512], index: 11, kind: input, shape index: {}]
  %s12 = inlined_call_operand.vmem [shape: bf16[2,256,128], index: 12, kind: input, shape index: {}]
  %s13 = inlined_call_operand.hbm [shape: f32[16,128], index: 13, kind: output, shape index: {}]
  %s14 = sld [smem:[#allocation0]]
  $region62: #{tpu_custom_call.1} parent=0
    _
  %s16 = ssub.s32 1, %s14
  %s17 = scalar_select 0, %s16, %s14
  $region1: #{tpu_custom_call.1} parent=0
    #allocation2 [shape = 'u8[8192]{0}', space=vmem, size = 0x2000, scoped, tag = 'output window, operand 0, single buffered']
    #allocation3 [shape = 's32[1]{0}', space=sflag, size = 0x4, scoped, tag = 'scoped memory for tpu_custom_call.1']
    %18 = vsyncpa [#allocation3], 0
    // Predicated region
    $region2: #{tpu_custom_call.1} parent=1 // pred_check
      _
    $region3: #{tpu_custom_call.1} parent=1 // pred_check_branch
      %20 = sbr.rel (0) target = $region5
    $region4: #{tpu_custom_call.1} parent=1 // pred_region
      _
    $region5: #{tpu_custom_call.1} parent=1 // pred_fallthru
      _
    // Predicated region
    $region6: #{tpu_custom_call.1} parent=1 // pred_check
      _
    $region7: #{tpu_custom_call.1} parent=1 // pred_check_branch
      %22 = sbr.rel (0) target = $region9
    $region8: #{tpu_custom_call.1} parent=1 // pred_region
      _
    $region9: #{tpu_custom_call.1} parent=1 // pred_fallthru
      _
    // Predicated region
    $region10: #{tpu_custom_call.1} parent=1 // pred_check
      _
    $region11: #{tpu_custom_call.1} parent=1 // pred_check_branch
      %24 = sbr.rel (0) target = $region13
    $region12: #{tpu_custom_call.1} parent=1 // pred_region
      _
    $region13: #{tpu_custom_call.1} parent=1 // pred_fallthru
      _
    // Predicated region
    $region14: #{tpu_custom_call.1} parent=1 // pred_check
      _
    $region15: #{tpu_custom_call.1} parent=1 // pred_check_branch
      %26 = sbr.rel (0) target = $region17
    $region16: #{tpu_custom_call.1} parent=1 // pred_region
      _
    $region17: #{tpu_custom_call.1} parent=1 // pred_fallthru
      _
    // Predicated region
    $region18: #{tpu_custom_call.1} parent=1 // pred_check
      _
    $region19: #{tpu_custom_call.1} parent=1 // pred_check_branch
      %28 = sbr.rel (0) target = $region21
    $region20: #{tpu_custom_call.1} parent=1 // pred_region
      _
    $region21: #{tpu_custom_call.1} parent=1 // pred_fallthru
      _
    // Predicated region
    $region22: #{tpu_custom_call.1} parent=1 // pred_check
      _
    $region23: #{tpu_custom_call.1} parent=1 // pred_check_branch
      %30 = sbr.rel (0) target = $region25
    $region24: #{tpu_custom_call.1} parent=1 // pred_region
      _
    $region25: #{tpu_custom_call.1} parent=1 // pred_fallthru
      _
    // Predicated region
    $region26: #{tpu_custom_call.1} parent=1 // pred_check
      _
    $region27: #{tpu_custom_call.1} parent=1 // pred_check_branch
      %32 = sbr.rel (0) target = $region29
    $region28: #{tpu_custom_call.1} parent=1 // pred_region
      _
    $region29: #{tpu_custom_call.1} parent=1 // pred_fallthru
      _
    // Predicated region
    $region30: #{tpu_custom_call.1} parent=1 // pred_check
      _
    $region31: #{tpu_custom_call.1} parent=1 // pred_check_branch
      %34 = sbr.rel (0) target = $region33
    $region32: #{tpu_custom_call.1} parent=1 // pred_region
      _
    $region33: #{tpu_custom_call.1} parent=1 // pred_fallthru
      _
    // Predicated region
    $region34: #{tpu_custom_call.1} parent=1 // pred_check
      _
    $region35: #{tpu_custom_call.1} parent=1 // pred_check_branch
      %36 = sbr.rel (0) target = $region37
    $region36: #{tpu_custom_call.1} parent=1 // pred_region
      _
    $region37: #{tpu_custom_call.1} parent=1 // pred_fallthru
      _
    // Predicated region
    $region38: #{tpu_custom_call.1} parent=1 // pred_check
      _
    $region39: #{tpu_custom_call.1} parent=1 // pred_check_branch
      %38 = sbr.rel (0) target = $region41
    $region40: #{tpu_custom_call.1} parent=1 // pred_region
      _
    $region41: #{tpu_custom_call.1} parent=1 // pred_fallthru
      _
    // Predicated region
    $region42: #{tpu_custom_call.1} parent=1 // pred_check
      _
    $region43: #{tpu_custom_call.1} parent=1 // pred_check_branch
      %40 = sbr.rel (0) target = $region45
    $region44: #{tpu_custom_call.1} parent=1 // pred_region
      _
    $region45: #{tpu_custom_call.1} parent=1 // pred_fallthru
      _
    // Predicated region
    $region46: #{tpu_custom_call.1} parent=1 // pred_check
      _
    $region47: #{tpu_custom_call.1} parent=1 // pred_check_branch
      %42 = sbr.rel (0) target = $region49
    $region48: #{tpu_custom_call.1} parent=1 // pred_region
      _
    $region49: #{tpu_custom_call.1} parent=1 // pred_fallthru
      _
    // Predicated region
    $region50: #{tpu_custom_call.1} parent=1 // pred_check
      _
    $region51: #{tpu_custom_call.1} parent=1 // pred_check_branch
      %44 = sbr.rel (0) target = $region53
    $region52: #{tpu_custom_call.1} parent=1 // pred_region
      _
    $region53: #{tpu_custom_call.1} parent=1 // pred_fallthru
      _
    %v46 = vld [vmem:[%s1] sm:$0xff]
    %v47 = vld [vmem:[%s1 + $0x8] sm:$0xff]
    %v48 = vld [vmem:[%s2] sm:$0xff]
    %v49 = vld [vmem:[%s2 + $0x8] sm:$0xff]
    %v50 = vld [vmem:[%s3] sm:$0xff]
    %v51 = vld [vmem:[%s3 + $0x8] sm:$0xff]
    %v52 = vld [vmem:[%s4] sm:$0xff]
    %v53 = vld [vmem:[%s4 + $0x8] sm:$0xff]
    %v54 = vld [vmem:[%s0] sm:$0xff]
    %v55 = vld [vmem:[%s0 + $0x8] sm:$0xff]
    %v56 = vld [vmem:[%s6] sm:$0x1]
    %v57 = vmul.f32 %v54, %v54
    %v58 = vmul.f32 %v55, %v55
    %59 = vadd.xlane.f32.xlu0 %v57
    %v60 = vpop.xlane.xlu0 %59
    %61 = vadd.xlane.f32.xlu0 %v58
    %v62 = vpop.xlane.xlu0 %61
    %v63 = vrcp.pop 128.0
    %v64 = vmul.f32 %v60, %v63
    %v65 = vmul.f32 %v62, %v63
    %v66 = vadd.f32 %v64, 1e-06
    %v67 = vadd.f32 %v65, 1e-06
    %v68 = vrsqrt.pop %v66
    %v69 = vrsqrt.pop %v67
    %v70 = vmul.f32 %v54, %v68
    %v71 = vmul.f32 %v55, %v69
    %v73 = vlaneseq
    %v74 = vshrl.u32 %v73, 7
    %v75 = vsub.s32 0, %v74
    %v76 = vrot.slane %v56, %v75
    %v78 = vmul.f32 %v70, %v76
    %v79 = vmul.f32 %v71, %v76
    %v80 = vpack.c.bf16 %v79, %v78
    %v81 = vld [vmem:[%s7] sm:$0xff]
    %v82 = vld [vmem:[%s7 + $0x8] sm:$0xff]
    %v83 = vld [vmem:[%s7 + $0x10] sm:$0xff]
    %v84 = vld [vmem:[%s7 + $0x18] sm:$0xff]
    %v85 = vld [vmem:[%s7 + $0x20] sm:$0xff]
    %v86 = vld [vmem:[%s7 + $0x28] sm:$0xff]
    %v87 = vld [vmem:[%s7 + $0x30] sm:$0xff]
    %v88 = vld [vmem:[%s7 + $0x38] sm:$0xff]
    %v89 = vld [vmem:[%s7 + $0x40] sm:$0xff]
    %v90 = vld [vmem:[%s7 + $0x48] sm:$0xff]
    %v91 = vld [vmem:[%s7 + $0x50] sm:$0xff]
    %v92 = vld [vmem:[%s7 + $0x58] sm:$0xff]
    %v93 = vld [vmem:[%s7 + $0x60] sm:$0xff]
    %v94 = vld [vmem:[%s7 + $0x68] sm:$0xff]
    %v95 = vld [vmem:[%s7 + $0x70] sm:$0xff]
    %v96 = vld [vmem:[%s7 + $0x78] sm:$0xff]
    %v97 = vld [vmem:[%s7 + $0x80] sm:$0xff]
    %v98 = vld [vmem:[%s7 + $0x88] sm:$0xff]
    %v99 = vld [vmem:[%s7 + $0x90] sm:$0xff]
    %v100 = vld [vmem:[%s7 + $0x98] sm:$0xff]
    %v101 = vld [vmem:[%s7 + $0xa0] sm:$0xff]
    %v102 = vld [vmem:[%s7 + $0xa8] sm:$0xff]
    %v103 = vld [vmem:[%s7 + $0xb0] sm:$0xff]
    %v104 = vld [vmem:[%s7 + $0xb8] sm:$0xff]
    %v105 = vld [vmem:[%s7 + $0xc0] sm:$0xff]
    %v106 = vld [vmem:[%s7 + $0xc8] sm:$0xff]
    %v107 = vld [vmem:[%s7 + $0xd0] sm:$0xff]
    %v108 = vld [vmem:[%s7 + $0xd8] sm:$0xff]
    %v109 = vld [vmem:[%s7 + $0xe0] sm:$0xff]
    %v110 = vld [vmem:[%s7 + $0xe8] sm:$0xff]
    %v111 = vld [vmem:[%s7 + $0xf0] sm:$0xff]
    %v112 = vld [vmem:[%s7 + $0xf8] sm:$0xff]
    %v113 = vld [vmem:[%s8] sm:$0xf]
    %v115 = vlaneseq
    %v116 = vshrl.u32 %v115, 7
    %v117 = vsub.s32 0, %v116
    %v118 = vrot.slane %v113, %v117
    %v119 = vlaneseq
    %v120 = vshrl.u32 %v119, 7
    %v121 = vsub.s32 1, %v120
    %v122 = vrot.slane %v113, %v121
    %v123 = vlaneseq
    %v124 = vshrl.u32 %v123, 7
    %v125 = vsub.s32 2, %v124
    %v126 = vrot.slane %v113, %v125
    %v127 = vlaneseq
    %v128 = vshrl.u32 %v127, 7
    %v129 = vsub.s32 3, %v128
    %v130 = vrot.slane %v113, %v129
    %v167 = vunpack.c.l.b16 %v81
    %v168 = vunpack.c.h.b16 %v81
    %v169 = vunpack.c.l.b16 %v82
    %v170 = vunpack.c.h.b16 %v82
    %v171 = vunpack.c.l.b16 %v83
    %v172 = vunpack.c.h.b16 %v83
    %v173 = vunpack.c.l.b16 %v84
    %v174 = vunpack.c.h.b16 %v84
    %v175 = vunpack.c.l.b16 %v85
    %v176 = vunpack.c.h.b16 %v85
    %v177 = vunpack.c.l.b16 %v86
    %v178 = vunpack.c.h.b16 %v86
    %v179 = vunpack.c.l.b16 %v87
    %v180 = vunpack.c.h.b16 %v87
    %v181 = vunpack.c.l.b16 %v88
    %v182 = vunpack.c.h.b16 %v88
    %v183 = vunpack.c.l.b16 %v89
    %v184 = vunpack.c.h.b16 %v89
    %v185 = vunpack.c.l.b16 %v90
    %v186 = vunpack.c.h.b16 %v90
    %v187 = vunpack.c.l.b16 %v91
    %v188 = vunpack.c.h.b16 %v91
    %v189 = vunpack.c.l.b16 %v92
    %v190 = vunpack.c.h.b16 %v92
    %v191 = vunpack.c.l.b16 %v93
    %v192 = vunpack.c.h.b16 %v93
    %v193 = vunpack.c.l.b16 %v94
    %v194 = vunpack.c.h.b16 %v94
    %v195 = vunpack.c.l.b16 %v95
    %v196 = vunpack.c.h.b16 %v95
    %v197 = vunpack.c.l.b16 %v96
    %v198 = vunpack.c.h.b16 %v96
    %v199 = vunpack.c.l.b16 %v97
    %v200 = vunpack.c.h.b16 %v97
    %v201 = vunpack.c.l.b16 %v98
    %v202 = vunpack.c.h.b16 %v98
    %v203 = vunpack.c.l.b16 %v99
    %v204 = vunpack.c.h.b16 %v99
    %v205 = vunpack.c.l.b16 %v100
    %v206 = vunpack.c.h.b16 %v100
    %v207 = vunpack.c.l.b16 %v101
    %v208 = vunpack.c.h.b16 %v101
    %v209 = vunpack.c.l.b16 %v102
    %v210 = vunpack.c.h.b16 %v102
    %v211 = vunpack.c.l.b16 %v103
    %v212 = vunpack.c.h.b16 %v103
    %v213 = vunpack.c.l.b16 %v104
    %v214 = vunpack.c.h.b16 %v104
    %v215 = vunpack.c.l.b16 %v105
    %v216 = vunpack.c.h.b16 %v105
    %v217 = vunpack.c.l.b16 %v106
    %v218 = vunpack.c.h.b16 %v106
    %v219 = vunpack.c.l.b16 %v107
    %v220 = vunpack.c.h.b16 %v107
    %v221 = vunpack.c.l.b16 %v108
    %v222 = vunpack.c.h.b16 %v108
    %v223 = vunpack.c.l.b16 %v109
    %v224 = vunpack.c.h.b16 %v109
    %v225 = vunpack.c.l.b16 %v110
    %v226 = vunpack.c.h.b16 %v110
    %v227 = vunpack.c.l.b16 %v111
    %v228 = vunpack.c.h.b16 %v111
    %v229 = vunpack.c.l.b16 %v112
    %v230 = vunpack.c.h.b16 %v112
    %v231 = vpack.c.b16 %v171, %v167
    %v232 = vpack.c.b16 %v172, %v168
    %v233 = vpack.c.b16 %v173, %v169
    %v234 = vpack.c.b16 %v174, %v170
    %v235 = vpack.c.b16 %v179, %v175
    %v236 = vpack.c.b16 %v180, %v176
    %v237 = vpack.c.b16 %v181, %v177
    %v238 = vpack.c.b16 %v182, %v178
    %v239 = vpack.c.b16 %v187, %v183
    %v240 = vpack.c.b16 %v188, %v184
    %v241 = vpack.c.b16 %v189, %v185
    %v242 = vpack.c.b16 %v190, %v186
    %v243 = vpack.c.b16 %v195, %v191
    %v244 = vpack.c.b16 %v196, %v192
    %v245 = vpack.c.b16 %v197, %v193
    %v246 = vpack.c.b16 %v198, %v194
    %v247 = vpack.c.b16 %v203, %v199
    %v248 = vpack.c.b16 %v204, %v200
    %v249 = vpack.c.b16 %v205, %v201
    %v250 = vpack.c.b16 %v206, %v202
    %v251 = vpack.c.b16 %v211, %v207
    %v252 = vpack.c.b16 %v212, %v208
    %v253 = vpack.c.b16 %v213, %v209
    %v254 = vpack.c.b16 %v214, %v210
    %v255 = vpack.c.b16 %v219, %v215
    %v256 = vpack.c.b16 %v220, %v216
    %v257 = vpack.c.b16 %v221, %v217
    %v258 = vpack.c.b16 %v222, %v218
    %v259 = vpack.c.b16 %v227, %v223
    %v260 = vpack.c.b16 %v228, %v224
    %v261 = vpack.c.b16 %v229, %v225
    %v262 = vpack.c.b16 %v230, %v226
    %295 = vmatprep.subr.bf16.mxu0 %v232
    %296 = vmatpush1.bf16.msra.mxu0 %v231
    %297 = vmatprep.subr.bf16.mxu0 %v236
    %298 = vmatpush1.bf16.msra.mxu0 %v235
    %299 = vmatprep.subr.bf16.mxu0 %v240
    %300 = vmatpush1.bf16.msra.mxu0 %v239
    %301 = vmatprep.subr.bf16.mxu0 %v244
    %302 = vmatpush1.bf16.msra.mxu0 %v243
    %303 = vmatprep.subr.bf16.mxu0 %v248
    %304 = vmatpush1.bf16.msra.mxu0 %v247
    %305 = vmatprep.subr.bf16.mxu0 %v252
    %306 = vmatpush1.bf16.msra.mxu0 %v251
    %307 = vmatprep.subr.bf16.mxu0 %v256
    %308 = vmatpush1.bf16.msra.mxu0 %v255
    %309 = vmatprep.subr.bf16.mxu0 %v260
    %310 = vmatpush1.bf16.msra.mxu0 %v259
    %311 = vmatprep.subr.bf16.mxu0 0
    %312 = vmatpush1.bf16.msra.mxu0 0
    %313 = vmatprep.subr.bf16.mxu0 0
    %314 = vmatpush1.bf16.msra.mxu0 0
    %315 = vmatprep.subr.bf16.mxu0 0
    %316 = vmatpush1.bf16.msra.mxu0 0
    %317 = vmatprep.subr.bf16.mxu0 0
    %318 = vmatpush1.bf16.msra.mxu0 0
    %319 = vmatprep.subr.bf16.mxu0 0
    %320 = vmatpush1.bf16.msra.mxu0 0
    %321 = vmatprep.subr.bf16.mxu0 0
    %322 = vmatpush1.bf16.msra.mxu0 0
    %323 = vmatprep.subr.bf16.mxu0 0
    %324 = vmatpush1.bf16.msra.mxu0 0
    %325 = vmatprep.subr.bf16.mxu0 0
    %326 = vmatpush1.bf16.msra.mxu0 0
    %327 = vmatprep.mubr.bf16.mxu0 0
    %328 = vmatmul.mubr.bf16.gmra.mrb[0].mxu0 %v80
    %v329 = vpop.f32.mrb[0].mxu0
    %v330 = vadd.f32 %v118, %v329
    %v331 = vpop.f32.mrb[0].mxu0
    %v332 = vadd.f32 %v122, %v331
    %v333 = vpop.f32.mrb[0].mxu0
    %v334 = vadd.f32 %v118, %v333
    %v335 = vpop.f32.mrb[0].mxu0
    %v336 = vadd.f32 %v122, %v335
    %337 = vdwg.mxu0
    %338 = vmatprep.subr.bf16.mxu0 %v234
    %339 = vmatpush1.bf16.msra.mxu0 %v233
    %340 = vmatprep.subr.bf16.mxu0 %v238
    %341 = vmatpush1.bf16.msra.mxu0 %v237
    %342 = vmatprep.subr.bf16.mxu0 %v242
    %343 = vmatpush1.bf16.msra.mxu0 %v241
    %344 = vmatprep.subr.bf16.mxu0 %v246
    %345 = vmatpush1.bf16.msra.mxu0 %v245
    %346 = vmatprep.subr.bf16.mxu0 %v250
    %347 = vmatpush1.bf16.msra.mxu0 %v249
    %348 = vmatprep.subr.bf16.mxu0 %v254
    %349 = vmatpush1.bf16.msra.mxu0 %v253
    %350 = vmatprep.subr.bf16.mxu0 %v258
    %351 = vmatpush1.bf16.msra.mxu0 %v257
    %352 = vmatprep.subr.bf16.mxu0 %v262
    %353 = vmatpush1.bf16.msra.mxu0 %v261
    %354 = vmatprep.subr.bf16.mxu0 0
    %355 = vmatpush1.bf16.msra.mxu0 0
    %356 = vmatprep.subr.bf16.mxu0 0
    %357 = vmatpush1.bf16.msra.mxu0 0
    %358 = vmatprep.subr.bf16.mxu0 0
    %359 = vmatpush1.bf16.msra.mxu0 0
    %360 = vmatprep.subr.bf16.mxu0 0
    %361 = vmatpush1.bf16.msra.mxu0 0
    %362 = vmatprep.subr.bf16.mxu0 0
    %363 = vmatpush1.bf16.msra.mxu0 0
    %364 = vmatprep.subr.bf16.mxu0 0
    %365 = vmatpush1.bf16.msra.mxu0 0
    %366 = vmatprep.subr.bf16.mxu0 0
    %367 = vmatpush1.bf16.msra.mxu0 0
    %368 = vmatprep.subr.bf16.mxu0 0
    %369 = vmatpush1.bf16.msra.mxu0 0
    %370 = vmatprep.mubr.bf16.mxu0 0
    %371 = vmatmul.mubr.bf16.gmra.mrb[0].mxu0 %v80
    %v372 = vpop.f32.mrb[0].mxu0
    %v373 = vadd.f32 %v126, %v372
    %v374 = vpop.f32.mrb[0].mxu0
    %v375 = vadd.f32 %v130, %v374
    %v376 = vpop.f32.mrb[0].mxu0
    %v377 = vadd.f32 %v126, %v376
    %v378 = vpop.f32.mrb[0].mxu0
    %v379 = vadd.f32 %v130, %v378
    %380 = vdwg.mxu0
    %v381 = vmul.f32 %v330, %v46
    %v382 = vmul.f32 %v334, %v47
    %v383 = vmul.f32 %v373, %v48
    %v384 = vmul.f32 %v377, %v49
    %v385 = vadd.f32 %v381, %v383
    %v386 = vadd.f32 %v382, %v384
    %v387 = vpack.c.bf16 %v386, %v385
    %v388 = vmul.f32 %v332, %v50
    %v389 = vmul.f32 %v336, %v51
    %v390 = vmul.f32 %v375, %v52
    %v391 = vmul.f32 %v379, %v53
    %v392 = vadd.f32 %v388, %v390
    %v393 = vadd.f32 %v389, %v391
    %v394 = vpack.c.bf16 %v393, %v392
    %v395 = vpack.c.bf16 %v336, %v332
    %v396 = vld [vmem:[%s5] sm:$0xff]
    %v397 = vld [vmem:[%s5 + $0x8] sm:$0xff]
    %v399 = vrot.slane %v387, 4
    %400 = vrot.lane.b32.xlu0 %v399, 96
    %v401 = vpop.permute.xlu0 %400
    %vm402 = vcmask 1043456
    %v405 = vsel %vm402, %v387, %v401
    %vm406 = vcmask 261120
    %v407 = vsel %vm406, %v405, 0
    %v410 = vsel %vm406, %v394, 0
    %412 = vmatprep.subr.bf16.mxu0 0
    %413 = vmatpush1.bf16.xpose.msra.mxu0 %v410
    %414 = vmatprep.subr.bf16.mxu0 0
    %415 = vmatpush1.bf16.xpose.msra.mxu0 0
    %416 = vmatprep.subr.bf16.mxu0 0
    %417 = vmatpush1.bf16.xpose.msra.mxu0 0
    %418 = vmatprep.subr.bf16.mxu0 0
    %419 = vmatpush1.bf16.xpose.msra.mxu0 0
    %420 = vmatprep.subr.bf16.mxu0 0
    %421 = vmatpush1.bf16.xpose.msra.mxu0 0
    %422 = vmatprep.subr.bf16.mxu0 0
    %423 = vmatpush1.bf16.xpose.msra.mxu0 0
    %424 = vmatprep.subr.bf16.mxu0 0
    %425 = vmatpush1.bf16.xpose.msra.mxu0 0
    %426 = vmatprep.subr.bf16.mxu0 0
    %427 = vmatpush1.bf16.xpose.msra.mxu0 0
    %428 = vmatprep.subr.bf16.mxu0 0
    %429 = vmatpush1.bf16.xpose.msra.mxu0 0
    %430 = vmatprep.subr.bf16.mxu0 0
    %431 = vmatpush1.bf16.xpose.msra.mxu0 0
    %432 = vmatprep.subr.bf16.mxu0 0
    %433 = vmatpush1.bf16.xpose.msra.mxu0 0
    %434 = vmatprep.subr.bf16.mxu0 0
    %435 = vmatpush1.bf16.xpose.msra.mxu0 0
    %436 = vmatprep.subr.bf16.mxu0 0
    %437 = vmatpush1.bf16.xpose.msra.mxu0 0
    %438 = vmatprep.subr.bf16.mxu0 0
    %439 = vmatpush1.bf16.xpose.msra.mxu0 0
    %440 = vmatprep.subr.bf16.mxu0 0
    %441 = vmatpush1.bf16.xpose.msra.mxu0 0
    %442 = vmatprep.subr.bf16.mxu0 0
    %443 = vmatpush1.bf16.xpose.msra.mxu0 0
    %444 = vmatprep.mubr.bf16.mxu0 0
    %445 = vmatmul.mubr.bf16.gmra.mrb[0].mxu0 %v407
    %v446 = vpop.f32.mrb[0].mxu0
    %v447 = vadd.f32 0.0, %v446
    %v448 = vpop.f32.mrb[0].mxu0
    %v449 = vpop.f32.mrb[0].mxu0
    %v450 = vadd.f32 0.0, %v449
    %v451 = vpop.f32.mrb[0].mxu0
    %452 = vdwg.mxu0
    %v453 = vmul.f32 %v447, 0.17677669
    %v454 = vmul.f32 %v450, 0.17677669
    %v455 = vadd.f32 %v453, %v396
    %v456 = vadd.f32 %v454, %v397
    %vm457 = vcmask 64512
    %v458 = vsel %vm457, %v455, -inf
    %459 = vmax.xlane.f32.xlu0 %v458
    %v460 = vpop.xlane.xlu0 %459
    %v461 = vsel %vm457, %v456, -inf
    %462 = vmax.xlane.f32.xlu0 %v461
    %v463 = vpop.xlane.xlu0 %462
    %v464 = vsub.f32 %v455, %v460
    %v465 = vsub.f32 %v456, %v463
    %v466 = vmul.f32 %v464, 1.442695
    %v467 = vpow.pop %v466
    %v468 = vmul.f32 %v465, 1.442695
    %v469 = vpow.pop %v468
    %v470 = vsel %vm457, %v467, 0.0
    %471 = vadd.xlane.f32.xlu0 %v470
    %v472 = vpop.xlane.xlu0 %471
    %v473 = vsel %vm457, %v469, 0.0
    %474 = vadd.xlane.f32.xlu0 %v473
    %v475 = vpop.xlane.xlu0 %474
    %v476 = vrcp.pop %v472
    %v477 = vrcp.pop %v475
    %v478 = vmul.f32 %v467, %v476
    %v479 = vmul.f32 %v469, %v477
    %v480 = vpack.c.bf16 %v479, %v478
    %482 = vrot.lane.b32.xlu0 %v395, 64
    %v483 = vpop.permute.xlu0 %482
    %v485 = vsel %vm457, %v480, 0
    %v488 = vsel %vm402, %v483, 0
    %490 = vmatprep.subr.bf16.mxu0 0
    %491 = vmatpush1.bf16.msra.mxu0 %v488
    %492 = vmatprep.subr.bf16.mxu0 0
    %493 = vmatpush1.bf16.msra.mxu0 0
    %494 = vmatprep.subr.bf16.mxu0 0
    %495 = vmatpush1.bf16.msra.mxu0 0
    %496 = vmatprep.subr.bf16.mxu0 0
    %497 = vmatpush1.bf16.msra.mxu0 0
    %498 = vmatprep.subr.bf16.mxu0 0
    %499 = vmatpush1.bf16.msra.mxu0 0
    %500 = vmatprep.subr.bf16.mxu0 0
    %501 = vmatpush1.bf16.msra.mxu0 0
    %502 = vmatprep.subr.bf16.mxu0 0
    %503 = vmatpush1.bf16.msra.mxu0 0
    %504 = vmatprep.subr.bf16.mxu0 0
    %505 = vmatpush1.bf16.msra.mxu0 0
    %506 = vmatprep.subr.bf16.mxu0 0
    %507 = vmatpush1.bf16.msra.mxu0 0
    %508 = vmatprep.subr.bf16.mxu0 0
    %509 = vmatpush1.bf16.msra.mxu0 0
    %510 = vmatprep.subr.bf16.mxu0 0
    %511 = vmatpush1.bf16.msra.mxu0 0
    %512 = vmatprep.subr.bf16.mxu0 0
    %513 = vmatpush1.bf16.msra.mxu0 0
    %514 = vmatprep.subr.bf16.mxu0 0
    %515 = vmatpush1.bf16.msra.mxu0 0
    %516 = vmatprep.subr.bf16.mxu0 0
    %517 = vmatpush1.bf16.msra.mxu0 0
    %518 = vmatprep.subr.bf16.mxu0 0
    %519 = vmatpush1.bf16.msra.mxu0 0
    %520 = vmatprep.subr.bf16.mxu0 0
    %521 = vmatpush1.bf16.msra.mxu0 0
    %522 = vmatprep.mubr.bf16.mxu0 0
    %523 = vmatmul.mubr.bf16.gmra.mrb[0].mxu0 %v485
    %v524 = vpop.f32.mrb[0].mxu0
    %v525 = vadd.f32 0.0, %v524
    %v526 = vpop.f32.mrb[0].mxu0
    %v527 = vpop.f32.mrb[0].mxu0
    %v528 = vadd.f32 0.0, %v527
    %v529 = vpop.f32.mrb[0].mxu0
    %530 = vdwg.mxu0
    %532 = vrot.lane.b32.xlu0 %v405, 64
    %v533 = vpop.permute.xlu0 %532
    %535 = vrot.lane.b32.xlu0 %v394, 96
    %v536 = vpop.permute.xlu0 %535
    %v538 = vsel %vm406, %v533, 0
    %v541 = vsel %vm406, %v536, 0
    %543 = vmatprep.subr.bf16.mxu0 0
    %544 = vmatpush1.bf16.xpose.msra.mxu0 %v541
    %545 = vmatprep.subr.bf16.mxu0 0
    %546 = vmatpush1.bf16.xpose.msra.mxu0 0
    %547 = vmatprep.subr.bf16.mxu0 0
    %548 = vmatpush1.bf16.xpose.msra.mxu0 0
    %549 = vmatprep.subr.bf16.mxu0 0
    %550 = vmatpush1.bf16.xpose.msra.mxu0 0
    %551 = vmatprep.subr.bf16.mxu0 0
    %552 = vmatpush1.bf16.xpose.msra.mxu0 0
    %553 = vmatprep.subr.bf16.mxu0 0
    %554 = vmatpush1.bf16.xpose.msra.mxu0 0
    %555 = vmatprep.subr.bf16.mxu0 0
    %556 = vmatpush1.bf16.xpose.msra.mxu0 0
    %557 = vmatprep.subr.bf16.mxu0 0
    %558 = vmatpush1.bf16.xpose.msra.mxu0 0
    %559 = vmatprep.subr.bf16.mxu0 0
    %560 = vmatpush1.bf16.xpose.msra.mxu0 0
    %561 = vmatprep.subr.bf16.mxu0 0
    %562 = vmatpush1.bf16.xpose.msra.mxu0 0
    %563 = vmatprep.subr.bf16.mxu0 0
    %564 = vmatpush1.bf16.xpose.msra.mxu0 0
    %565 = vmatprep.subr.bf16.mxu0 0
    %566 = vmatpush1.bf16.xpose.msra.mxu0 0
    %567 = vmatprep.subr.bf16.mxu0 0
    %568 = vmatpush1.bf16.xpose.msra.mxu0 0
    %569 = vmatprep.subr.bf16.mxu0 0
    %570 = vmatpush1.bf16.xpose.msra.mxu0 0
    %571 = vmatprep.subr.bf16.mxu0 0
    %572 = vmatpush1.bf16.xpose.msra.mxu0 0
    %573 = vmatprep.subr.bf16.mxu0 0
    %574 = vmatpush1.bf16.xpose.msra.mxu0 0
    %575 = vmatprep.mubr.bf16.mxu0 0
    %576 = vmatmul.mubr.bf16.gmra.mrb[0].mxu0 %v538
    %v577 = vpop.f32.mrb[0].mxu0
    %v578 = vadd.f32 0.0, %v577
    %v579 = vpop.f32.mrb[0].mxu0
    %v580 = vpop.f32.mrb[0].mxu0
    %v581 = vadd.f32 0.0, %v580
    %v582 = vpop.f32.mrb[0].mxu0
    %583 = vdwg.mxu0
    %v584 = vmul.f32 %v578, 0.17677669
    %v585 = vmul.f32 %v581, 0.17677669
    %v586 = vadd.f32 %v584, %v396
    %v587 = vadd.f32 %v585, %v397
    %v588 = vsel %vm457, %v586, -inf
    %589 = vmax.xlane.f32.xlu0 %v588
    %v590 = vpop.xlane.xlu0 %589
    %v591 = vsel %vm457, %v587, -inf
    %592 = vmax.xlane.f32.xlu0 %v591
    %v593 = vpop.xlane.xlu0 %592
    %v594 = vsub.f32 %v586, %v590
    %v595 = vsub.f32 %v587, %v593
    %v596 = vmul.f32 %v594, 1.442695
    %v597 = vpow.pop %v596
    %v598 = vmul.f32 %v595, 1.442695
    %v599 = vpow.pop %v598
    %v600 = vsel %vm457, %v597, 0.0
    %601 = vadd.xlane.f32.xlu0 %v600
    %v602 = vpop.xlane.xlu0 %601
    %v603 = vsel %vm457, %v599, 0.0
    %604 = vadd.xlane.f32.xlu0 %v603
    %v605 = vpop.xlane.xlu0 %604
    %v606 = vrcp.pop %v602
    %v607 = vrcp.pop %v605
    %v608 = vmul.f32 %v597, %v606
    %v609 = vmul.f32 %v599, %v607
    %v610 = vpack.c.bf16 %v609, %v608
    %611 = vrot.lane.b32.xlu0 %v395, 32
    %v612 = vpop.permute.xlu0 %611
    %v614 = vsel %vm457, %v610, 0
    %v617 = vsel %vm402, %v612, 0
    %619 = vmatprep.subr.bf16.mxu0 0
    %620 = vmatpush1.bf16.msra.mxu0 %v617
    %621 = vmatprep.subr.bf16.mxu0 0
    %622 = vmatpush1.bf16.msra.mxu0 0
    %623 = vmatprep.subr.bf16.mxu0 0
    %624 = vmatpush1.bf16.msra.mxu0 0
    %625 = vmatprep.subr.bf16.mxu0 0
    %626 = vmatpush1.bf16.msra.mxu0 0
    %627 = vmatprep.subr.bf16.mxu0 0
    %628 = vmatpush1.bf16.msra.mxu0 0
    %629 = vmatprep.subr.bf16.mxu0 0
    %630 = vmatpush1.bf16.msra.mxu0 0
    %631 = vmatprep.subr.bf16.mxu0 0
    %632 = vmatpush1.bf16.msra.mxu0 0
    %633 = vmatprep.subr.bf16.mxu0 0
    %634 = vmatpush1.bf16.msra.mxu0 0
    %635 = vmatprep.subr.bf16.mxu0 0
    %636 = vmatpush1.bf16.msra.mxu0 0
    %637 = vmatprep.subr.bf16.mxu0 0
    %638 = vmatpush1.bf16.msra.mxu0 0
    %639 = vmatprep.subr.bf16.mxu0 0
    %640 = vmatpush1.bf16.msra.mxu0 0
    %641 = vmatprep.subr.bf16.mxu0 0
    %642 = vmatpush1.bf16.msra.mxu0 0
    %643 = vmatprep.subr.bf16.mxu0 0
    %644 = vmatpush1.bf16.msra.mxu0 0
    %645 = vmatprep.subr.bf16.mxu0 0
    %646 = vmatpush1.bf16.msra.mxu0 0
    %647 = vmatprep.subr.bf16.mxu0 0
    %648 = vmatpush1.bf16.msra.mxu0 0
    %649 = vmatprep.subr.bf16.mxu0 0
    %650 = vmatpush1.bf16.msra.mxu0 0
    %651 = vmatprep.mubr.bf16.mxu0 0
    %652 = vmatmul.mubr.bf16.gmra.mrb[0].mxu0 %v614
    %v653 = vpop.f32.mrb[0].mxu0
    %v654 = vadd.f32 0.0, %v653
    %v655 = vpop.f32.mrb[0].mxu0
    %v656 = vpop.f32.mrb[0].mxu0
    %v657 = vadd.f32 0.0, %v656
    %v658 = vpop.f32.mrb[0].mxu0
    %659 = vdwg.mxu0
    %661 = vrot.lane.b32.xlu0 %v528, 32
    %v662 = vpop.permute.xlu0 %661
    %665 = vrot.lane.b32.xlu0 %v654, 64
    %v666 = vpop.permute.xlu0 %665
    %669 = vrot.lane.b32.xlu0 %v657, 96
    %v670 = vpop.permute.xlu0 %669
    %v672 = vsel %vm406, %v525, %v662
    %vm673 = vcmask 523264
    %v674 = vsel %vm673, %v672, %v666
    %vm675 = vcmask 785408
    %v676 = vsel %vm675, %v674, %v670
    %s677 = scalar_lea.vmem %s5, 16
    %v678 = vld [vmem:[%s677] sm:$0xff]
    %v679 = vld [vmem:[%s677 + $0x8] sm:$0xff]
    %680 = vrot.lane.b32.xlu0 %v387, 96
    %v681 = vpop.permute.xlu0 %680
    %v684 = vsel %vm402, %v399, %v681
    %v685 = vrot.slane %v394, 4
    %v686 = vsel %vm406, %v684, 0
    %v689 = vsel %vm406, %v685, 0
    %691 = vmatprep.subr.bf16.mxu0 0
    %692 = vmatpush1.bf16.xpose.msra.mxu0 %v689
    %693 = vmatprep.subr.bf16.mxu0 0
    %694 = vmatpush1.bf16.xpose.msra.mxu0 0
    %695 = vmatprep.subr.bf16.mxu0 0
    %696 = vmatpush1.bf16.xpose.msra.mxu0 0
    %697 = vmatprep.subr.bf16.mxu0 0
    %698 = vmatpush1.bf16.xpose.msra.mxu0 0
    %699 = vmatprep.subr.bf16.mxu0 0
    %700 = vmatpush1.bf16.xpose.msra.mxu0 0
    %701 = vmatprep.subr.bf16.mxu0 0
    %702 = vmatpush1.bf16.xpose.msra.mxu0 0
    %703 = vmatprep.subr.bf16.mxu0 0
    %704 = vmatpush1.bf16.xpose.msra.mxu0 0
    %705 = vmatprep.subr.bf16.mxu0 0
    %706 = vmatpush1.bf16.xpose.msra.mxu0 0
    %707 = vmatprep.subr.bf16.mxu0 0
    %708 = vmatpush1.bf16.xpose.msra.mxu0 0
    %709 = vmatprep.subr.bf16.mxu0 0
    %710 = vmatpush1.bf16.xpose.msra.mxu0 0
    %711 = vmatprep.subr.bf16.mxu0 0
    %712 = vmatpush1.bf16.xpose.msra.mxu0 0
    %713 = vmatprep.subr.bf16.mxu0 0
    %714 = vmatpush1.bf16.xpose.msra.mxu0 0
    %715 = vmatprep.subr.bf16.mxu0 0
    %716 = vmatpush1.bf16.xpose.msra.mxu0 0
    %717 = vmatprep.subr.bf16.mxu0 0
    %718 = vmatpush1.bf16.xpose.msra.mxu0 0
    %719 = vmatprep.subr.bf16.mxu0 0
    %720 = vmatpush1.bf16.xpose.msra.mxu0 0
    %721 = vmatprep.subr.bf16.mxu0 0
    %722 = vmatpush1.bf16.xpose.msra.mxu0 0
    %723 = vmatprep.mubr.bf16.mxu0 0
    %724 = vmatmul.mubr.bf16.gmra.mrb[0].mxu0 %v686
    %v725 = vpop.f32.mrb[0].mxu0
    %v726 = vadd.f32 0.0, %v725
    %v727 = vpop.f32.mrb[0].mxu0
    %v728 = vpop.f32.mrb[0].mxu0
    %v729 = vadd.f32 0.0, %v728
    %v730 = vpop.f32.mrb[0].mxu0
    %731 = vdwg.mxu0
    %v732 = vmul.f32 %v726, 0.17677669
    %v733 = vmul.f32 %v729, 0.17677669
    %v734 = vadd.f32 %v732, %v678
    %v735 = vadd.f32 %v733, %v679
    %v736 = vsel %vm457, %v734, -inf
    %737 = vmax.xlane.f32.xlu0 %v736
    %v738 = vpop.xlane.xlu0 %737
    %v739 = vsel %vm457, %v735, -inf
    %740 = vmax.xlane.f32.xlu0 %v739
    %v741 = vpop.xlane.xlu0 %740
    %v742 = vsub.f32 %v734, %v738
    %v743 = vsub.f32 %v735, %v741
    %v744 = vmul.f32 %v742, 1.442695
    %v745 = vpow.pop %v744
    %v746 = vmul.f32 %v743, 1.442695
    %v747 = vpow.pop %v746
    %v748 = vsel %vm457, %v745, 0.0
    %749 = vadd.xlane.f32.xlu0 %v748
    %v750 = vpop.xlane.xlu0 %749
    %v751 = vsel %vm457, %v747, 0.0
    %752 = vadd.xlane.f32.xlu0 %v751
    %v753 = vpop.xlane.xlu0 %752
    %v754 = vrcp.pop %v750
    %v755 = vrcp.pop %v753
    %v756 = vmul.f32 %v745, %v754
    %v757 = vmul.f32 %v747, %v755
    %v758 = vpack.c.bf16 %v757, %v756
    %v759 = vrot.slane %v395, 4
    %760 = vrot.lane.b32.xlu0 %v759, 64
    %v761 = vpop.permute.xlu0 %760
    %v763 = vsel %vm457, %v758, 0
    %v766 = vsel %vm402, %v761, 0
    %768 = vmatprep.subr.bf16.mxu0 0
    %769 = vmatpush1.bf16.msra.mxu0 %v766
    %770 = vmatprep.subr.bf16.mxu0 0
    %771 = vmatpush1.bf16.msra.mxu0 0
    %772 = vmatprep.subr.bf16.mxu0 0
    %773 = vmatpush1.bf16.msra.mxu0 0
    %774 = vmatprep.subr.bf16.mxu0 0
    %775 = vmatpush1.bf16.msra.mxu0 0
    %776 = vmatprep.subr.bf16.mxu0 0
    %777 = vmatpush1.bf16.msra.mxu0 0
    %778 = vmatprep.subr.bf16.mxu0 0
    %779 = vmatpush1.bf16.msra.mxu0 0
    %780 = vmatprep.subr.bf16.mxu0 0
    %781 = vmatpush1.bf16.msra.mxu0 0
    %782 = vmatprep.subr.bf16.mxu0 0
    %783 = vmatpush1.bf16.msra.mxu0 0
    %784 = vmatprep.subr.bf16.mxu0 0
    %785 = vmatpush1.bf16.msra.mxu0 0
    %786 = vmatprep.subr.bf16.mxu0 0
    %787 = vmatpush1.bf16.msra.mxu0 0
    %788 = vmatprep.subr.bf16.mxu0 0
    %789 = vmatpush1.bf16.msra.mxu0 0
    %790 = vmatprep.subr.bf16.mxu0 0
    %791 = vmatpush1.bf16.msra.mxu0 0
    %792 = vmatprep.subr.bf16.mxu0 0
    %793 = vmatpush1.bf16.msra.mxu0 0
    %794 = vmatprep.subr.bf16.mxu0 0
    %795 = vmatpush1.bf16.msra.mxu0 0
    %796 = vmatprep.subr.bf16.mxu0 0
    %797 = vmatpush1.bf16.msra.mxu0 0
    %798 = vmatprep.subr.bf16.mxu0 0
    %799 = vmatpush1.bf16.msra.mxu0 0
    %800 = vmatprep.mubr.bf16.mxu0 0
    %801 = vmatmul.mubr.bf16.gmra.mrb[0].mxu0 %v763
    %v802 = vpop.f32.mrb[0].mxu0
    %v803 = vadd.f32 0.0, %v802
    %v804 = vpop.f32.mrb[0].mxu0
    %v805 = vpop.f32.mrb[0].mxu0
    %v806 = vadd.f32 0.0, %v805
    %v807 = vpop.f32.mrb[0].mxu0
    %808 = vdwg.mxu0
    %810 = vrot.lane.b32.xlu0 %v684, 64
    %v811 = vpop.permute.xlu0 %810
    %812 = vrot.lane.b32.xlu0 %v685, 96
    %v813 = vpop.permute.xlu0 %812
    %v815 = vsel %vm406, %v811, 0
    %v818 = vsel %vm406, %v813, 0
    %820 = vmatprep.subr.bf16.mxu0 0
    %821 = vmatpush1.bf16.xpose.msra.mxu0 %v818
    %822 = vmatprep.subr.bf16.mxu0 0
    %823 = vmatpush1.bf16.xpose.msra.mxu0 0
    %824 = vmatprep.subr.bf16.mxu0 0
    %825 = vmatpush1.bf16.xpose.msra.mxu0 0
    %826 = vmatprep.subr.bf16.mxu0 0
    %827 = vmatpush1.bf16.xpose.msra.mxu0 0
    %828 = vmatprep.subr.bf16.mxu0 0
    %829 = vmatpush1.bf16.xpose.msra.mxu0 0
    %830 = vmatprep.subr.bf16.mxu0 0
    %831 = vmatpush1.bf16.xpose.msra.mxu0 0
    %832 = vmatprep.subr.bf16.mxu0 0
    %833 = vmatpush1.bf16.xpose.msra.mxu0 0
    %834 = vmatprep.subr.bf16.mxu0 0
    %835 = vmatpush1.bf16.xpose.msra.mxu0 0
    %836 = vmatprep.subr.bf16.mxu0 0
    %837 = vmatpush1.bf16.xpose.msra.mxu0 0
    %838 = vmatprep.subr.bf16.mxu0 0
    %839 = vmatpush1.bf16.xpose.msra.mxu0 0
    %840 = vmatprep.subr.bf16.mxu0 0
    %841 = vmatpush1.bf16.xpose.msra.mxu0 0
    %842 = vmatprep.subr.bf16.mxu0 0
    %843 = vmatpush1.bf16.xpose.msra.mxu0 0
    %844 = vmatprep.subr.bf16.mxu0 0
    %845 = vmatpush1.bf16.xpose.msra.mxu0 0
    %846 = vmatprep.subr.bf16.mxu0 0
    %847 = vmatpush1.bf16.xpose.msra.mxu0 0
    %848 = vmatprep.subr.bf16.mxu0 0
    %849 = vmatpush1.bf16.xpose.msra.mxu0 0
    %850 = vmatprep.subr.bf16.mxu0 0
    %851 = vmatpush1.bf16.xpose.msra.mxu0 0
    %852 = vmatprep.mubr.bf16.mxu0 0
    %853 = vmatmul.mubr.bf16.gmra.mrb[0].mxu0 %v815
    %v854 = vpop.f32.mrb[0].mxu0
    %v855 = vadd.f32 0.0, %v854
    %v856 = vpop.f32.mrb[0].mxu0
    %v857 = vpop.f32.mrb[0].mxu0
    %v858 = vadd.f32 0.0, %v857
    %v859 = vpop.f32.mrb[0].mxu0
    %860 = vdwg.mxu0
    %v861 = vmul.f32 %v855, 0.17677669
    %v862 = vmul.f32 %v858, 0.17677669
    %v863 = vadd.f32 %v861, %v678
    %v864 = vadd.f32 %v862, %v679
    %v865 = vsel %vm457, %v863, -inf
    %866 = vmax.xlane.f32.xlu0 %v865
    %v867 = vpop.xlane.xlu0 %866
    %v868 = vsel %vm457, %v864, -inf
    %869 = vmax.xlane.f32.xlu0 %v868
    %v870 = vpop.xlane.xlu0 %869
    %v871 = vsub.f32 %v863, %v867
    %v872 = vsub.f32 %v864, %v870
    %v873 = vmul.f32 %v871, 1.442695
    %v874 = vpow.pop %v873
    %v875 = vmul.f32 %v872, 1.442695
    %v876 = vpow.pop %v875
    %v877 = vsel %vm457, %v874, 0.0
    %878 = vadd.xlane.f32.xlu0 %v877
    %v879 = vpop.xlane.xlu0 %878
    %v880 = vsel %vm457, %v876, 0.0
    %881 = vadd.xlane.f32.xlu0 %v880
    %v882 = vpop.xlane.xlu0 %881
    %v883 = vrcp.pop %v879
    %v884 = vrcp.pop %v882
    %v885 = vmul.f32 %v874, %v883
    %v886 = vmul.f32 %v876, %v884
    %v887 = vpack.c.bf16 %v886, %v885
    %888 = vrot.lane.b32.xlu0 %v759, 32
    %v889 = vpop.permute.xlu0 %888
    %v891 = vsel %vm457, %v887, 0
    %v894 = vsel %vm402, %v889, 0
    %896 = vmatprep.subr.bf16.mxu0 0
    %897 = vmatpush1.bf16.msra.mxu0 %v894
    %898 = vmatprep.subr.bf16.mxu0 0
    %899 = vmatpush1.bf16.msra.mxu0 0
    %900 = vmatprep.subr.bf16.mxu0 0
    %901 = vmatpush1.bf16.msra.mxu0 0
    %902 = vmatprep.subr.bf16.mxu0 0
    %903 = vmatpush1.bf16.msra.mxu0 0
    %904 = vmatprep.subr.bf16.mxu0 0
    %905 = vmatpush1.bf16.msra.mxu0 0
    %906 = vmatprep.subr.bf16.mxu0 0
    %907 = vmatpush1.bf16.msra.mxu0 0
    %908 = vmatprep.subr.bf16.mxu0 0
    %909 = vmatpush1.bf16.msra.mxu0 0
    %910 = vmatprep.subr.bf16.mxu0 0
    %911 = vmatpush1.bf16.msra.mxu0 0
    %912 = vmatprep.subr.bf16.mxu0 0
    %913 = vmatpush1.bf16.msra.mxu0 0
    %914 = vmatprep.subr.bf16.mxu0 0
    %915 = vmatpush1.bf16.msra.mxu0 0
    %916 = vmatprep.subr.bf16.mxu0 0
    %917 = vmatpush1.bf16.msra.mxu0 0
    %918 = vmatprep.subr.bf16.mxu0 0
    %919 = vmatpush1.bf16.msra.mxu0 0
    %920 = vmatprep.subr.bf16.mxu0 0
    %921 = vmatpush1.bf16.msra.mxu0 0
    %922 = vmatprep.subr.bf16.mxu0 0
    %923 = vmatpush1.bf16.msra.mxu0 0
    %924 = vmatprep.subr.bf16.mxu0 0
    %925 = vmatpush1.bf16.msra.mxu0 0
    %926 = vmatprep.subr.bf16.mxu0 0
    %927 = vmatpush1.bf16.msra.mxu0 0
    %928 = vmatprep.mubr.bf16.mxu0 0
    %929 = vmatmul.mubr.bf16.gmra.mrb[0].mxu0 %v891
    %v930 = vpop.f32.mrb[0].mxu0
    %v931 = vadd.f32 0.0, %v930
    %v932 = vpop.f32.mrb[0].mxu0
    %v933 = vpop.f32.mrb[0].mxu0
    %v934 = vadd.f32 0.0, %v933
    %v935 = vpop.f32.mrb[0].mxu0
    %936 = vdwg.mxu0
    %938 = vrot.lane.b32.xlu0 %v806, 32
    %v939 = vpop.permute.xlu0 %938
    %942 = vrot.lane.b32.xlu0 %v931, 64
    %v943 = vpop.permute.xlu0 %942
    %946 = vrot.lane.b32.xlu0 %v934, 96
    %v947 = vpop.permute.xlu0 %946
    %v949 = vsel %vm406, %v803, %v939
    %v950 = vsel %vm673, %v949, %v943
    %v951 = vsel %vm675, %v950, %v947
    %v952 = vpack.c.bf16 %v951, %v676
    %v953 = vld [vmem:[%s9] sm:$0xf]
    %v954 = vld [vmem:[%s9 + $0x4] sm:$0xf]
    %v955 = vld [vmem:[%s9 + $0x8] sm:$0xf]
    %v956 = vld [vmem:[%s9 + $0xc] sm:$0xf]
    %v957 = vld [vmem:[%s9 + $0x10] sm:$0xf]
    %v958 = vld [vmem:[%s9 + $0x14] sm:$0xf]
    %v959 = vld [vmem:[%s9 + $0x18] sm:$0xf]
    %v960 = vld [vmem:[%s9 + $0x1c] sm:$0xf]
    %v961 = vld [vmem:[%s9 + $0x20] sm:$0xf]
    %v962 = vld [vmem:[%s9 + $0x24] sm:$0xf]
    %v963 = vld [vmem:[%s9 + $0x28] sm:$0xf]
    %v964 = vld [vmem:[%s9 + $0x2c] sm:$0xf]
    %v965 = vld [vmem:[%s9 + $0x30] sm:$0xf]
    %v966 = vld [vmem:[%s9 + $0x34] sm:$0xf]
    %v967 = vld [vmem:[%s9 + $0x38] sm:$0xf]
    %v968 = vld [vmem:[%s9 + $0x3c] sm:$0xf]
    %v985 = vunpack.c.l.b16 %v953
    %v986 = vunpack.c.l.b16 %v954
    %v987 = vunpack.c.l.b16 %v955
    %v988 = vunpack.c.l.b16 %v956
    %v989 = vunpack.c.l.b16 %v957
    %v990 = vunpack.c.l.b16 %v958
    %v991 = vunpack.c.l.b16 %v959
    %v992 = vunpack.c.l.b16 %v960
    %v993 = vunpack.c.l.b16 %v961
    %v994 = vunpack.c.l.b16 %v962
    %v995 = vunpack.c.l.b16 %v963
    %v996 = vunpack.c.l.b16 %v964
    %v997 = vunpack.c.l.b16 %v965
    %v998 = vunpack.c.l.b16 %v966
    %v999 = vunpack.c.l.b16 %v967
    %v1000 = vunpack.c.l.b16 %v968
    %v1001 = vpack.c.b16 %v986, %v985
    %v1002 = vpack.c.b16 %v988, %v987
    %v1003 = vpack.c.b16 %v990, %v989
    %v1004 = vpack.c.b16 %v992, %v991
    %v1005 = vpack.c.b16 %v994, %v993
    %v1006 = vpack.c.b16 %v996, %v995
    %v1007 = vpack.c.b16 %v998, %v997
    %v1008 = vpack.c.b16 %v1000, %v999
    %1017 = vmatprep.subr.bf16.mxu0 0
    %1018 = vmatpush1.bf16.msra.mxu0 %v1001
    %1019 = vmatprep.subr.bf16.mxu0 0
    %1020 = vmatpush1.bf16.msra.mxu0 %v1002
    %1021 = vmatprep.subr.bf16.mxu0 0
    %1022 = vmatpush1.bf16.msra.mxu0 %v1003
    %1023 = vmatprep.subr.bf16.mxu0 0
    %1024 = vmatpush1.bf16.msra.mxu0 %v1004
    %1025 = vmatprep.subr.bf16.mxu0 0
    %1026 = vmatpush1.bf16.msra.mxu0 %v1005
    %1027 = vmatprep.subr.bf16.mxu0 0
    %1028 = vmatpush1.bf16.msra.mxu0 %v1006
    %1029 = vmatprep.subr.bf16.mxu0 0
    %1030 = vmatpush1.bf16.msra.mxu0 %v1007
    %1031 = vmatprep.subr.bf16.mxu0 0
    %1032 = vmatpush1.bf16.msra.mxu0 %v1008
    %1033 = vmatprep.subr.bf16.mxu0 0
    %1034 = vmatpush1.bf16.msra.mxu0 0
    %1035 = vmatprep.subr.bf16.mxu0 0
    %1036 = vmatpush1.bf16.msra.mxu0 0
    %1037 = vmatprep.subr.bf16.mxu0 0
    %1038 = vmatpush1.bf16.msra.mxu0 0
    %1039 = vmatprep.subr.bf16.mxu0 0
    %1040 = vmatpush1.bf16.msra.mxu0 0
    %1041 = vmatprep.subr.bf16.mxu0 0
    %1042 = vmatpush1.bf16.msra.mxu0 0
    %1043 = vmatprep.subr.bf16.mxu0 0
    %1044 = vmatpush1.bf16.msra.mxu0 0
    %1045 = vmatprep.subr.bf16.mxu0 0
    %1046 = vmatpush1.bf16.msra.mxu0 0
    %1047 = vmatprep.subr.bf16.mxu0 0
    %1048 = vmatpush1.bf16.msra.mxu0 0
    %1049 = vmatprep.mubr.bf16.mxu0 0
    %1050 = vmatmul.mubr.bf16.gmra.mrb[0].mxu0 %v952
    %v1051 = vpop.f32.mrb[0].mxu0
    %v1052 = vadd.f32 0.0, %v1051
    %v1053 = vpop.f32.mrb[0].mxu0
    %v1054 = vpop.f32.mrb[0].mxu0
    %v1055 = vadd.f32 0.0, %v1054
    %v1056 = vpop.f32.mrb[0].mxu0
    %1057 = vdwg.mxu0
    %v1058 = vadd.f32 %v54, %v1052
    %v1059 = vadd.f32 %v55, %v1055
    %v1060 = vld [vmem:[%s10] sm:$0x1]
    %v1061 = vmul.f32 %v1058, %v1058
    %v1062 = vmul.f32 %v1059, %v1059
    %1063 = vadd.xlane.f32.xlu0 %v1061
    %v1064 = vpop.xlane.xlu0 %1063
    %1065 = vadd.xlane.f32.xlu0 %v1062
    %v1066 = vpop.xlane.xlu0 %1065
    %v1067 = vmul.f32 %v1064, %v63
    %v1068 = vmul.f32 %v1066, %v63
    %v1069 = vadd.f32 %v1067, 1e-06
    %v1070 = vadd.f32 %v1068, 1e-06
    %v1071 = vrsqrt.pop %v1069
    %v1072 = vrsqrt.pop %v1070
    %v1073 = vmul.f32 %v1058, %v1071
    %v1074 = vmul.f32 %v1059, %v1072
    %v1076 = vlaneseq
    %v1077 = vshrl.u32 %v1076, 7
    %v1078 = vsub.s32 0, %v1077
    %v1079 = vrot.slane %v1060, %v1078
    %v1081 = vmul.f32 %v1073, %v1079
    %v1082 = vmul.f32 %v1074, %v1079
    %v1083 = vpack.c.bf16 %v1082, %v1081
    %v1084 = vld [vmem:[%s11] sm:$0xff]
    %v1085 = vld [vmem:[%s11 + $0x8] sm:$0xff]
    %v1086 = vld [vmem:[%s11 + $0x10] sm:$0xff]
    %v1087 = vld [vmem:[%s11 + $0x18] sm:$0xff]
    %v1088 = vld [vmem:[%s11 + $0x20] sm:$0xff]
    %v1089 = vld [vmem:[%s11 + $0x28] sm:$0xff]
    %v1090 = vld [vmem:[%s11 + $0x30] sm:$0xff]
    %v1091 = vld [vmem:[%s11 + $0x38] sm:$0xff]
    %v1092 = vld [vmem:[%s11 + $0x40] sm:$0xff]
    %v1093 = vld [vmem:[%s11 + $0x48] sm:$0xff]
    %v1094 = vld [vmem:[%s11 + $0x50] sm:$0xff]
    %v1095 = vld [vmem:[%s11 + $0x58] sm:$0xff]
    %v1096 = vld [vmem:[%s11 + $0x60] sm:$0xff]
    %v1097 = vld [vmem:[%s11 + $0x68] sm:$0xff]
    %v1098 = vld [vmem:[%s11 + $0x70] sm:$0xff]
    %v1099 = vld [vmem:[%s11 + $0x78] sm:$0xff]
    %v1100 = vld [vmem:[%s11 + $0x80] sm:$0xff]
    %v1101 = vld [vmem:[%s11 + $0x88] sm:$0xff]
    %v1102 = vld [vmem:[%s11 + $0x90] sm:$0xff]
    %v1103 = vld [vmem:[%s11 + $0x98] sm:$0xff]
    %v1104 = vld [vmem:[%s11 + $0xa0] sm:$0xff]
    %v1105 = vld [vmem:[%s11 + $0xa8] sm:$0xff]
    %v1106 = vld [vmem:[%s11 + $0xb0] sm:$0xff]
    %v1107 = vld [vmem:[%s11 + $0xb8] sm:$0xff]
    %v1108 = vld [vmem:[%s11 + $0xc0] sm:$0xff]
    %v1109 = vld [vmem:[%s11 + $0xc8] sm:$0xff]
    %v1110 = vld [vmem:[%s11 + $0xd0] sm:$0xff]
    %v1111 = vld [vmem:[%s11 + $0xd8] sm:$0xff]
    %v1112 = vld [vmem:[%s11 + $0xe0] sm:$0xff]
    %v1113 = vld [vmem:[%s11 + $0xe8] sm:$0xff]
    %v1114 = vld [vmem:[%s11 + $0xf0] sm:$0xff]
    %v1115 = vld [vmem:[%s11 + $0xf8] sm:$0xff]
    %v1148 = vunpack.c.l.b16 %v1084
    %v1149 = vunpack.c.h.b16 %v1084
    %v1150 = vunpack.c.l.b16 %v1085
    %v1151 = vunpack.c.h.b16 %v1085
    %v1152 = vunpack.c.l.b16 %v1086
    %v1153 = vunpack.c.h.b16 %v1086
    %v1154 = vunpack.c.l.b16 %v1087
    %v1155 = vunpack.c.h.b16 %v1087
    %v1156 = vunpack.c.l.b16 %v1088
    %v1157 = vunpack.c.h.b16 %v1088
    %v1158 = vunpack.c.l.b16 %v1089
    %v1159 = vunpack.c.h.b16 %v1089
    %v1160 = vunpack.c.l.b16 %v1090
    %v1161 = vunpack.c.h.b16 %v1090
    %v1162 = vunpack.c.l.b16 %v1091
    %v1163 = vunpack.c.h.b16 %v1091
    %v1164 = vunpack.c.l.b16 %v1092
    %v1165 = vunpack.c.h.b16 %v1092
    %v1166 = vunpack.c.l.b16 %v1093
    %v1167 = vunpack.c.h.b16 %v1093
    %v1168 = vunpack.c.l.b16 %v1094
    %v1169 = vunpack.c.h.b16 %v1094
    %v1170 = vunpack.c.l.b16 %v1095
    %v1171 = vunpack.c.h.b16 %v1095
    %v1172 = vunpack.c.l.b16 %v1096
    %v1173 = vunpack.c.h.b16 %v1096
    %v1174 = vunpack.c.l.b16 %v1097
    %v1175 = vunpack.c.h.b16 %v1097
    %v1176 = vunpack.c.l.b16 %v1098
    %v1177 = vunpack.c.h.b16 %v1098
    %v1178 = vunpack.c.l.b16 %v1099
    %v1179 = vunpack.c.h.b16 %v1099
    %v1180 = vunpack.c.l.b16 %v1100
    %v1181 = vunpack.c.h.b16 %v1100
    %v1182 = vunpack.c.l.b16 %v1101
    %v1183 = vunpack.c.h.b16 %v1101
    %v1184 = vunpack.c.l.b16 %v1102
    %v1185 = vunpack.c.h.b16 %v1102
    %v1186 = vunpack.c.l.b16 %v1103
    %v1187 = vunpack.c.h.b16 %v1103
    %v1188 = vunpack.c.l.b16 %v1104
    %v1189 = vunpack.c.h.b16 %v1104
    %v1190 = vunpack.c.l.b16 %v1105
    %v1191 = vunpack.c.h.b16 %v1105
    %v1192 = vunpack.c.l.b16 %v1106
    %v1193 = vunpack.c.h.b16 %v1106
    %v1194 = vunpack.c.l.b16 %v1107
    %v1195 = vunpack.c.h.b16 %v1107
    %v1196 = vunpack.c.l.b16 %v1108
    %v1197 = vunpack.c.h.b16 %v1108
    %v1198 = vunpack.c.l.b16 %v1109
    %v1199 = vunpack.c.h.b16 %v1109
    %v1200 = vunpack.c.l.b16 %v1110
    %v1201 = vunpack.c.h.b16 %v1110
    %v1202 = vunpack.c.l.b16 %v1111
    %v1203 = vunpack.c.h.b16 %v1111
    %v1204 = vunpack.c.l.b16 %v1112
    %v1205 = vunpack.c.h.b16 %v1112
    %v1206 = vunpack.c.l.b16 %v1113
    %v1207 = vunpack.c.h.b16 %v1113
    %v1208 = vunpack.c.l.b16 %v1114
    %v1209 = vunpack.c.h.b16 %v1114
    %v1210 = vunpack.c.l.b16 %v1115
    %v1211 = vunpack.c.h.b16 %v1115
    %v1212 = vpack.c.b16 %v1152, %v1148
    %v1213 = vpack.c.b16 %v1153, %v1149
    %v1214 = vpack.c.b16 %v1154, %v1150
    %v1215 = vpack.c.b16 %v1155, %v1151
    %v1216 = vpack.c.b16 %v1160, %v1156
    %v1217 = vpack.c.b16 %v1161, %v1157
    %v1218 = vpack.c.b16 %v1162, %v1158
    %v1219 = vpack.c.b16 %v1163, %v1159
    %v1220 = vpack.c.b16 %v1168, %v1164
    %v1221 = vpack.c.b16 %v1169, %v1165
    %v1222 = vpack.c.b16 %v1170, %v1166
    %v1223 = vpack.c.b16 %v1171, %v1167
    %v1224 = vpack.c.b16 %v1176, %v1172
    %v1225 = vpack.c.b16 %v1177, %v1173
    %v1226 = vpack.c.b16 %v1178, %v1174
    %v1227 = vpack.c.b16 %v1179, %v1175
    %v1228 = vpack.c.b16 %v1184, %v1180
    %v1229 = vpack.c.b16 %v1185, %v1181
    %v1230 = vpack.c.b16 %v1186, %v1182
    %v1231 = vpack.c.b16 %v1187, %v1183
    %v1232 = vpack.c.b16 %v1192, %v1188
    %v1233 = vpack.c.b16 %v1193, %v1189
    %v1234 = vpack.c.b16 %v1194, %v1190
    %v1235 = vpack.c.b16 %v1195, %v1191
    %v1236 = vpack.c.b16 %v1200, %v1196
    %v1237 = vpack.c.b16 %v1201, %v1197
    %v1238 = vpack.c.b16 %v1202, %v1198
    %v1239 = vpack.c.b16 %v1203, %v1199
    %v1240 = vpack.c.b16 %v1208, %v1204
    %v1241 = vpack.c.b16 %v1209, %v1205
    %v1242 = vpack.c.b16 %v1210, %v1206
    %v1243 = vpack.c.b16 %v1211, %v1207
    %1276 = vmatprep.subr.bf16.mxu0 %v1213
    %1277 = vmatpush1.bf16.msra.mxu0 %v1212
    %1278 = vmatprep.subr.bf16.mxu0 %v1217
    %1279 = vmatpush1.bf16.msra.mxu0 %v1216
    %1280 = vmatprep.subr.bf16.mxu0 %v1221
    %1281 = vmatpush1.bf16.msra.mxu0 %v1220
    %1282 = vmatprep.subr.bf16.mxu0 %v1225
    %1283 = vmatpush1.bf16.msra.mxu0 %v1224
    %1284 = vmatprep.subr.bf16.mxu0 %v1229
    %1285 = vmatpush1.bf16.msra.mxu0 %v1228
    %1286 = vmatprep.subr.bf16.mxu0 %v1233
    %1287 = vmatpush1.bf16.msra.mxu0 %v1232
    %1288 = vmatprep.subr.bf16.mxu0 %v1237
    %1289 = vmatpush1.bf16.msra.mxu0 %v1236
    %1290 = vmatprep.subr.bf16.mxu0 %v1241
    %1291 = vmatpush1.bf16.msra.mxu0 %v1240
    %1292 = vmatprep.subr.bf16.mxu0 0
    %1293 = vmatpush1.bf16.msra.mxu0 0
    %1294 = vmatprep.subr.bf16.mxu0 0
    %1295 = vmatpush1.bf16.msra.mxu0 0
    %1296 = vmatprep.subr.bf16.mxu0 0
    %1297 = vmatpush1.bf16.msra.mxu0 0
    %1298 = vmatprep.subr.bf16.mxu0 0
    %1299 = vmatpush1.bf16.msra.mxu0 0
    %1300 = vmatprep.subr.bf16.mxu0 0
    %1301 = vmatpush1.bf16.msra.mxu0 0
    %1302 = vmatprep.subr.bf16.mxu0 0
    %1303 = vmatpush1.bf16.msra.mxu0 0
    %1304 = vmatprep.subr.bf16.mxu0 0
    %1305 = vmatpush1.bf16.msra.mxu0 0
    %1306 = vmatprep.subr.bf16.mxu0 0
    %1307 = vmatpush1.bf16.msra.mxu0 0
    %1308 = vmatprep.mubr.bf16.mxu0 0
    %1309 = vmatmul.mubr.bf16.gmra.mrb[0].mxu0 %v1083
    %v1310 = vpop.f32.mrb[0].mxu0
    %v1311 = vadd.f32 0.0, %v1310
    %v1312 = vpop.f32.mrb[0].mxu0
    %v1313 = vadd.f32 0.0, %v1312
    %v1314 = vpop.f32.mrb[0].mxu0
    %v1315 = vadd.f32 0.0, %v1314
    %v1316 = vpop.f32.mrb[0].mxu0
    %v1317 = vadd.f32 0.0, %v1316
    %1318 = vdwg.mxu0
    %1319 = vmatprep.subr.bf16.mxu0 %v1215
    %1320 = vmatpush1.bf16.msra.mxu0 %v1214
    %1321 = vmatprep.subr.bf16.mxu0 %v1219
    %1322 = vmatpush1.bf16.msra.mxu0 %v1218
    %1323 = vmatprep.subr.bf16.mxu0 %v1223
    %1324 = vmatpush1.bf16.msra.mxu0 %v1222
    %1325 = vmatprep.subr.bf16.mxu0 %v1227
    %1326 = vmatpush1.bf16.msra.mxu0 %v1226
    %1327 = vmatprep.subr.bf16.mxu0 %v1231
    %1328 = vmatpush1.bf16.msra.mxu0 %v1230
    %1329 = vmatprep.subr.bf16.mxu0 %v1235
    %1330 = vmatpush1.bf16.msra.mxu0 %v1234
    %1331 = vmatprep.subr.bf16.mxu0 %v1239
    %1332 = vmatpush1.bf16.msra.mxu0 %v1238
    %1333 = vmatprep.subr.bf16.mxu0 %v1243
    %1334 = vmatpush1.bf16.msra.mxu0 %v1242
    %1335 = vmatprep.subr.bf16.mxu0 0
    %1336 = vmatpush1.bf16.msra.mxu0 0
    %1337 = vmatprep.subr.bf16.mxu0 0
    %1338 = vmatpush1.bf16.msra.mxu0 0
    %1339 = vmatprep.subr.bf16.mxu0 0
    %1340 = vmatpush1.bf16.msra.mxu0 0
    %1341 = vmatprep.subr.bf16.mxu0 0
    %1342 = vmatpush1.bf16.msra.mxu0 0
    %1343 = vmatprep.subr.bf16.mxu0 0
    %1344 = vmatpush1.bf16.msra.mxu0 0
    %1345 = vmatprep.subr.bf16.mxu0 0
    %1346 = vmatpush1.bf16.msra.mxu0 0
    %1347 = vmatprep.subr.bf16.mxu0 0
    %1348 = vmatpush1.bf16.msra.mxu0 0
    %1349 = vmatprep.subr.bf16.mxu0 0
    %1350 = vmatpush1.bf16.msra.mxu0 0
    %1351 = vmatprep.mubr.bf16.mxu0 0
    %1352 = vmatmul.mubr.bf16.gmra.mrb[0].mxu0 %v1083
    %v1353 = vpop.f32.mrb[0].mxu0
    %v1354 = vadd.f32 0.0, %v1353
    %v1355 = vpop.f32.mrb[0].mxu0
    %v1356 = vadd.f32 0.0, %v1355
    %v1357 = vpop.f32.mrb[0].mxu0
    %v1358 = vadd.f32 0.0, %v1357
    %v1359 = vpop.f32.mrb[0].mxu0
    %v1360 = vadd.f32 0.0, %v1359
    %1361 = vdwg.mxu0
    %v1362 = vxor.u32 %v1311, 2147483648
    %v1363 = vxor.u32 %v1313, 2147483648
    %v1364 = vxor.u32 %v1315, 2147483648
    %v1365 = vxor.u32 %v1317, 2147483648
    %v1366 = vmul.f32 %v1362, 1.442695
    %v1367 = vpow.pop %v1366
    %v1368 = vmul.f32 %v1363, 1.442695
    %v1369 = vpow.pop %v1368
    %v1370 = vmul.f32 %v1364, 1.442695
    %v1371 = vpow.pop %v1370
    %v1372 = vmul.f32 %v1365, 1.442695
    %v1373 = vpow.pop %v1372
    %v1374 = vadd.f32 %v1367, 1.0
    %v1375 = vadd.f32 %v1369, 1.0
    %v1376 = vadd.f32 %v1371, 1.0
    %v1377 = vadd.f32 %v1373, 1.0
    %v1378 = vrcp.pop %v1374
    %v1379 = vmul.f32 1.0, %v1378
    %v1380 = vrcp.pop %v1375
    %v1381 = vmul.f32 1.0, %v1380
    %v1382 = vrcp.pop %v1376
    %v1383 = vmul.f32 1.0, %v1382
    %v1384 = vrcp.pop %v1377
    %v1385 = vmul.f32 1.0, %v1384
    %v1386 = vmul.f32 %v1311, %v1379
    %v1387 = vmul.f32 %v1313, %v1381
    %v1388 = vmul.f32 %v1315, %v1383
    %v1389 = vmul.f32 %v1317, %v1385
    %v1390 = vmul.f32 %v1386, %v1354
    %v1391 = vmul.f32 %v1387, %v1356
    %v1392 = vmul.f32 %v1388, %v1358
    %v1393 = vmul.f32 %v1389, %v1360
    %v1394 = vpack.c.bf16 %v1392, %v1390
    %v1395 = vpack.c.bf16 %v1393, %v1391
    %v1396 = vld [vmem:[%s12] sm:$0xf]
    %v1397 = vld [vmem:[%s12 + $0x4] sm:$0xf]
    %v1398 = vld [vmem:[%s12 + $0x8] sm:$0xf]
    %v1399 = vld [vmem:[%s12 + $0xc] sm:$0xf]
    %v1400 = vld [vmem:[%s12 + $0x10] sm:$0xf]
    %v1401 = vld [vmem:[%s12 + $0x14] sm:$0xf]
    %v1402 = vld [vmem:[%s12 + $0x18] sm:$0xf]
    %v1403 = vld [vmem:[%s12 + $0x1c] sm:$0xf]
    %v1404 = vld [vmem:[%s12 + $0x20] sm:$0xf]
    %v1405 = vld [vmem:[%s12 + $0x24] sm:$0xf]
    %v1406 = vld [vmem:[%s12 + $0x28] sm:$0xf]
    %v1407 = vld [vmem:[%s12 + $0x2c] sm:$0xf]
    %v1408 = vld [vmem:[%s12 + $0x30] sm:$0xf]
    %v1409 = vld [vmem:[%s12 + $0x34] sm:$0xf]
    %v1410 = vld [vmem:[%s12 + $0x38] sm:$0xf]
    %v1411 = vld [vmem:[%s12 + $0x3c] sm:$0xf]
    %v1412 = vld [vmem:[%s12 + $0x40] sm:$0xf]
    %v1413 = vld [vmem:[%s12 + $0x44] sm:$0xf]
    %v1414 = vld [vmem:[%s12 + $0x48] sm:$0xf]
    %v1415 = vld [vmem:[%s12 + $0x4c] sm:$0xf]
    %v1416 = vld [vmem:[%s12 + $0x50] sm:$0xf]
    %v1417 = vld [vmem:[%s12 + $0x54] sm:$0xf]
    %v1418 = vld [vmem:[%s12 + $0x58] sm:$0xf]
    %v1419 = vld [vmem:[%s12 + $0x5c] sm:$0xf]
    %v1420 = vld [vmem:[%s12 + $0x60] sm:$0xf]
    %v1421 = vld [vmem:[%s12 + $0x64] sm:$0xf]
    %v1422 = vld [vmem:[%s12 + $0x68] sm:$0xf]
    %v1423 = vld [vmem:[%s12 + $0x6c] sm:$0xf]
    %v1424 = vld [vmem:[%s12 + $0x70] sm:$0xf]
    %v1425 = vld [vmem:[%s12 + $0x74] sm:$0xf]
    %v1426 = vld [vmem:[%s12 + $0x78] sm:$0xf]
    %v1427 = vld [vmem:[%s12 + $0x7c] sm:$0xf]
    %v1460 = vunpack.c.l.b16 %v1396
    %v1461 = vunpack.c.l.b16 %v1397
    %v1462 = vunpack.c.l.b16 %v1398
    %v1463 = vunpack.c.l.b16 %v1399
    %v1464 = vunpack.c.l.b16 %v1400
    %v1465 = vunpack.c.l.b16 %v1401
    %v1466 = vunpack.c.l.b16 %v1402
    %v1467 = vunpack.c.l.b16 %v1403
    %v1468 = vunpack.c.l.b16 %v1404
    %v1469 = vunpack.c.l.b16 %v1405
    %v1470 = vunpack.c.l.b16 %v1406
    %v1471 = vunpack.c.l.b16 %v1407
    %v1472 = vunpack.c.l.b16 %v1408
    %v1473 = vunpack.c.l.b16 %v1409
    %v1474 = vunpack.c.l.b16 %v1410
    %v1475 = vunpack.c.l.b16 %v1411
    %v1476 = vunpack.c.l.b16 %v1412
    %v1477 = vunpack.c.l.b16 %v1413
    %v1478 = vunpack.c.l.b16 %v1414
    %v1479 = vunpack.c.l.b16 %v1415
    %v1480 = vunpack.c.l.b16 %v1416
    %v1481 = vunpack.c.l.b16 %v1417
    %v1482 = vunpack.c.l.b16 %v1418
    %v1483 = vunpack.c.l.b16 %v1419
    %v1484 = vunpack.c.l.b16 %v1420
    %v1485 = vunpack.c.l.b16 %v1421
    %v1486 = vunpack.c.l.b16 %v1422
    %v1487 = vunpack.c.l.b16 %v1423
    %v1488 = vunpack.c.l.b16 %v1424
    %v1489 = vunpack.c.l.b16 %v1425
    %v1490 = vunpack.c.l.b16 %v1426
    %v1491 = vunpack.c.l.b16 %v1427
    %v1492 = vpack.c.b16 %v1461, %v1460
    %v1493 = vpack.c.b16 %v1463, %v1462
    %v1494 = vpack.c.b16 %v1465, %v1464
    %v1495 = vpack.c.b16 %v1467, %v1466
    %v1496 = vpack.c.b16 %v1469, %v1468
    %v1497 = vpack.c.b16 %v1471, %v1470
    %v1498 = vpack.c.b16 %v1473, %v1472
    %v1499 = vpack.c.b16 %v1475, %v1474
    %v1500 = vpack.c.b16 %v1477, %v1476
    %v1501 = vpack.c.b16 %v1479, %v1478
    %v1502 = vpack.c.b16 %v1481, %v1480
    %v1503 = vpack.c.b16 %v1483, %v1482
    %v1504 = vpack.c.b16 %v1485, %v1484
    %v1505 = vpack.c.b16 %v1487, %v1486
    %v1506 = vpack.c.b16 %v1489, %v1488
    %v1507 = vpack.c.b16 %v1491, %v1490
    %1524 = vmatprep.subr.bf16.mxu0 0
    %1525 = vmatpush1.bf16.msra.mxu0 %v1492
    %1526 = vmatprep.subr.bf16.mxu0 0
    %1527 = vmatpush1.bf16.msra.mxu0 %v1493
    %1528 = vmatprep.subr.bf16.mxu0 0
    %1529 = vmatpush1.bf16.msra.mxu0 %v1494
    %1530 = vmatprep.subr.bf16.mxu0 0
    %1531 = vmatpush1.bf16.msra.mxu0 %v1495
    %1532 = vmatprep.subr.bf16.mxu0 0
    %1533 = vmatpush1.bf16.msra.mxu0 %v1496
    %1534 = vmatprep.subr.bf16.mxu0 0
    %1535 = vmatpush1.bf16.msra.mxu0 %v1497
    %1536 = vmatprep.subr.bf16.mxu0 0
    %1537 = vmatpush1.bf16.msra.mxu0 %v1498
    %1538 = vmatprep.subr.bf16.mxu0 0
    %1539 = vmatpush1.bf16.msra.mxu0 %v1499
    %1540 = vmatprep.subr.bf16.mxu0 0
    %1541 = vmatpush1.bf16.msra.mxu0 %v1500
    %1542 = vmatprep.subr.bf16.mxu0 0
    %1543 = vmatpush1.bf16.msra.mxu0 %v1501
    %1544 = vmatprep.subr.bf16.mxu0 0
    %1545 = vmatpush1.bf16.msra.mxu0 %v1502
    %1546 = vmatprep.subr.bf16.mxu0 0
    %1547 = vmatpush1.bf16.msra.mxu0 %v1503
    %1548 = vmatprep.subr.bf16.mxu0 0
    %1549 = vmatpush1.bf16.msra.mxu0 %v1504
    %1550 = vmatprep.subr.bf16.mxu0 0
    %1551 = vmatpush1.bf16.msra.mxu0 %v1505
    %1552 = vmatprep.subr.bf16.mxu0 0
    %1553 = vmatpush1.bf16.msra.mxu0 %v1506
    %1554 = vmatprep.subr.bf16.mxu0 0
    %1555 = vmatpush1.bf16.msra.mxu0 %v1507
    %1556 = vmatprep.mubr.bf16.mxu0 %v1395
    %1557 = vmatmul.mubr.bf16.gmra.mrb[0].mxu0 %v1394
    %v1558 = vpop.f32.mrb[0].mxu0
    %v1559 = vadd.f32 0.0, %v1558
    %v1560 = vpop.f32.mrb[0].mxu0
    %v1561 = vpop.f32.mrb[0].mxu0
    %v1562 = vadd.f32 0.0, %v1561
    %v1563 = vpop.f32.mrb[0].mxu0
    %1564 = vdwg.mxu0
    %v1565 = vadd.f32 %v1058, %v1559
    %v1566 = vadd.f32 %v1059, %v1562
    %s1567 = scalar_lea.vmem %s6, 1
    %v1568 = vld [vmem:[%s1567] sm:$0x1]
    %v1569 = vmul.f32 %v1565, %v1565
    %v1570 = vmul.f32 %v1566, %v1566
    %1571 = vadd.xlane.f32.xlu0 %v1569
    %v1572 = vpop.xlane.xlu0 %1571
    %1573 = vadd.xlane.f32.xlu0 %v1570
    %v1574 = vpop.xlane.xlu0 %1573
    %v1575 = vmul.f32 %v1572, %v63
    %v1576 = vmul.f32 %v1574, %v63
    %v1577 = vadd.f32 %v1575, 1e-06
    %v1578 = vadd.f32 %v1576, 1e-06
    %v1579 = vrsqrt.pop %v1577
    %v1580 = vrsqrt.pop %v1578
    %v1581 = vmul.f32 %v1565, %v1579
    %v1582 = vmul.f32 %v1566, %v1580
    %v1584 = vlaneseq
    %v1585 = vshrl.u32 %v1584, 7
    %v1586 = vsub.s32 0, %v1585
    %v1587 = vrot.slane %v1568, %v1586
    %v1589 = vmul.f32 %v1581, %v1587
    %v1590 = vmul.f32 %v1582, %v1587
    %v1591 = vpack.c.bf16 %v1590, %v1589
    %s1592 = scalar_lea.vmem %s7, 256
    %v1593 = vld [vmem:[%s1592] sm:$0xff]
    %v1594 = vld [vmem:[%s1592 + $0x8] sm:$0xff]
    %v1595 = vld [vmem:[%s1592 + $0x10] sm:$0xff]
    %v1596 = vld [vmem:[%s1592 + $0x18] sm:$0xff]
    %v1597 = vld [vmem:[%s1592 + $0x20] sm:$0xff]
    %v1598 = vld [vmem:[%s1592 + $0x28] sm:$0xff]
    %v1599 = vld [vmem:[%s1592 + $0x30] sm:$0xff]
    %v1600 = vld [vmem:[%s1592 + $0x38] sm:$0xff]
    %v1601 = vld [vmem:[%s1592 + $0x40] sm:$0xff]
    %v1602 = vld [vmem:[%s1592 + $0x48] sm:$0xff]
    %v1603 = vld [vmem:[%s1592 + $0x50] sm:$0xff]
    %v1604 = vld [vmem:[%s1592 + $0x58] sm:$0xff]
    %v1605 = vld [vmem:[%s1592 + $0x60] sm:$0xff]
    %v1606 = vld [vmem:[%s1592 + $0x68] sm:$0xff]
    %v1607 = vld [vmem:[%s1592 + $0x70] sm:$0xff]
    %v1608 = vld [vmem:[%s1592 + $0x78] sm:$0xff]
    %v1609 = vld [vmem:[%s1592 + $0x80] sm:$0xff]
    %v1610 = vld [vmem:[%s1592 + $0x88] sm:$0xff]
    %v1611 = vld [vmem:[%s1592 + $0x90] sm:$0xff]
    %v1612 = vld [vmem:[%s1592 + $0x98] sm:$0xff]
    %v1613 = vld [vmem:[%s1592 + $0xa0] sm:$0xff]
    %v1614 = vld [vmem:[%s1592 + $0xa8] sm:$0xff]
    %v1615 = vld [vmem:[%s1592 + $0xb0] sm:$0xff]
    %v1616 = vld [vmem:[%s1592 + $0xb8] sm:$0xff]
    %v1617 = vld [vmem:[%s1592 + $0xc0] sm:$0xff]
    %v1618 = vld [vmem:[%s1592 + $0xc8] sm:$0xff]
    %v1619 = vld [vmem:[%s1592 + $0xd0] sm:$0xff]
    %v1620 = vld [vmem:[%s1592 + $0xd8] sm:$0xff]
    %v1621 = vld [vmem:[%s1592 + $0xe0] sm:$0xff]
    %v1622 = vld [vmem:[%s1592 + $0xe8] sm:$0xff]
    %v1623 = vld [vmem:[%s1592 + $0xf0] sm:$0xff]
    %v1624 = vld [vmem:[%s1592 + $0xf8] sm:$0xff]
    %s1625 = scalar_lea.vmem %s8, 4
    %v1626 = vld [vmem:[%s1625] sm:$0xf]
    %v1628 = vlaneseq
    %v1629 = vshrl.u32 %v1628, 7
    %v1630 = vsub.s32 0, %v1629
    %v1631 = vrot.slane %v1626, %v1630
    %v1632 = vlaneseq
    %v1633 = vshrl.u32 %v1632, 7
    %v1634 = vsub.s32 1, %v1633
    %v1635 = vrot.slane %v1626, %v1634
    %v1636 = vlaneseq
    %v1637 = vshrl.u32 %v1636, 7
    %v1638 = vsub.s32 2, %v1637
    %v1639 = vrot.slane %v1626, %v1638
    %v1640 = vlaneseq
    %v1641 = vshrl.u32 %v1640, 7
    %v1642 = vsub.s32 3, %v1641
    %v1643 = vrot.slane %v1626, %v1642
    %v1680 = vunpack.c.l.b16 %v1593
    %v1681 = vunpack.c.h.b16 %v1593
    %v1682 = vunpack.c.l.b16 %v1594
    %v1683 = vunpack.c.h.b16 %v1594
    %v1684 = vunpack.c.l.b16 %v1595
    %v1685 = vunpack.c.h.b16 %v1595
    %v1686 = vunpack.c.l.b16 %v1596
    %v1687 = vunpack.c.h.b16 %v1596
    %v1688 = vunpack.c.l.b16 %v1597
    %v1689 = vunpack.c.h.b16 %v1597
    %v1690 = vunpack.c.l.b16 %v1598
    %v1691 = vunpack.c.h.b16 %v1598
    %v1692 = vunpack.c.l.b16 %v1599
    %v1693 = vunpack.c.h.b16 %v1599
    %v1694 = vunpack.c.l.b16 %v1600
    %v1695 = vunpack.c.h.b16 %v1600
    %v1696 = vunpack.c.l.b16 %v1601
    %v1697 = vunpack.c.h.b16 %v1601
    %v1698 = vunpack.c.l.b16 %v1602
    %v1699 = vunpack.c.h.b16 %v1602
    %v1700 = vunpack.c.l.b16 %v1603
    %v1701 = vunpack.c.h.b16 %v1603
    %v1702 = vunpack.c.l.b16 %v1604
    %v1703 = vunpack.c.h.b16 %v1604
    %v1704 = vunpack.c.l.b16 %v1605
    %v1705 = vunpack.c.h.b16 %v1605
    %v1706 = vunpack.c.l.b16 %v1606
    %v1707 = vunpack.c.h.b16 %v1606
    %v1708 = vunpack.c.l.b16 %v1607
    %v1709 = vunpack.c.h.b16 %v1607
    %v1710 = vunpack.c.l.b16 %v1608
    %v1711 = vunpack.c.h.b16 %v1608
    %v1712 = vunpack.c.l.b16 %v1609
    %v1713 = vunpack.c.h.b16 %v1609
    %v1714 = vunpack.c.l.b16 %v1610
    %v1715 = vunpack.c.h.b16 %v1610
    %v1716 = vunpack.c.l.b16 %v1611
    %v1717 = vunpack.c.h.b16 %v1611
    %v1718 = vunpack.c.l.b16 %v1612
    %v1719 = vunpack.c.h.b16 %v1612
    %v1720 = vunpack.c.l.b16 %v1613
    %v1721 = vunpack.c.h.b16 %v1613
    %v1722 = vunpack.c.l.b16 %v1614
    %v1723 = vunpack.c.h.b16 %v1614
    %v1724 = vunpack.c.l.b16 %v1615
    %v1725 = vunpack.c.h.b16 %v1615
    %v1726 = vunpack.c.l.b16 %v1616
    %v1727 = vunpack.c.h.b16 %v1616
    %v1728 = vunpack.c.l.b16 %v1617
    %v1729 = vunpack.c.h.b16 %v1617
    %v1730 = vunpack.c.l.b16 %v1618
    %v1731 = vunpack.c.h.b16 %v1618
    %v1732 = vunpack.c.l.b16 %v1619
    %v1733 = vunpack.c.h.b16 %v1619
    %v1734 = vunpack.c.l.b16 %v1620
    %v1735 = vunpack.c.h.b16 %v1620
    %v1736 = vunpack.c.l.b16 %v1621
    %v1737 = vunpack.c.h.b16 %v1621
    %v1738 = vunpack.c.l.b16 %v1622
    %v1739 = vunpack.c.h.b16 %v1622
    %v1740 = vunpack.c.l.b16 %v1623
    %v1741 = vunpack.c.h.b16 %v1623
    %v1742 = vunpack.c.l.b16 %v1624
    %v1743 = vunpack.c.h.b16 %v1624
    %v1744 = vpack.c.b16 %v1684, %v1680
    %v1745 = vpack.c.b16 %v1685, %v1681
    %v1746 = vpack.c.b16 %v1686, %v1682
    %v1747 = vpack.c.b16 %v1687, %v1683
    %v1748 = vpack.c.b16 %v1692, %v1688
    %v1749 = vpack.c.b16 %v1693, %v1689
    %v1750 = vpack.c.b16 %v1694, %v1690
    %v1751 = vpack.c.b16 %v1695, %v1691
    %v1752 = vpack.c.b16 %v1700, %v1696
    %v1753 = vpack.c.b16 %v1701, %v1697
    %v1754 = vpack.c.b16 %v1702, %v1698
    %v1755 = vpack.c.b16 %v1703, %v1699
    %v1756 = vpack.c.b16 %v1708, %v1704
    %v1757 = vpack.c.b16 %v1709, %v1705
    %v1758 = vpack.c.b16 %v1710, %v1706
    %v1759 = vpack.c.b16 %v1711, %v1707
    %v1760 = vpack.c.b16 %v1716, %v1712
    %v1761 = vpack.c.b16 %v1717, %v1713
    %v1762 = vpack.c.b16 %v1718, %v1714
    %v1763 = vpack.c.b16 %v1719, %v1715
    %v1764 = vpack.c.b16 %v1724, %v1720
    %v1765 = vpack.c.b16 %v1725, %v1721
    %v1766 = vpack.c.b16 %v1726, %v1722
    %v1767 = vpack.c.b16 %v1727, %v1723
    %v1768 = vpack.c.b16 %v1732, %v1728
    %v1769 = vpack.c.b16 %v1733, %v1729
    %v1770 = vpack.c.b16 %v1734, %v1730
    %v1771 = vpack.c.b16 %v1735, %v1731
    %v1772 = vpack.c.b16 %v1740, %v1736
    %v1773 = vpack.c.b16 %v1741, %v1737
    %v1774 = vpack.c.b16 %v1742, %v1738
    %v1775 = vpack.c.b16 %v1743, %v1739
    %1808 = vmatprep.subr.bf16.mxu0 %v1745
    %1809 = vmatpush1.bf16.msra.mxu0 %v1744
    %1810 = vmatprep.subr.bf16.mxu0 %v1749
    %1811 = vmatpush1.bf16.msra.mxu0 %v1748
    %1812 = vmatprep.subr.bf16.mxu0 %v1753
    %1813 = vmatpush1.bf16.msra.mxu0 %v1752
    %1814 = vmatprep.subr.bf16.mxu0 %v1757
    %1815 = vmatpush1.bf16.msra.mxu0 %v1756
    %1816 = vmatprep.subr.bf16.mxu0 %v1761
    %1817 = vmatpush1.bf16.msra.mxu0 %v1760
    %1818 = vmatprep.subr.bf16.mxu0 %v1765
    %1819 = vmatpush1.bf16.msra.mxu0 %v1764
    %1820 = vmatprep.subr.bf16.mxu0 %v1769
    %1821 = vmatpush1.bf16.msra.mxu0 %v1768
    %1822 = vmatprep.subr.bf16.mxu0 %v1773
    %1823 = vmatpush1.bf16.msra.mxu0 %v1772
    %1824 = vmatprep.subr.bf16.mxu0 0
    %1825 = vmatpush1.bf16.msra.mxu0 0
    %1826 = vmatprep.subr.bf16.mxu0 0
    %1827 = vmatpush1.bf16.msra.mxu0 0
    %1828 = vmatprep.subr.bf16.mxu0 0
    %1829 = vmatpush1.bf16.msra.mxu0 0
    %1830 = vmatprep.subr.bf16.mxu0 0
    %1831 = vmatpush1.bf16.msra.mxu0 0
    %1832 = vmatprep.subr.bf16.mxu0 0
    %1833 = vmatpush1.bf16.msra.mxu0 0
    %1834 = vmatprep.subr.bf16.mxu0 0
    %1835 = vmatpush1.bf16.msra.mxu0 0
    %1836 = vmatprep.subr.bf16.mxu0 0
    %1837 = vmatpush1.bf16.msra.mxu0 0
    %1838 = vmatprep.subr.bf16.mxu0 0
    %1839 = vmatpush1.bf16.msra.mxu0 0
    %1840 = vmatprep.mubr.bf16.mxu0 0
    %1841 = vmatmul.mubr.bf16.gmra.mrb[0].mxu0 %v1591
    %v1842 = vpop.f32.mrb[0].mxu0
    %v1843 = vadd.f32 %v1631, %v1842
    %v1844 = vpop.f32.mrb[0].mxu0
    %v1845 = vadd.f32 %v1635, %v1844
    %v1846 = vpop.f32.mrb[0].mxu0
    %v1847 = vadd.f32 %v1631, %v1846
    %v1848 = vpop.f32.mrb[0].mxu0
    %v1849 = vadd.f32 %v1635, %v1848
    %1850 = vdwg.mxu0
    %1851 = vmatprep.subr.bf16.mxu0 %v1747
    %1852 = vmatpush1.bf16.msra.mxu0 %v1746
    %1853 = vmatprep.subr.bf16.mxu0 %v1751
    %1854 = vmatpush1.bf16.msra.mxu0 %v1750
    %1855 = vmatprep.subr.bf16.mxu0 %v1755
    %1856 = vmatpush1.bf16.msra.mxu0 %v1754
    %1857 = vmatprep.subr.bf16.mxu0 %v1759
    %1858 = vmatpush1.bf16.msra.mxu0 %v1758
    %1859 = vmatprep.subr.bf16.mxu0 %v1763
    %1860 = vmatpush1.bf16.msra.mxu0 %v1762
    %1861 = vmatprep.subr.bf16.mxu0 %v1767
    %1862 = vmatpush1.bf16.msra.mxu0 %v1766
    %1863 = vmatprep.subr.bf16.mxu0 %v1771
    %1864 = vmatpush1.bf16.msra.mxu0 %v1770
    %1865 = vmatprep.subr.bf16.mxu0 %v1775
    %1866 = vmatpush1.bf16.msra.mxu0 %v1774
    %1867 = vmatprep.subr.bf16.mxu0 0
    %1868 = vmatpush1.bf16.msra.mxu0 0
    %1869 = vmatprep.subr.bf16.mxu0 0
    %1870 = vmatpush1.bf16.msra.mxu0 0
    %1871 = vmatprep.subr.bf16.mxu0 0
    %1872 = vmatpush1.bf16.msra.mxu0 0
    %1873 = vmatprep.subr.bf16.mxu0 0
    %1874 = vmatpush1.bf16.msra.mxu0 0
    %1875 = vmatprep.subr.bf16.mxu0 0
    %1876 = vmatpush1.bf16.msra.mxu0 0
    %1877 = vmatprep.subr.bf16.mxu0 0
    %1878 = vmatpush1.bf16.msra.mxu0 0
    %1879 = vmatprep.subr.bf16.mxu0 0
    %1880 = vmatpush1.bf16.msra.mxu0 0
    %1881 = vmatprep.subr.bf16.mxu0 0
    %1882 = vmatpush1.bf16.msra.mxu0 0
    %1883 = vmatprep.mubr.bf16.mxu0 0
    %1884 = vmatmul.mubr.bf16.gmra.mrb[0].mxu0 %v1591
    %v1885 = vpop.f32.mrb[0].mxu0
    %v1886 = vadd.f32 %v1639, %v1885
    %v1887 = vpop.f32.mrb[0].mxu0
    %v1888 = vadd.f32 %v1643, %v1887
    %v1889 = vpop.f32.mrb[0].mxu0
    %v1890 = vadd.f32 %v1639, %v1889
    %v1891 = vpop.f32.mrb[0].mxu0
    %v1892 = vadd.f32 %v1643, %v1891
    %1893 = vdwg.mxu0
    %v1894 = vmul.f32 %v1843, %v46
    %v1895 = vmul.f32 %v1847, %v47
    %v1896 = vmul.f32 %v1886, %v48
    %v1897 = vmul.f32 %v1890, %v49
    %v1898 = vadd.f32 %v1894, %v1896
    %v1899 = vadd.f32 %v1895, %v1897
    %v1900 = vpack.c.bf16 %v1899, %v1898
    %v1901 = vmul.f32 %v1845, %v50
    %v1902 = vmul.f32 %v1849, %v51
    %v1903 = vmul.f32 %v1888, %v52
    %v1904 = vmul.f32 %v1892, %v53
    %v1905 = vadd.f32 %v1901, %v1903
    %v1906 = vadd.f32 %v1902, %v1904
    %v1907 = vpack.c.bf16 %v1906, %v1905
    %v1908 = vpack.c.bf16 %v1849, %v1845
    %v1910 = vrot.slane %v1900, 4
    %1911 = vrot.lane.b32.xlu0 %v1910, 96
    %v1912 = vpop.permute.xlu0 %1911
    %v1915 = vsel %vm402, %v1900, %v1912
    %v1916 = vsel %vm406, %v1915, 0
    %v1919 = vsel %vm406, %v1907, 0
    %1921 = vmatprep.subr.bf16.mxu0 0
    %1922 = vmatpush1.bf16.xpose.msra.mxu0 %v1919
    %1923 = vmatprep.subr.bf16.mxu0 0
    %1924 = vmatpush1.bf16.xpose.msra.mxu0 0
    %1925 = vmatprep.subr.bf16.mxu0 0
    %1926 = vmatpush1.bf16.xpose.msra.mxu0 0
    %1927 = vmatprep.subr.bf16.mxu0 0
    %1928 = vmatpush1.bf16.xpose.msra.mxu0 0
    %1929 = vmatprep.subr.bf16.mxu0 0
    %1930 = vmatpush1.bf16.xpose.msra.mxu0 0
    %1931 = vmatprep.subr.bf16.mxu0 0
    %1932 = vmatpush1.bf16.xpose.msra.mxu0 0
    %1933 = vmatprep.subr.bf16.mxu0 0
    %1934 = vmatpush1.bf16.xpose.msra.mxu0 0
    %1935 = vmatprep.subr.bf16.mxu0 0
    %1936 = vmatpush1.bf16.xpose.msra.mxu0 0
    %1937 = vmatprep.subr.bf16.mxu0 0
    %1938 = vmatpush1.bf16.xpose.msra.mxu0 0
    %1939 = vmatprep.subr.bf16.mxu0 0
    %1940 = vmatpush1.bf16.xpose.msra.mxu0 0
    %1941 = vmatprep.subr.bf16.mxu0 0
    %1942 = vmatpush1.bf16.xpose.msra.mxu0 0
    %1943 = vmatprep.subr.bf16.mxu0 0
    %1944 = vmatpush1.bf16.xpose.msra.mxu0 0
    %1945 = vmatprep.subr.bf16.mxu0 0
    %1946 = vmatpush1.bf16.xpose.msra.mxu0 0
    %1947 = vmatprep.subr.bf16.mxu0 0
    %1948 = vmatpush1.bf16.xpose.msra.mxu0 0
    %1949 = vmatprep.subr.bf16.mxu0 0
    %1950 = vmatpush1.bf16.xpose.msra.mxu0 0
    %1951 = vmatprep.subr.bf16.mxu0 0
    %1952 = vmatpush1.bf16.xpose.msra.mxu0 0
    %1953 = vmatprep.mubr.bf16.mxu0 0
    %1954 = vmatmul.mubr.bf16.gmra.mrb[0].mxu0 %v1916
    %v1955 = vpop.f32.mrb[0].mxu0
    %v1956 = vadd.f32 0.0, %v1955
    %v1957 = vpop.f32.mrb[0].mxu0
    %v1958 = vpop.f32.mrb[0].mxu0
    %v1959 = vadd.f32 0.0, %v1958
    %v1960 = vpop.f32.mrb[0].mxu0
    %1961 = vdwg.mxu0
    %v1962 = vmul.f32 %v1956, 0.17677669
    %v1963 = vmul.f32 %v1959, 0.17677669
    %v1964 = vadd.f32 %v1962, %v396
    %v1965 = vadd.f32 %v1963, %v397
    %v1966 = vsel %vm457, %v1964, -inf
    %1967 = vmax.xlane.f32.xlu0 %v1966
    %v1968 = vpop.xlane.xlu0 %1967
    %v1969 = vsel %vm457, %v1965, -inf
    %1970 = vmax.xlane.f32.xlu0 %v1969
    %v1971 = vpop.xlane.xlu0 %1970
    %v1972 = vsub.f32 %v1964, %v1968
    %v1973 = vsub.f32 %v1965, %v1971
    %v1974 = vmul.f32 %v1972, 1.442695
    %v1975 = vpow.pop %v1974
    %v1976 = vmul.f32 %v1973, 1.442695
    %v1977 = vpow.pop %v1976
    %v1978 = vsel %vm457, %v1975, 0.0
    %1979 = vadd.xlane.f32.xlu0 %v1978
    %v1980 = vpop.xlane.xlu0 %1979
    %v1981 = vsel %vm457, %v1977, 0.0
    %1982 = vadd.xlane.f32.xlu0 %v1981
    %v1983 = vpop.xlane.xlu0 %1982
    %v1984 = vrcp.pop %v1980
    %v1985 = vrcp.pop %v1983
    %v1986 = vmul.f32 %v1975, %v1984
    %v1987 = vmul.f32 %v1977, %v1985
    %v1988 = vpack.c.bf16 %v1987, %v1986
    %1990 = vrot.lane.b32.xlu0 %v1908, 64
    %v1991 = vpop.permute.xlu0 %1990
    %v1993 = vsel %vm457, %v1988, 0
    %v1996 = vsel %vm402, %v1991, 0
    %1998 = vmatprep.subr.bf16.mxu0 0
    %1999 = vmatpush1.bf16.msra.mxu0 %v1996
    %2000 = vmatprep.subr.bf16.mxu0 0
    %2001 = vmatpush1.bf16.msra.mxu0 0
    %2002 = vmatprep.subr.bf16.mxu0 0
    %2003 = vmatpush1.bf16.msra.mxu0 0
    %2004 = vmatprep.subr.bf16.mxu0 0
    %2005 = vmatpush1.bf16.msra.mxu0 0
    %2006 = vmatprep.subr.bf16.mxu0 0
    %2007 = vmatpush1.bf16.msra.mxu0 0
    %2008 = vmatprep.subr.bf16.mxu0 0
    %2009 = vmatpush1.bf16.msra.mxu0 0
    %2010 = vmatprep.subr.bf16.mxu0 0
    %2011 = vmatpush1.bf16.msra.mxu0 0
    %2012 = vmatprep.subr.bf16.mxu0 0
    %2013 = vmatpush1.bf16.msra.mxu0 0
    %2014 = vmatprep.subr.bf16.mxu0 0
    %2015 = vmatpush1.bf16.msra.mxu0 0
    %2016 = vmatprep.subr.bf16.mxu0 0
    %2017 = vmatpush1.bf16.msra.mxu0 0
    %2018 = vmatprep.subr.bf16.mxu0 0
    %2019 = vmatpush1.bf16.msra.mxu0 0
    %2020 = vmatprep.subr.bf16.mxu0 0
    %2021 = vmatpush1.bf16.msra.mxu0 0
    %2022 = vmatprep.subr.bf16.mxu0 0
    %2023 = vmatpush1.bf16.msra.mxu0 0
    %2024 = vmatprep.subr.bf16.mxu0 0
    %2025 = vmatpush1.bf16.msra.mxu0 0
    %2026 = vmatprep.subr.bf16.mxu0 0
    %2027 = vmatpush1.bf16.msra.mxu0 0
    %2028 = vmatprep.subr.bf16.mxu0 0
    %2029 = vmatpush1.bf16.msra.mxu0 0
    %2030 = vmatprep.mubr.bf16.mxu0 0
    %2031 = vmatmul.mubr.bf16.gmra.mrb[0].mxu0 %v1993
    %v2032 = vpop.f32.mrb[0].mxu0
    %v2033 = vadd.f32 0.0, %v2032
    %v2034 = vpop.f32.mrb[0].mxu0
    %v2035 = vpop.f32.mrb[0].mxu0
    %v2036 = vadd.f32 0.0, %v2035
    %v2037 = vpop.f32.mrb[0].mxu0
    %2038 = vdwg.mxu0
    %2040 = vrot.lane.b32.xlu0 %v1915, 64
    %v2041 = vpop.permute.xlu0 %2040
    %2043 = vrot.lane.b32.xlu0 %v1907, 96
    %v2044 = vpop.permute.xlu0 %2043
    %v2046 = vsel %vm406, %v2041, 0
    %v2049 = vsel %vm406, %v2044, 0
    %2051 = vmatprep.subr.bf16.mxu0 0
    %2052 = vmatpush1.bf16.xpose.msra.mxu0 %v2049
    %2053 = vmatprep.subr.bf16.mxu0 0
    %2054 = vmatpush1.bf16.xpose.msra.mxu0 0
    %2055 = vmatprep.subr.bf16.mxu0 0
    %2056 = vmatpush1.bf16.xpose.msra.mxu0 0
    %2057 = vmatprep.subr.bf16.mxu0 0
    %2058 = vmatpush1.bf16.xpose.msra.mxu0 0
    %2059 = vmatprep.subr.bf16.mxu0 0
    %2060 = vmatpush1.bf16.xpose.msra.mxu0 0
    %2061 = vmatprep.subr.bf16.mxu0 0
    %2062 = vmatpush1.bf16.xpose.msra.mxu0 0
    %2063 = vmatprep.subr.bf16.mxu0 0
    %2064 = vmatpush1.bf16.xpose.msra.mxu0 0
    %2065 = vmatprep.subr.bf16.mxu0 0
    %2066 = vmatpush1.bf16.xpose.msra.mxu0 0
    %2067 = vmatprep.subr.bf16.mxu0 0
    %2068 = vmatpush1.bf16.xpose.msra.mxu0 0
    %2069 = vmatprep.subr.bf16.mxu0 0
    %2070 = vmatpush1.bf16.xpose.msra.mxu0 0
    %2071 = vmatprep.subr.bf16.mxu0 0
    %2072 = vmatpush1.bf16.xpose.msra.mxu0 0
    %2073 = vmatprep.subr.bf16.mxu0 0
    %2074 = vmatpush1.bf16.xpose.msra.mxu0 0
    %2075 = vmatprep.subr.bf16.mxu0 0
    %2076 = vmatpush1.bf16.xpose.msra.mxu0 0
    %2077 = vmatprep.subr.bf16.mxu0 0
    %2078 = vmatpush1.bf16.xpose.msra.mxu0 0
    %2079 = vmatprep.subr.bf16.mxu0 0
    %2080 = vmatpush1.bf16.xpose.msra.mxu0 0
    %2081 = vmatprep.subr.bf16.mxu0 0
    %2082 = vmatpush1.bf16.xpose.msra.mxu0 0
    %2083 = vmatprep.mubr.bf16.mxu0 0
    %2084 = vmatmul.mubr.bf16.gmra.mrb[0].mxu0 %v2046
    %v2085 = vpop.f32.mrb[0].mxu0
    %v2086 = vadd.f32 0.0, %v2085
    %v2087 = vpop.f32.mrb[0].mxu0
    %v2088 = vpop.f32.mrb[0].mxu0
    %v2089 = vadd.f32 0.0, %v2088
    %v2090 = vpop.f32.mrb[0].mxu0
    %2091 = vdwg.mxu0
    %v2092 = vmul.f32 %v2086, 0.17677669
    %v2093 = vmul.f32 %v2089, 0.17677669
    %v2094 = vadd.f32 %v2092, %v396
    %v2095 = vadd.f32 %v2093, %v397
    %v2096 = vsel %vm457, %v2094, -inf
    %2097 = vmax.xlane.f32.xlu0 %v2096
    %v2098 = vpop.xlane.xlu0 %2097
    %v2099 = vsel %vm457, %v2095, -inf
    %2100 = vmax.xlane.f32.xlu0 %v2099
    %v2101 = vpop.xlane.xlu0 %2100
    %v2102 = vsub.f32 %v2094, %v2098
    %v2103 = vsub.f32 %v2095, %v2101
    %v2104 = vmul.f32 %v2102, 1.442695
    %v2105 = vpow.pop %v2104
    %v2106 = vmul.f32 %v2103, 1.442695
    %v2107 = vpow.pop %v2106
    %v2108 = vsel %vm457, %v2105, 0.0
    %2109 = vadd.xlane.f32.xlu0 %v2108
    %v2110 = vpop.xlane.xlu0 %2109
    %v2111 = vsel %vm457, %v2107, 0.0
    %2112 = vadd.xlane.f32.xlu0 %v2111
    %v2113 = vpop.xlane.xlu0 %2112
    %v2114 = vrcp.pop %v2110
    %v2115 = vrcp.pop %v2113
    %v2116 = vmul.f32 %v2105, %v2114
    %v2117 = vmul.f32 %v2107, %v2115
    %v2118 = vpack.c.bf16 %v2117, %v2116
    %2119 = vrot.lane.b32.xlu0 %v1908, 32
    %v2120 = vpop.permute.xlu0 %2119
    %v2122 = vsel %vm457, %v2118, 0
    %v2125 = vsel %vm402, %v2120, 0
    %2127 = vmatprep.subr.bf16.mxu0 0
    %2128 = vmatpush1.bf16.msra.mxu0 %v2125
    %2129 = vmatprep.subr.bf16.mxu0 0
    %2130 = vmatpush1.bf16.msra.mxu0 0
    %2131 = vmatprep.subr.bf16.mxu0 0
    %2132 = vmatpush1.bf16.msra.mxu0 0
    %2133 = vmatprep.subr.bf16.mxu0 0
    %2134 = vmatpush1.bf16.msra.mxu0 0
    %2135 = vmatprep.subr.bf16.mxu0 0
    %2136 = vmatpush1.bf16.msra.mxu0 0
    %2137 = vmatprep.subr.bf16.mxu0 0
    %2138 = vmatpush1.bf16.msra.mxu0 0
    %2139 = vmatprep.subr.bf16.mxu0 0
    %2140 = vmatpush1.bf16.msra.mxu0 0
    %2141 = vmatprep.subr.bf16.mxu0 0
    %2142 = vmatpush1.bf16.msra.mxu0 0
    %2143 = vmatprep.subr.bf16.mxu0 0
    %2144 = vmatpush1.bf16.msra.mxu0 0
    %2145 = vmatprep.subr.bf16.mxu0 0
    %2146 = vmatpush1.bf16.msra.mxu0 0
    %2147 = vmatprep.subr.bf16.mxu0 0
    %2148 = vmatpush1.bf16.msra.mxu0 0
    %2149 = vmatprep.subr.bf16.mxu0 0
    %2150 = vmatpush1.bf16.msra.mxu0 0
    %2151 = vmatprep.subr.bf16.mxu0 0
    %2152 = vmatpush1.bf16.msra.mxu0 0
    %2153 = vmatprep.subr.bf16.mxu0 0
    %2154 = vmatpush1.bf16.msra.mxu0 0
    %2155 = vmatprep.subr.bf16.mxu0 0
    %2156 = vmatpush1.bf16.msra.mxu0 0
    %2157 = vmatprep.subr.bf16.mxu0 0
    %2158 = vmatpush1.bf16.msra.mxu0 0
    %2159 = vmatprep.mubr.bf16.mxu0 0
    %2160 = vmatmul.mubr.bf16.gmra.mrb[0].mxu0 %v2122
    %v2161 = vpop.f32.mrb[0].mxu0
    %v2162 = vadd.f32 0.0, %v2161
    %v2163 = vpop.f32.mrb[0].mxu0
    %v2164 = vpop.f32.mrb[0].mxu0
    %v2165 = vadd.f32 0.0, %v2164
    %v2166 = vpop.f32.mrb[0].mxu0
    %2167 = vdwg.mxu0
    %2169 = vrot.lane.b32.xlu0 %v2036, 32
    %v2170 = vpop.permute.xlu0 %2169
    %2173 = vrot.lane.b32.xlu0 %v2162, 64
    %v2174 = vpop.permute.xlu0 %2173
    %2177 = vrot.lane.b32.xlu0 %v2165, 96
    %v2178 = vpop.permute.xlu0 %2177
    %v2180 = vsel %vm406, %v2033, %v2170
    %v2181 = vsel %vm673, %v2180, %v2174
    %v2182 = vsel %vm675, %v2181, %v2178
    %2183 = vrot.lane.b32.xlu0 %v1900, 96
    %v2184 = vpop.permute.xlu0 %2183
    %v2187 = vsel %vm402, %v1910, %v2184
    %v2188 = vrot.slane %v1907, 4
    %v2189 = vsel %vm406, %v2187, 0
    %v2192 = vsel %vm406, %v2188, 0
    %2194 = vmatprep.subr.bf16.mxu0 0
    %2195 = vmatpush1.bf16.xpose.msra.mxu0 %v2192
    %2196 = vmatprep.subr.bf16.mxu0 0
    %2197 = vmatpush1.bf16.xpose.msra.mxu0 0
    %2198 = vmatprep.subr.bf16.mxu0 0
    %2199 = vmatpush1.bf16.xpose.msra.mxu0 0
    %2200 = vmatprep.subr.bf16.mxu0 0
    %2201 = vmatpush1.bf16.xpose.msra.mxu0 0
    %2202 = vmatprep.subr.bf16.mxu0 0
    %2203 = vmatpush1.bf16.xpose.msra.mxu0 0
    %2204 = vmatprep.subr.bf16.mxu0 0
    %2205 = vmatpush1.bf16.xpose.msra.mxu0 0
    %2206 = vmatprep.subr.bf16.mxu0 0
    %2207 = vmatpush1.bf16.xpose.msra.mxu0 0
    %2208 = vmatprep.subr.bf16.mxu0 0
    %2209 = vmatpush1.bf16.xpose.msra.mxu0 0
    %2210 = vmatprep.subr.bf16.mxu0 0
    %2211 = vmatpush1.bf16.xpose.msra.mxu0 0
    %2212 = vmatprep.subr.bf16.mxu0 0
    %2213 = vmatpush1.bf16.xpose.msra.mxu0 0
    %2214 = vmatprep.subr.bf16.mxu0 0
    %2215 = vmatpush1.bf16.xpose.msra.mxu0 0
    %2216 = vmatprep.subr.bf16.mxu0 0
    %2217 = vmatpush1.bf16.xpose.msra.mxu0 0
    %2218 = vmatprep.subr.bf16.mxu0 0
    %2219 = vmatpush1.bf16.xpose.msra.mxu0 0
    %2220 = vmatprep.subr.bf16.mxu0 0
    %2221 = vmatpush1.bf16.xpose.msra.mxu0 0
    %2222 = vmatprep.subr.bf16.mxu0 0
    %2223 = vmatpush1.bf16.xpose.msra.mxu0 0
    %2224 = vmatprep.subr.bf16.mxu0 0
    %2225 = vmatpush1.bf16.xpose.msra.mxu0 0
    %2226 = vmatprep.mubr.bf16.mxu0 0
    %2227 = vmatmul.mubr.bf16.gmra.mrb[0].mxu0 %v2189
    %v2228 = vpop.f32.mrb[0].mxu0
    %v2229 = vadd.f32 0.0, %v2228
    %v2230 = vpop.f32.mrb[0].mxu0
    %v2231 = vpop.f32.mrb[0].mxu0
    %v2232 = vadd.f32 0.0, %v2231
    %v2233 = vpop.f32.mrb[0].mxu0
    %2234 = vdwg.mxu0
    %v2235 = vmul.f32 %v2229, 0.17677669
    %v2236 = vmul.f32 %v2232, 0.17677669
    %v2237 = vadd.f32 %v2235, %v678
    %v2238 = vadd.f32 %v2236, %v679
    %v2239 = vsel %vm457, %v2237, -inf
    %2240 = vmax.xlane.f32.xlu0 %v2239
    %v2241 = vpop.xlane.xlu0 %2240
    %v2242 = vsel %vm457, %v2238, -inf
    %2243 = vmax.xlane.f32.xlu0 %v2242
    %v2244 = vpop.xlane.xlu0 %2243
    %v2245 = vsub.f32 %v2237, %v2241
    %v2246 = vsub.f32 %v2238, %v2244
    %v2247 = vmul.f32 %v2245, 1.442695
    %v2248 = vpow.pop %v2247
    %v2249 = vmul.f32 %v2246, 1.442695
    %v2250 = vpow.pop %v2249
    %v2251 = vsel %vm457, %v2248, 0.0
    %2252 = vadd.xlane.f32.xlu0 %v2251
    %v2253 = vpop.xlane.xlu0 %2252
    %v2254 = vsel %vm457, %v2250, 0.0
    %2255 = vadd.xlane.f32.xlu0 %v2254
    %v2256 = vpop.xlane.xlu0 %2255
    %v2257 = vrcp.pop %v2253
    %v2258 = vrcp.pop %v2256
    %v2259 = vmul.f32 %v2248, %v2257
    %v2260 = vmul.f32 %v2250, %v2258
    %v2261 = vpack.c.bf16 %v2260, %v2259
    %v2262 = vrot.slane %v1908, 4
    %2263 = vrot.lane.b32.xlu0 %v2262, 64
    %v2264 = vpop.permute.xlu0 %2263
    %v2266 = vsel %vm457, %v2261, 0
    %v2269 = vsel %vm402, %v2264, 0
    %2271 = vmatprep.subr.bf16.mxu0 0
    %2272 = vmatpush1.bf16.msra.mxu0 %v2269
    %2273 = vmatprep.subr.bf16.mxu0 0
    %2274 = vmatpush1.bf16.msra.mxu0 0
    %2275 = vmatprep.subr.bf16.mxu0 0
    %2276 = vmatpush1.bf16.msra.mxu0 0
    %2277 = vmatprep.subr.bf16.mxu0 0
    %2278 = vmatpush1.bf16.msra.mxu0 0
    %2279 = vmatprep.subr.bf16.mxu0 0
    %2280 = vmatpush1.bf16.msra.mxu0 0
    %2281 = vmatprep.subr.bf16.mxu0 0
    %2282 = vmatpush1.bf16.msra.mxu0 0
    %2283 = vmatprep.subr.bf16.mxu0 0
    %2284 = vmatpush1.bf16.msra.mxu0 0
    %2285 = vmatprep.subr.bf16.mxu0 0
    %2286 = vmatpush1.bf16.msra.mxu0 0
    %2287 = vmatprep.subr.bf16.mxu0 0
    %2288 = vmatpush1.bf16.msra.mxu0 0
    %2289 = vmatprep.subr.bf16.mxu0 0
    %2290 = vmatpush1.bf16.msra.mxu0 0
    %2291 = vmatprep.subr.bf16.mxu0 0
    %2292 = vmatpush1.bf16.msra.mxu0 0
    %2293 = vmatprep.subr.bf16.mxu0 0
    %2294 = vmatpush1.bf16.msra.mxu0 0
    %2295 = vmatprep.subr.bf16.mxu0 0
    %2296 = vmatpush1.bf16.msra.mxu0 0
    %2297 = vmatprep.subr.bf16.mxu0 0
    %2298 = vmatpush1.bf16.msra.mxu0 0
    %2299 = vmatprep.subr.bf16.mxu0 0
    %2300 = vmatpush1.bf16.msra.mxu0 0
    %2301 = vmatprep.subr.bf16.mxu0 0
    %2302 = vmatpush1.bf16.msra.mxu0 0
    %2303 = vmatprep.mubr.bf16.mxu0 0
    %2304 = vmatmul.mubr.bf16.gmra.mrb[0].mxu0 %v2266
    %v2305 = vpop.f32.mrb[0].mxu0
    %v2306 = vadd.f32 0.0, %v2305
    %v2307 = vpop.f32.mrb[0].mxu0
    %v2308 = vpop.f32.mrb[0].mxu0
    %v2309 = vadd.f32 0.0, %v2308
    %v2310 = vpop.f32.mrb[0].mxu0
    %2311 = vdwg.mxu0
    %2313 = vrot.lane.b32.xlu0 %v2187, 64
    %v2314 = vpop.permute.xlu0 %2313
    %2315 = vrot.lane.b32.xlu0 %v2188, 96
    %v2316 = vpop.permute.xlu0 %2315
    %v2318 = vsel %vm406, %v2314, 0
    %v2321 = vsel %vm406, %v2316, 0
    %2323 = vmatprep.subr.bf16.mxu0 0
    %2324 = vmatpush1.bf16.xpose.msra.mxu0 %v2321
    %2325 = vmatprep.subr.bf16.mxu0 0
    %2326 = vmatpush1.bf16.xpose.msra.mxu0 0
    %2327 = vmatprep.subr.bf16.mxu0 0
    %2328 = vmatpush1.bf16.xpose.msra.mxu0 0
    %2329 = vmatprep.subr.bf16.mxu0 0
    %2330 = vmatpush1.bf16.xpose.msra.mxu0 0
    %2331 = vmatprep.subr.bf16.mxu0 0
    %2332 = vmatpush1.bf16.xpose.msra.mxu0 0
    %2333 = vmatprep.subr.bf16.mxu0 0
    %2334 = vmatpush1.bf16.xpose.msra.mxu0 0
    %2335 = vmatprep.subr.bf16.mxu0 0
    %2336 = vmatpush1.bf16.xpose.msra.mxu0 0
    %2337 = vmatprep.subr.bf16.mxu0 0
    %2338 = vmatpush1.bf16.xpose.msra.mxu0 0
    %2339 = vmatprep.subr.bf16.mxu0 0
    %2340 = vmatpush1.bf16.xpose.msra.mxu0 0
    %2341 = vmatprep.subr.bf16.mxu0 0
    %2342 = vmatpush1.bf16.xpose.msra.mxu0 0
    %2343 = vmatprep.subr.bf16.mxu0 0
    %2344 = vmatpush1.bf16.xpose.msra.mxu0 0
    %2345 = vmatprep.subr.bf16.mxu0 0
    %2346 = vmatpush1.bf16.xpose.msra.mxu0 0
    %2347 = vmatprep.subr.bf16.mxu0 0
    %2348 = vmatpush1.bf16.xpose.msra.mxu0 0
    %2349 = vmatprep.subr.bf16.mxu0 0
    %2350 = vmatpush1.bf16.xpose.msra.mxu0 0
    %2351 = vmatprep.subr.bf16.mxu0 0
    %2352 = vmatpush1.bf16.xpose.msra.mxu0 0
    %2353 = vmatprep.subr.bf16.mxu0 0
    %2354 = vmatpush1.bf16.xpose.msra.mxu0 0
    %2355 = vmatprep.mubr.bf16.mxu0 0
    %2356 = vmatmul.mubr.bf16.gmra.mrb[0].mxu0 %v2318
    %v2357 = vpop.f32.mrb[0].mxu0
    %v2358 = vadd.f32 0.0, %v2357
    %v2359 = vpop.f32.mrb[0].mxu0
    %v2360 = vpop.f32.mrb[0].mxu0
    %v2361 = vadd.f32 0.0, %v2360
    %v2362 = vpop.f32.mrb[0].mxu0
    %2363 = vdwg.mxu0
    %v2364 = vmul.f32 %v2358, 0.17677669
    %v2365 = vmul.f32 %v2361, 0.17677669
    %v2366 = vadd.f32 %v2364, %v678
    %v2367 = vadd.f32 %v2365, %v679
    %v2368 = vsel %vm457, %v2366, -inf
    %2369 = vmax.xlane.f32.xlu0 %v2368
    %v2370 = vpop.xlane.xlu0 %2369
    %v2371 = vsel %vm457, %v2367, -inf
    %2372 = vmax.xlane.f32.xlu0 %v2371
    %v2373 = vpop.xlane.xlu0 %2372
    %v2374 = vsub.f32 %v2366, %v2370
    %v2375 = vsub.f32 %v2367, %v2373
    %v2376 = vmul.f32 %v2374, 1.442695
    %v2377 = vpow.pop %v2376
    %v2378 = vmul.f32 %v2375, 1.442695
    %v2379 = vpow.pop %v2378
    %v2380 = vsel %vm457, %v2377, 0.0
    %2381 = vadd.xlane.f32.xlu0 %v2380
    %v2382 = vpop.xlane.xlu0 %2381
    %v2383 = vsel %vm457, %v2379, 0.0
    %2384 = vadd.xlane.f32.xlu0 %v2383
    %v2385 = vpop.xlane.xlu0 %2384
    %v2386 = vrcp.pop %v2382
    %v2387 = vrcp.pop %v2385
    %v2388 = vmul.f32 %v2377, %v2386
    %v2389 = vmul.f32 %v2379, %v2387
    %v2390 = vpack.c.bf16 %v2389, %v2388
    %2391 = vrot.lane.b32.xlu0 %v2262, 32
    %v2392 = vpop.permute.xlu0 %2391
    %v2394 = vsel %vm457, %v2390, 0
    %v2397 = vsel %vm402, %v2392, 0
    %2399 = vmatprep.subr.bf16.mxu0 0
    %2400 = vmatpush1.bf16.msra.mxu0 %v2397
    %2401 = vmatprep.subr.bf16.mxu0 0
    %2402 = vmatpush1.bf16.msra.mxu0 0
    %2403 = vmatprep.subr.bf16.mxu0 0
    %2404 = vmatpush1.bf16.msra.mxu0 0
    %2405 = vmatprep.subr.bf16.mxu0 0
    %2406 = vmatpush1.bf16.msra.mxu0 0
    %2407 = vmatprep.subr.bf16.mxu0 0
    %2408 = vmatpush1.bf16.msra.mxu0 0
    %2409 = vmatprep.subr.bf16.mxu0 0
    %2410 = vmatpush1.bf16.msra.mxu0 0
    %2411 = vmatprep.subr.bf16.mxu0 0
    %2412 = vmatpush1.bf16.msra.mxu0 0
    %2413 = vmatprep.subr.bf16.mxu0 0
    %2414 = vmatpush1.bf16.msra.mxu0 0
    %2415 = vmatprep.subr.bf16.mxu0 0
    %2416 = vmatpush1.bf16.msra.mxu0 0
    %2417 = vmatprep.subr.bf16.mxu0 0
    %2418 = vmatpush1.bf16.msra.mxu0 0
    %2419 = vmatprep.subr.bf16.mxu0 0
    %2420 = vmatpush1.bf16.msra.mxu0 0
    %2421 = vmatprep.subr.bf16.mxu0 0
    %2422 = vmatpush1.bf16.msra.mxu0 0
    %2423 = vmatprep.subr.bf16.mxu0 0
    %2424 = vmatpush1.bf16.msra.mxu0 0
    %2425 = vmatprep.subr.bf16.mxu0 0
    %2426 = vmatpush1.bf16.msra.mxu0 0
    %2427 = vmatprep.subr.bf16.mxu0 0
    %2428 = vmatpush1.bf16.msra.mxu0 0
    %2429 = vmatprep.subr.bf16.mxu0 0
    %2430 = vmatpush1.bf16.msra.mxu0 0
    %2431 = vmatprep.mubr.bf16.mxu0 0
    %2432 = vmatmul.mubr.bf16.gmra.mrb[0].mxu0 %v2394
    %v2433 = vpop.f32.mrb[0].mxu0
    %v2434 = vadd.f32 0.0, %v2433
    %v2435 = vpop.f32.mrb[0].mxu0
    %v2436 = vpop.f32.mrb[0].mxu0
    %v2437 = vadd.f32 0.0, %v2436
    %v2438 = vpop.f32.mrb[0].mxu0
    %2439 = vdwg.mxu0
    %2441 = vrot.lane.b32.xlu0 %v2309, 32
    %v2442 = vpop.permute.xlu0 %2441
    %2445 = vrot.lane.b32.xlu0 %v2434, 64
    %v2446 = vpop.permute.xlu0 %2445
    %2449 = vrot.lane.b32.xlu0 %v2437, 96
    %v2450 = vpop.permute.xlu0 %2449
    %v2452 = vsel %vm406, %v2306, %v2442
    %v2453 = vsel %vm673, %v2452, %v2446
    %v2454 = vsel %vm675, %v2453, %v2450
    %v2455 = vpack.c.bf16 %v2454, %v2182
    %s2456 = scalar_lea.vmem %s9, 64
    %v2457 = vld [vmem:[%s2456] sm:$0xf]
    %v2458 = vld [vmem:[%s2456 + $0x4] sm:$0xf]
    %v2459 = vld [vmem:[%s2456 + $0x8] sm:$0xf]
    %v2460 = vld [vmem:[%s2456 + $0xc] sm:$0xf]
    %v2461 = vld [vmem:[%s2456 + $0x10] sm:$0xf]
    %v2462 = vld [vmem:[%s2456 + $0x14] sm:$0xf]
    %v2463 = vld [vmem:[%s2456 + $0x18] sm:$0xf]
    %v2464 = vld [vmem:[%s2456 + $0x1c] sm:$0xf]
    %v2465 = vld [vmem:[%s2456 + $0x20] sm:$0xf]
    %v2466 = vld [vmem:[%s2456 + $0x24] sm:$0xf]
    %v2467 = vld [vmem:[%s2456 + $0x28] sm:$0xf]
    %v2468 = vld [vmem:[%s2456 + $0x2c] sm:$0xf]
    %v2469 = vld [vmem:[%s2456 + $0x30] sm:$0xf]
    %v2470 = vld [vmem:[%s2456 + $0x34] sm:$0xf]
    %v2471 = vld [vmem:[%s2456 + $0x38] sm:$0xf]
    %v2472 = vld [vmem:[%s2456 + $0x3c] sm:$0xf]
    %v2489 = vunpack.c.l.b16 %v2457
    %v2490 = vunpack.c.l.b16 %v2458
    %v2491 = vunpack.c.l.b16 %v2459
    %v2492 = vunpack.c.l.b16 %v2460
    %v2493 = vunpack.c.l.b16 %v2461
    %v2494 = vunpack.c.l.b16 %v2462
    %v2495 = vunpack.c.l.b16 %v2463
    %v2496 = vunpack.c.l.b16 %v2464
    %v2497 = vunpack.c.l.b16 %v2465
    %v2498 = vunpack.c.l.b16 %v2466
    %v2499 = vunpack.c.l.b16 %v2467
    %v2500 = vunpack.c.l.b16 %v2468
    %v2501 = vunpack.c.l.b16 %v2469
    %v2502 = vunpack.c.l.b16 %v2470
    %v2503 = vunpack.c.l.b16 %v2471
    %v2504 = vunpack.c.l.b16 %v2472
    %v2505 = vpack.c.b16 %v2490, %v2489
    %v2506 = vpack.c.b16 %v2492, %v2491
    %v2507 = vpack.c.b16 %v2494, %v2493
    %v2508 = vpack.c.b16 %v2496, %v2495
    %v2509 = vpack.c.b16 %v2498, %v2497
    %v2510 = vpack.c.b16 %v2500, %v2499
    %v2511 = vpack.c.b16 %v2502, %v2501
    %v2512 = vpack.c.b16 %v2504, %v2503
    %2521 = vmatprep.subr.bf16.mxu0 0
    %2522 = vmatpush1.bf16.msra.mxu0 %v2505
    %2523 = vmatprep.subr.bf16.mxu0 0
    %2524 = vmatpush1.bf16.msra.mxu0 %v2506
    %2525 = vmatprep.subr.bf16.mxu0 0
    %2526 = vmatpush1.bf16.msra.mxu0 %v2507
    %2527 = vmatprep.subr.bf16.mxu0 0
    %2528 = vmatpush1.bf16.msra.mxu0 %v2508
    %2529 = vmatprep.subr.bf16.mxu0 0
    %2530 = vmatpush1.bf16.msra.mxu0 %v2509
    %2531 = vmatprep.subr.bf16.mxu0 0
    %2532 = vmatpush1.bf16.msra.mxu0 %v2510
    %2533 = vmatprep.subr.bf16.mxu0 0
    %2534 = vmatpush1.bf16.msra.mxu0 %v2511
    %2535 = vmatprep.subr.bf16.mxu0 0
    %2536 = vmatpush1.bf16.msra.mxu0 %v2512
    %2537 = vmatprep.subr.bf16.mxu0 0
    %2538 = vmatpush1.bf16.msra.mxu0 0
    %2539 = vmatprep.subr.bf16.mxu0 0
    %2540 = vmatpush1.bf16.msra.mxu0 0
    %2541 = vmatprep.subr.bf16.mxu0 0
    %2542 = vmatpush1.bf16.msra.mxu0 0
    %2543 = vmatprep.subr.bf16.mxu0 0
    %2544 = vmatpush1.bf16.msra.mxu0 0
    %2545 = vmatprep.subr.bf16.mxu0 0
    %2546 = vmatpush1.bf16.msra.mxu0 0
    %2547 = vmatprep.subr.bf16.mxu0 0
    %2548 = vmatpush1.bf16.msra.mxu0 0
    %2549 = vmatprep.subr.bf16.mxu0 0
    %2550 = vmatpush1.bf16.msra.mxu0 0
    %2551 = vmatprep.subr.bf16.mxu0 0
    %2552 = vmatpush1.bf16.msra.mxu0 0
    %2553 = vmatprep.mubr.bf16.mxu0 0
    %2554 = vmatmul.mubr.bf16.gmra.mrb[0].mxu0 %v2455
    %v2555 = vpop.f32.mrb[0].mxu0
    %v2556 = vadd.f32 0.0, %v2555
    %v2557 = vpop.f32.mrb[0].mxu0
    %v2558 = vpop.f32.mrb[0].mxu0
    %v2559 = vadd.f32 0.0, %v2558
    %v2560 = vpop.f32.mrb[0].mxu0
    %2561 = vdwg.mxu0
    %v2562 = vadd.f32 %v1565, %v2556
    %v2563 = vadd.f32 %v1566, %v2559
    %s2564 = scalar_lea.vmem %s10, 1
    %v2565 = vld [vmem:[%s2564] sm:$0x1]
    %v2566 = vmul.f32 %v2562, %v2562
    %v2567 = vmul.f32 %v2563, %v2563
    %2568 = vadd.xlane.f32.xlu0 %v2566
    %v2569 = vpop.xlane.xlu0 %2568
    %2570 = vadd.xlane.f32.xlu0 %v2567
    %v2571 = vpop.xlane.xlu0 %2570
    %v2572 = vmul.f32 %v2569, %v63
    %v2573 = vmul.f32 %v2571, %v63
    %v2574 = vadd.f32 %v2572, 1e-06
    %v2575 = vadd.f32 %v2573, 1e-06
    %v2576 = vrsqrt.pop %v2574
    %v2577 = vrsqrt.pop %v2575
    %v2578 = vmul.f32 %v2562, %v2576
    %v2579 = vmul.f32 %v2563, %v2577
    %v2581 = vlaneseq
    %v2582 = vshrl.u32 %v2581, 7
    %v2583 = vsub.s32 0, %v2582
    %v2584 = vrot.slane %v2565, %v2583
    %v2586 = vmul.f32 %v2578, %v2584
    %v2587 = vmul.f32 %v2579, %v2584
    %v2588 = vpack.c.bf16 %v2587, %v2586
    %s2589 = scalar_lea.vmem %s11, 256
    %v2590 = vld [vmem:[%s2589] sm:$0xff]
    %v2591 = vld [vmem:[%s2589 + $0x8] sm:$0xff]
    %v2592 = vld [vmem:[%s2589 + $0x10] sm:$0xff]
    %v2593 = vld [vmem:[%s2589 + $0x18] sm:$0xff]
    %v2594 = vld [vmem:[%s2589 + $0x20] sm:$0xff]
    %v2595 = vld [vmem:[%s2589 + $0x28] sm:$0xff]
    %v2596 = vld [vmem:[%s2589 + $0x30] sm:$0xff]
    %v2597 = vld [vmem:[%s2589 + $0x38] sm:$0xff]
    %v2598 = vld [vmem:[%s2589 + $0x40] sm:$0xff]
    %v2599 = vld [vmem:[%s2589 + $0x48] sm:$0xff]
    %v2600 = vld [vmem:[%s2589 + $0x50] sm:$0xff]
    %v2601 = vld [vmem:[%s2589 + $0x58] sm:$0xff]
    %v2602 = vld [vmem:[%s2589 + $0x60] sm:$0xff]
    %v2603 = vld [vmem:[%s2589 + $0x68] sm:$0xff]
    %v2604 = vld [vmem:[%s2589 + $0x70] sm:$0xff]
    %v2605 = vld [vmem:[%s2589 + $0x78] sm:$0xff]
    %v2606 = vld [vmem:[%s2589 + $0x80] sm:$0xff]
    %v2607 = vld [vmem:[%s2589 + $0x88] sm:$0xff]
    %v2608 = vld [vmem:[%s2589 + $0x90] sm:$0xff]
    %v2609 = vld [vmem:[%s2589 + $0x98] sm:$0xff]
    %v2610 = vld [vmem:[%s2589 + $0xa0] sm:$0xff]
    %v2611 = vld [vmem:[%s2589 + $0xa8] sm:$0xff]
    %v2612 = vld [vmem:[%s2589 + $0xb0] sm:$0xff]
    %v2613 = vld [vmem:[%s2589 + $0xb8] sm:$0xff]
    %v2614 = vld [vmem:[%s2589 + $0xc0] sm:$0xff]
    %v2615 = vld [vmem:[%s2589 + $0xc8] sm:$0xff]
    %v2616 = vld [vmem:[%s2589 + $0xd0] sm:$0xff]
    %v2617 = vld [vmem:[%s2589 + $0xd8] sm:$0xff]
    %v2618 = vld [vmem:[%s2589 + $0xe0] sm:$0xff]
    %v2619 = vld [vmem:[%s2589 + $0xe8] sm:$0xff]
    %v2620 = vld [vmem:[%s2589 + $0xf0] sm:$0xff]
    %v2621 = vld [vmem:[%s2589 + $0xf8] sm:$0xff]
    %v2654 = vunpack.c.l.b16 %v2590
    %v2655 = vunpack.c.h.b16 %v2590
    %v2656 = vunpack.c.l.b16 %v2591
    %v2657 = vunpack.c.h.b16 %v2591
    %v2658 = vunpack.c.l.b16 %v2592
    %v2659 = vunpack.c.h.b16 %v2592
    %v2660 = vunpack.c.l.b16 %v2593
    %v2661 = vunpack.c.h.b16 %v2593
    %v2662 = vunpack.c.l.b16 %v2594
    %v2663 = vunpack.c.h.b16 %v2594
    %v2664 = vunpack.c.l.b16 %v2595
    %v2665 = vunpack.c.h.b16 %v2595
    %v2666 = vunpack.c.l.b16 %v2596
    %v2667 = vunpack.c.h.b16 %v2596
    %v2668 = vunpack.c.l.b16 %v2597
    %v2669 = vunpack.c.h.b16 %v2597
    %v2670 = vunpack.c.l.b16 %v2598
    %v2671 = vunpack.c.h.b16 %v2598
    %v2672 = vunpack.c.l.b16 %v2599
    %v2673 = vunpack.c.h.b16 %v2599
    %v2674 = vunpack.c.l.b16 %v2600
    %v2675 = vunpack.c.h.b16 %v2600
    %v2676 = vunpack.c.l.b16 %v2601
    %v2677 = vunpack.c.h.b16 %v2601
    %v2678 = vunpack.c.l.b16 %v2602
    %v2679 = vunpack.c.h.b16 %v2602
    %v2680 = vunpack.c.l.b16 %v2603
    %v2681 = vunpack.c.h.b16 %v2603
    %v2682 = vunpack.c.l.b16 %v2604
    %v2683 = vunpack.c.h.b16 %v2604
    %v2684 = vunpack.c.l.b16 %v2605
    %v2685 = vunpack.c.h.b16 %v2605
    %v2686 = vunpack.c.l.b16 %v2606
    %v2687 = vunpack.c.h.b16 %v2606
    %v2688 = vunpack.c.l.b16 %v2607
    %v2689 = vunpack.c.h.b16 %v2607
    %v2690 = vunpack.c.l.b16 %v2608
    %v2691 = vunpack.c.h.b16 %v2608
    %v2692 = vunpack.c.l.b16 %v2609
    %v2693 = vunpack.c.h.b16 %v2609
    %v2694 = vunpack.c.l.b16 %v2610
    %v2695 = vunpack.c.h.b16 %v2610
    %v2696 = vunpack.c.l.b16 %v2611
    %v2697 = vunpack.c.h.b16 %v2611
    %v2698 = vunpack.c.l.b16 %v2612
    %v2699 = vunpack.c.h.b16 %v2612
    %v2700 = vunpack.c.l.b16 %v2613
    %v2701 = vunpack.c.h.b16 %v2613
    %v2702 = vunpack.c.l.b16 %v2614
    %v2703 = vunpack.c.h.b16 %v2614
    %v2704 = vunpack.c.l.b16 %v2615
    %v2705 = vunpack.c.h.b16 %v2615
    %v2706 = vunpack.c.l.b16 %v2616
    %v2707 = vunpack.c.h.b16 %v2616
    %v2708 = vunpack.c.l.b16 %v2617
    %v2709 = vunpack.c.h.b16 %v2617
    %v2710 = vunpack.c.l.b16 %v2618
    %v2711 = vunpack.c.h.b16 %v2618
    %v2712 = vunpack.c.l.b16 %v2619
    %v2713 = vunpack.c.h.b16 %v2619
    %v2714 = vunpack.c.l.b16 %v2620
    %v2715 = vunpack.c.h.b16 %v2620
    %v2716 = vunpack.c.l.b16 %v2621
    %v2717 = vunpack.c.h.b16 %v2621
    %v2718 = vpack.c.b16 %v2658, %v2654
    %v2719 = vpack.c.b16 %v2659, %v2655
    %v2720 = vpack.c.b16 %v2660, %v2656
    %v2721 = vpack.c.b16 %v2661, %v2657
    %v2722 = vpack.c.b16 %v2666, %v2662
    %v2723 = vpack.c.b16 %v2667, %v2663
    %v2724 = vpack.c.b16 %v2668, %v2664
    %v2725 = vpack.c.b16 %v2669, %v2665
    %v2726 = vpack.c.b16 %v2674, %v2670
    %v2727 = vpack.c.b16 %v2675, %v2671
    %v2728 = vpack.c.b16 %v2676, %v2672
    %v2729 = vpack.c.b16 %v2677, %v2673
    %v2730 = vpack.c.b16 %v2682, %v2678
    %v2731 = vpack.c.b16 %v2683, %v2679
    %v2732 = vpack.c.b16 %v2684, %v2680
    %v2733 = vpack.c.b16 %v2685, %v2681
    %v2734 = vpack.c.b16 %v2690, %v2686
    %v2735 = vpack.c.b16 %v2691, %v2687
    %v2736 = vpack.c.b16 %v2692, %v2688
    %v2737 = vpack.c.b16 %v2693, %v2689
    %v2738 = vpack.c.b16 %v2698, %v2694
    %v2739 = vpack.c.b16 %v2699, %v2695
    %v2740 = vpack.c.b16 %v2700, %v2696
    %v2741 = vpack.c.b16 %v2701, %v2697
    %v2742 = vpack.c.b16 %v2706, %v2702
    %v2743 = vpack.c.b16 %v2707, %v2703
    %v2744 = vpack.c.b16 %v2708, %v2704
    %v2745 = vpack.c.b16 %v2709, %v2705
    %v2746 = vpack.c.b16 %v2714, %v2710
    %v2747 = vpack.c.b16 %v2715, %v2711
    %v2748 = vpack.c.b16 %v2716, %v2712
    %v2749 = vpack.c.b16 %v2717, %v2713
    %2782 = vmatprep.subr.bf16.mxu0 %v2719
    %2783 = vmatpush1.bf16.msra.mxu0 %v2718
    %2784 = vmatprep.subr.bf16.mxu0 %v2723
    %2785 = vmatpush1.bf16.msra.mxu0 %v2722
    %2786 = vmatprep.subr.bf16.mxu0 %v2727
    %2787 = vmatpush1.bf16.msra.mxu0 %v2726
    %2788 = vmatprep.subr.bf16.mxu0 %v2731
    %2789 = vmatpush1.bf16.msra.mxu0 %v2730
    %2790 = vmatprep.subr.bf16.mxu0 %v2735
    %2791 = vmatpush1.bf16.msra.mxu0 %v2734
    %2792 = vmatprep.subr.bf16.mxu0 %v2739
    %2793 = vmatpush1.bf16.msra.mxu0 %v2738
    %2794 = vmatprep.subr.bf16.mxu0 %v2743
    %2795 = vmatpush1.bf16.msra.mxu0 %v2742
    %2796 = vmatprep.subr.bf16.mxu0 %v2747
    %2797 = vmatpush1.bf16.msra.mxu0 %v2746
    %2798 = vmatprep.subr.bf16.mxu0 0
    %2799 = vmatpush1.bf16.msra.mxu0 0
    %2800 = vmatprep.subr.bf16.mxu0 0
    %2801 = vmatpush1.bf16.msra.mxu0 0
    %2802 = vmatprep.subr.bf16.mxu0 0
    %2803 = vmatpush1.bf16.msra.mxu0 0
    %2804 = vmatprep.subr.bf16.mxu0 0
    %2805 = vmatpush1.bf16.msra.mxu0 0
    %2806 = vmatprep.subr.bf16.mxu0 0
    %2807 = vmatpush1.bf16.msra.mxu0 0
    %2808 = vmatprep.subr.bf16.mxu0 0
    %2809 = vmatpush1.bf16.msra.mxu0 0
    %2810 = vmatprep.subr.bf16.mxu0 0
    %2811 = vmatpush1.bf16.msra.mxu0 0
    %2812 = vmatprep.subr.bf16.mxu0 0
    %2813 = vmatpush1.bf16.msra.mxu0 0
    %2814 = vmatprep.mubr.bf16.mxu0 0
    %2815 = vmatmul.mubr.bf16.gmra.mrb[0].mxu0 %v2588
    %v2816 = vpop.f32.mrb[0].mxu0
    %v2817 = vadd.f32 0.0, %v2816
    %v2818 = vpop.f32.mrb[0].mxu0
    %v2819 = vadd.f32 0.0, %v2818
    %v2820 = vpop.f32.mrb[0].mxu0
    %v2821 = vadd.f32 0.0, %v2820
    %v2822 = vpop.f32.mrb[0].mxu0
    %v2823 = vadd.f32 0.0, %v2822
    %2824 = vdwg.mxu0
    %2825 = vmatprep.subr.bf16.mxu0 %v2721
    %2826 = vmatpush1.bf16.msra.mxu0 %v2720
    %2827 = vmatprep.subr.bf16.mxu0 %v2725
    %2828 = vmatpush1.bf16.msra.mxu0 %v2724
    %2829 = vmatprep.subr.bf16.mxu0 %v2729
    %2830 = vmatpush1.bf16.msra.mxu0 %v2728
    %2831 = vmatprep.subr.bf16.mxu0 %v2733
    %2832 = vmatpush1.bf16.msra.mxu0 %v2732
    %2833 = vmatprep.subr.bf16.mxu0 %v2737
    %2834 = vmatpush1.bf16.msra.mxu0 %v2736
    %2835 = vmatprep.subr.bf16.mxu0 %v2741
    %2836 = vmatpush1.bf16.msra.mxu0 %v2740
    %2837 = vmatprep.subr.bf16.mxu0 %v2745
    %2838 = vmatpush1.bf16.msra.mxu0 %v2744
    %2839 = vmatprep.subr.bf16.mxu0 %v2749
    %2840 = vmatpush1.bf16.msra.mxu0 %v2748
    %2841 = vmatprep.subr.bf16.mxu0 0
    %2842 = vmatpush1.bf16.msra.mxu0 0
    %2843 = vmatprep.subr.bf16.mxu0 0
    %2844 = vmatpush1.bf16.msra.mxu0 0
    %2845 = vmatprep.subr.bf16.mxu0 0
    %2846 = vmatpush1.bf16.msra.mxu0 0
    %2847 = vmatprep.subr.bf16.mxu0 0
    %2848 = vmatpush1.bf16.msra.mxu0 0
    %2849 = vmatprep.subr.bf16.mxu0 0
    %2850 = vmatpush1.bf16.msra.mxu0 0
    %2851 = vmatprep.subr.bf16.mxu0 0
    %2852 = vmatpush1.bf16.msra.mxu0 0
    %2853 = vmatprep.subr.bf16.mxu0 0
    %2854 = vmatpush1.bf16.msra.mxu0 0
    %2855 = vmatprep.subr.bf16.mxu0 0
    %2856 = vmatpush1.bf16.msra.mxu0 0
    %2857 = vmatprep.mubr.bf16.mxu0 0
    %2858 = vmatmul.mubr.bf16.gmra.mrb[0].mxu0 %v2588
    %v2859 = vpop.f32.mrb[0].mxu0
    %v2860 = vadd.f32 0.0, %v2859
    %v2861 = vpop.f32.mrb[0].mxu0
    %v2862 = vadd.f32 0.0, %v2861
    %v2863 = vpop.f32.mrb[0].mxu0
    %v2864 = vadd.f32 0.0, %v2863
    %v2865 = vpop.f32.mrb[0].mxu0
    %v2866 = vadd.f32 0.0, %v2865
    %2867 = vdwg.mxu0
    %v2868 = vxor.u32 %v2817, 2147483648
    %v2869 = vxor.u32 %v2819, 2147483648
    %v2870 = vxor.u32 %v2821, 2147483648
    %v2871 = vxor.u32 %v2823, 2147483648
    %v2872 = vmul.f32 %v2868, 1.442695
    %v2873 = vpow.pop %v2872
    %v2874 = vmul.f32 %v2869, 1.442695
    %v2875 = vpow.pop %v2874
    %v2876 = vmul.f32 %v2870, 1.442695
    %v2877 = vpow.pop %v2876
    %v2878 = vmul.f32 %v2871, 1.442695
    %v2879 = vpow.pop %v2878
    %v2880 = vadd.f32 %v2873, 1.0
    %v2881 = vadd.f32 %v2875, 1.0
    %v2882 = vadd.f32 %v2877, 1.0
    %v2883 = vadd.f32 %v2879, 1.0
    %v2884 = vrcp.pop %v2880
    %v2885 = vmul.f32 1.0, %v2884
    %v2886 = vrcp.pop %v2881
    %v2887 = vmul.f32 1.0, %v2886
    %v2888 = vrcp.pop %v2882
    %v2889 = vmul.f32 1.0, %v2888
    %v2890 = vrcp.pop %v2883
    %v2891 = vmul.f32 1.0, %v2890
    %v2892 = vmul.f32 %v2817, %v2885
    %v2893 = vmul.f32 %v2819, %v2887
    %v2894 = vmul.f32 %v2821, %v2889
    %v2895 = vmul.f32 %v2823, %v2891
    %v2896 = vmul.f32 %v2892, %v2860
    %v2897 = vmul.f32 %v2893, %v2862
    %v2898 = vmul.f32 %v2894, %v2864
    %v2899 = vmul.f32 %v2895, %v2866
    %v2900 = vpack.c.bf16 %v2898, %v2896
    %v2901 = vpack.c.bf16 %v2899, %v2897
    %s2902 = scalar_lea.vmem %s12, 128
    %v2903 = vld [vmem:[%s2902] sm:$0xf]
    %v2904 = vld [vmem:[%s2902 + $0x4] sm:$0xf]
    %v2905 = vld [vmem:[%s2902 + $0x8] sm:$0xf]
    %v2906 = vld [vmem:[%s2902 + $0xc] sm:$0xf]
    %v2907 = vld [vmem:[%s2902 + $0x10] sm:$0xf]
    %v2908 = vld [vmem:[%s2902 + $0x14] sm:$0xf]
    %v2909 = vld [vmem:[%s2902 + $0x18] sm:$0xf]
    %v2910 = vld [vmem:[%s2902 + $0x1c] sm:$0xf]
    %v2911 = vld [vmem:[%s2902 + $0x20] sm:$0xf]
    %v2912 = vld [vmem:[%s2902 + $0x24] sm:$0xf]
    %v2913 = vld [vmem:[%s2902 + $0x28] sm:$0xf]
    %v2914 = vld [vmem:[%s2902 + $0x2c] sm:$0xf]
    %v2915 = vld [vmem:[%s2902 + $0x30] sm:$0xf]
    %v2916 = vld [vmem:[%s2902 + $0x34] sm:$0xf]
    %v2917 = vld [vmem:[%s2902 + $0x38] sm:$0xf]
    %v2918 = vld [vmem:[%s2902 + $0x3c] sm:$0xf]
    %v2919 = vld [vmem:[%s2902 + $0x40] sm:$0xf]
    %v2920 = vld [vmem:[%s2902 + $0x44] sm:$0xf]
    %v2921 = vld [vmem:[%s2902 + $0x48] sm:$0xf]
    %v2922 = vld [vmem:[%s2902 + $0x4c] sm:$0xf]
    %v2923 = vld [vmem:[%s2902 + $0x50] sm:$0xf]
    %v2924 = vld [vmem:[%s2902 + $0x54] sm:$0xf]
    %v2925 = vld [vmem:[%s2902 + $0x58] sm:$0xf]
    %v2926 = vld [vmem:[%s2902 + $0x5c] sm:$0xf]
    %v2927 = vld [vmem:[%s2902 + $0x60] sm:$0xf]
    %v2928 = vld [vmem:[%s2902 + $0x64] sm:$0xf]
    %v2929 = vld [vmem:[%s2902 + $0x68] sm:$0xf]
    %v2930 = vld [vmem:[%s2902 + $0x6c] sm:$0xf]
    %v2931 = vld [vmem:[%s2902 + $0x70] sm:$0xf]
    %v2932 = vld [vmem:[%s2902 + $0x74] sm:$0xf]
    %v2933 = vld [vmem:[%s2902 + $0x78] sm:$0xf]
    %v2934 = vld [vmem:[%s2902 + $0x7c] sm:$0xf]
    %v2967 = vunpack.c.l.b16 %v2903
    %v2968 = vunpack.c.l.b16 %v2904
    %v2969 = vunpack.c.l.b16 %v2905
    %v2970 = vunpack.c.l.b16 %v2906
    %v2971 = vunpack.c.l.b16 %v2907
    %v2972 = vunpack.c.l.b16 %v2908
    %v2973 = vunpack.c.l.b16 %v2909
    %v2974 = vunpack.c.l.b16 %v2910
    %v2975 = vunpack.c.l.b16 %v2911
    %v2976 = vunpack.c.l.b16 %v2912
    %v2977 = vunpack.c.l.b16 %v2913
    %v2978 = vunpack.c.l.b16 %v2914
    %v2979 = vunpack.c.l.b16 %v2915
    %v2980 = vunpack.c.l.b16 %v2916
    %v2981 = vunpack.c.l.b16 %v2917
    %v2982 = vunpack.c.l.b16 %v2918
    %v2983 = vunpack.c.l.b16 %v2919
    %v2984 = vunpack.c.l.b16 %v2920
    %v2985 = vunpack.c.l.b16 %v2921
    %v2986 = vunpack.c.l.b16 %v2922
    %v2987 = vunpack.c.l.b16 %v2923
    %v2988 = vunpack.c.l.b16 %v2924
    %v2989 = vunpack.c.l.b16 %v2925
    %v2990 = vunpack.c.l.b16 %v2926
    %v2991 = vunpack.c.l.b16 %v2927
    %v2992 = vunpack.c.l.b16 %v2928
    %v2993 = vunpack.c.l.b16 %v2929
    %v2994 = vunpack.c.l.b16 %v2930
    %v2995 = vunpack.c.l.b16 %v2931
    %v2996 = vunpack.c.l.b16 %v2932
    %v2997 = vunpack.c.l.b16 %v2933
    %v2998 = vunpack.c.l.b16 %v2934
    %v2999 = vpack.c.b16 %v2968, %v2967
    %v3000 = vpack.c.b16 %v2970, %v2969
    %v3001 = vpack.c.b16 %v2972, %v2971
    %v3002 = vpack.c.b16 %v2974, %v2973
    %v3003 = vpack.c.b16 %v2976, %v2975
    %v3004 = vpack.c.b16 %v2978, %v2977
    %v3005 = vpack.c.b16 %v2980, %v2979
    %v3006 = vpack.c.b16 %v2982, %v2981
    %v3007 = vpack.c.b16 %v2984, %v2983
    %v3008 = vpack.c.b16 %v2986, %v2985
    %v3009 = vpack.c.b16 %v2988, %v2987
    %v3010 = vpack.c.b16 %v2990, %v2989
    %v3011 = vpack.c.b16 %v2992, %v2991
    %v3012 = vpack.c.b16 %v2994, %v2993
    %v3013 = vpack.c.b16 %v2996, %v2995
    %v3014 = vpack.c.b16 %v2998, %v2997
    %3031 = vmatprep.subr.bf16.mxu0 0
    %3032 = vmatpush1.bf16.msra.mxu0 %v2999
    %3033 = vmatprep.subr.bf16.mxu0 0
    %3034 = vmatpush1.bf16.msra.mxu0 %v3000
    %3035 = vmatprep.subr.bf16.mxu0 0
    %3036 = vmatpush1.bf16.msra.mxu0 %v3001
    %3037 = vmatprep.subr.bf16.mxu0 0
    %3038 = vmatpush1.bf16.msra.mxu0 %v3002
    %3039 = vmatprep.subr.bf16.mxu0 0
    %3040 = vmatpush1.bf16.msra.mxu0 %v3003
    %3041 = vmatprep.subr.bf16.mxu0 0
    %3042 = vmatpush1.bf16.msra.mxu0 %v3004
    %3043 = vmatprep.subr.bf16.mxu0 0
    %3044 = vmatpush1.bf16.msra.mxu0 %v3005
    %3045 = vmatprep.subr.bf16.mxu0 0
    %3046 = vmatpush1.bf16.msra.mxu0 %v3006
    %3047 = vmatprep.subr.bf16.mxu0 0
    %3048 = vmatpush1.bf16.msra.mxu0 %v3007
    %3049 = vmatprep.subr.bf16.mxu0 0
    %3050 = vmatpush1.bf16.msra.mxu0 %v3008
    %3051 = vmatprep.subr.bf16.mxu0 0
    %3052 = vmatpush1.bf16.msra.mxu0 %v3009
    %3053 = vmatprep.subr.bf16.mxu0 0
    %3054 = vmatpush1.bf16.msra.mxu0 %v3010
    %3055 = vmatprep.subr.bf16.mxu0 0
    %3056 = vmatpush1.bf16.msra.mxu0 %v3011
    %3057 = vmatprep.subr.bf16.mxu0 0
    %3058 = vmatpush1.bf16.msra.mxu0 %v3012
    %3059 = vmatprep.subr.bf16.mxu0 0
    %3060 = vmatpush1.bf16.msra.mxu0 %v3013
    %3061 = vmatprep.subr.bf16.mxu0 0
    %3062 = vmatpush1.bf16.msra.mxu0 %v3014
    %3063 = vmatprep.mubr.bf16.mxu0 %v2901
    %3064 = vmatmul.mubr.bf16.gmra.mrb[0].mxu0 %v2900
    %v3065 = vpop.f32.mrb[0].mxu0
    %v3066 = vadd.f32 0.0, %v3065
    %v3067 = vpop.f32.mrb[0].mxu0
    %v3068 = vpop.f32.mrb[0].mxu0
    %v3069 = vadd.f32 0.0, %v3068
    %v3070 = vpop.f32.mrb[0].mxu0
    %3071 = vdwg.mxu0
    %v3072 = vadd.f32 %v2562, %v3066
    %v3073 = vadd.f32 %v2563, %v3069
    %3074 = vst [vmem:[#allocation2] sm:$0xff] %v3072
    %3075 = vst [vmem:[#allocation2 + $0x8] sm:$0xff] %v3073
    // Predicated region
    $region54: #{tpu_custom_call.1} parent=1 // pred_check
      _
    $region55: #{tpu_custom_call.1} parent=1 // pred_check_branch
      %3077 = sbr.rel (0) target = $region57
    $region56: #{tpu_custom_call.1} parent=1 // pred_region
      %s3079 = ssub.s32 256, 256
      %3080 = vsyncadd [#allocation3], %s3079
      %s3081 = sshll.u32 [#allocation2], 4
      %s3082 = int_to_ptr.vmem [resolvable:$true] %s3081
      %3087 = dma.vmem_to_hbm [thread:$0]  %s3082, 256, %s13, [#allocation3], 128, 128, 8
    $region57: #{tpu_custom_call.1} parent=1 // pred_fallthru
      _
    // Predicated region
    $region58: #{tpu_custom_call.1} parent=1 // pred_check
      _
    $region59: #{tpu_custom_call.1} parent=1 // pred_check_branch
      %3089 = sbr.rel (0) target = $region61
    $region60: #{tpu_custom_call.1} parent=1 // pred_region
      %3090 = dma.done [#allocation3], 256
    $region61: #{tpu_custom_call.1} parent=1 // pred_fallthru
      _
    %3091 = vsyncpa [#allocation3], 1

</llo_original>
